<compile_context>
chip_gen: v7x
topology: tpu7x:2x2x1
jax: 0.10.0
libtpu: 0.0.40
codegen_flags: <defaults>
</compile_context>

<pallas_src>
import functools

import jax
import jax.numpy as jnp
from jax import lax
from jax.experimental import pallas as pl
from jax.experimental.pallas import tpu as pltpu


def lstm_chunk_kernel(x_ref, bias_ref, wih_hbm, whh_hbm, hT_ref,
                      wih_vmem, whh_vmem, gx_sc, h_sc, c_sc, dma_sem, *,
                      unroll):
    """One time-chunk of the serial LSTM recurrence for one batch block.

    x_ref   : (tc, bb, I)  raw inputs for this chunk (auto-pipelined)
    bias_ref: (1, 4H)      b_ih + b_hh (folded once per chunk)
    wih_hbm : (I, 4H)      W_ih^T, raw HBM ref (DMA'd once per batch block)
    whh_hbm : (H, 4H)      W_hh^T, raw HBM ref (DMA'd once per batch block)
    hT_ref  : (bb, H)      output: last hidden state for this batch block
    """
    chunk = pl.program_id(1)

    @pl.when(chunk == 0)
    def _():
        # One-time weight residency: single-buffered VMEM copies instead of a
        # double-buffered BlockSpec re-fetch every chunk.
        cp_ih = pltpu.make_async_copy(wih_hbm, wih_vmem, dma_sem.at[0])
        cp_hh = pltpu.make_async_copy(whh_hbm, whh_vmem, dma_sem.at[1])
        cp_ih.start()
        cp_hh.start()
        cp_ih.wait()
        cp_hh.wait()
        # PyTorch default: h0 = c0 = 0.
        h_sc[...] = jnp.zeros_like(h_sc)
        c_sc[...] = jnp.zeros_like(c_sc)

    tc, bb, in_dim = x_ref.shape
    H = h_sc.shape[-1]
    G = 4 * H

    # Fused input projection for the whole chunk: one MXU-friendly matmul
    # (tc*bb, I) @ (I, 4H) with the bias folded in.  This replaces the
    # HBM-materialized gates_x of the previous version.
    x2d = x_ref[...].reshape(tc * bb, in_dim)
    gx = jnp.dot(x2d, wih_vmem[...],
                 preferred_element_type=jnp.float32,
                 precision=lax.Precision.HIGHEST) + bias_ref[...]
    gx_sc[...] = gx.reshape(tc, bb, G)

    whh = whh_vmem[...]          # loop-invariant load; fits vregs for small H

    def step(t, carry):
        h, c = carry
        # Single recurrent MXU matmul per step; bias already folded into gx.
        g = gx_sc[t] + jnp.dot(h, whh,
                               preferred_element_type=jnp.float32,
                               precision=lax.Precision.HIGHEST)
        # PyTorch gate order: i, f, g, o.  One full-vreg sigmoid covers the
        # i/f/o quarters (3 EUP pushes/step instead of 5 for H < 128).
        sig = jax.nn.sigmoid(g)
        i_g = sig[:, 0 * H:1 * H]
        f_g = sig[:, 1 * H:2 * H]
        o_g = sig[:, 3 * H:4 * H]
        g_g = jnp.tanh(g[:, 2 * H:3 * H])
        c_new = f_g * c + i_g * g_g
        h_new = o_g * jnp.tanh(c_new)
        return h_new, c_new

    # tc divides T (enforced by the wrapper) -> no per-step validity masking.
    h_fin, c_fin = lax.fori_loop(0, tc, step, (h_sc[...], c_sc[...]),
                                 unroll=unroll)
    h_sc[...] = h_fin
    c_sc[...] = c_fin

    @pl.when(chunk == pl.num_programs(1) - 1)
    def _():
        hT_ref[...] = h_fin.astype(hT_ref.dtype)


def lstm_model_forward(x, w_ih, w_hh, b_ih, b_hh, w_fc, b_fc, *,
                       time_chunk=32, batch_block=None):
    """x: (B, T, I) f32. Weights in PyTorch layout. Returns (B, output) f32."""
    B, T, in_dim = x.shape
    H = w_hh.shape[1]
    G = 4 * H

    # Sublane-align the batch dimension (pad rows evolve independently and are
    # discarded afterwards).
    B_pad = max(8, -(-B // 8) * 8)
    if batch_block is None:
        bb = B_pad
    else:
        bb = max(8, (batch_block // 8) * 8)
        if B_pad % bb:
            bb = B_pad
    num_bblocks = B_pad // bb

    # VMEM-aware time chunk: double-buffered x stream + gates scratch +
    # single-buffered weights must fit a conservative 16 MiB budget so the
    # kernel stays inside v7x's smaller VMEM without raising vmem_limit_bytes.
    fixed_bytes = 4 * ((in_dim + H) * G + 4 * bb * H + bb * G)
    per_t_bytes = 4 * bb * (2 * in_dim + G)
    tc_cap = max(1, (16 * 1024 * 1024 - fixed_bytes) // per_t_bytes)
    tc = max(1, min(time_chunk, T, tc_cap))
    # Pick a chunk that divides T so the recurrence loop needs no tail mask.
    while T % tc:
        tc -= 1
    num_chunks = T // tc

    # (B, T, I) -> (T, B_pad, I): lane-dense chunks of raw inputs.
    xt = jnp.transpose(x.astype(jnp.float32), (1, 0, 2))
    if B_pad != B:
        xt = jnp.pad(xt, ((0, 0), (0, B_pad - B), (0, 0)))

    wih_t = jnp.transpose(w_ih).astype(jnp.float32)            # (I, 4H)
    whh_t = jnp.transpose(w_hh).astype(jnp.float32)            # (H, 4H)
    bias = (b_ih + b_hh).astype(jnp.float32).reshape(1, G)     # (1, 4H)

    kernel = functools.partial(lstm_chunk_kernel, unroll=min(tc, 8))

    h_T = pl.pallas_call(
        kernel,
        out_shape=jax.ShapeDtypeStruct((B_pad, H), jnp.float32),
        grid_spec=pltpu.PrefetchScalarGridSpec(
            num_scalar_prefetch=0,
            grid=(num_bblocks, num_chunks),
            in_specs=[
                pl.BlockSpec((tc, bb, in_dim), lambda b, c: (c, b, 0)),  # x
                pl.BlockSpec((1, G), lambda b, c: (0, 0)),               # bias
                pl.BlockSpec(memory_space=pl.ANY),                       # W_ih^T
                pl.BlockSpec(memory_space=pl.ANY),                       # W_hh^T
            ],
            out_specs=pl.BlockSpec((bb, H), lambda b, c: (b, 0)),
            scratch_shapes=[
                pltpu.VMEM((in_dim, G), jnp.float32),   # resident W_ih^T
                pltpu.VMEM((H, G), jnp.float32),        # resident W_hh^T
                pltpu.VMEM((tc, bb, G), jnp.float32),   # per-chunk gates
                pltpu.VMEM((bb, H), jnp.float32),       # h state
                pltpu.VMEM((bb, H), jnp.float32),       # c state
                pltpu.SemaphoreType.DMA((2,)),
            ],
        ),
        compiler_params=pltpu.CompilerParams(
            # Batch blocks are independent (v7x can split them across its two
            # TensorCores); the time recurrence is inherently serial.
            dimension_semantics=("parallel", "arbitrary"),
        ),
    )(xt, bias, wih_t, whh_t)

    # Linear head on h_T: trivially cheap, done in XLA (lane-dense kernel
    # output instead of a (B, O)=(2, 4) masked store).
    return jnp.dot(h_T[:B], jnp.transpose(w_fc),
                   precision=lax.Precision.HIGHEST) + b_fc


def _reference(x, w_ih, w_hh, b_ih, b_hh, w_fc, b_fc):
    """Plain-JAX reference matching torch.nn.LSTM + Linear semantics."""
    B, T, _ = x.shape
    H = w_hh.shape[1]
    h = jnp.zeros((B, H), jnp.float32)
    c = jnp.zeros((B, H), jnp.float32)
    for t in range(T):
        g = x[:, t, :] @ w_ih.T + h @ w_hh.T + b_ih + b_hh
        i_g = jax.nn.sigmoid(g[:, 0 * H:1 * H])
        f_g = jax.nn.sigmoid(g[:, 1 * H:2 * H])
        g_g = jnp.tanh(g[:, 2 * H:3 * H])
        o_g = jax.nn.sigmoid(g[:, 3 * H:4 * H])
        c = f_g * c + i_g * g_g
        h = o_g * jnp.tanh(c)
    return h @ w_fc.T + b_fc


if __name__ == "__main__":
    # Keep the XLA reference at full f32 precision so it matches the kernel's
    # explicit HIGHEST-precision MXU dots.
    jax.config.update("jax_default_matmul_precision", "highest")

    # Small, deterministic problem: batch=2, seq=8, input=16, hidden=32, out=4
    B, T, I, H, O = 2, 8, 16, 32, 4

    key = jax.random.PRNGKey(0)
    ks = jax.random.split(key, 7)
    scale = 1.0 / jnp.sqrt(H)
    x = jax.random.normal(ks[0], (B, T, I), jnp.float32)
    w_ih = jax.random.uniform(ks[1], (4 * H, I), jnp.float32, -scale, scale)
    w_hh = jax.random.uniform(ks[2], (4 * H, H), jnp.float32, -scale, scale)
    b_ih = jax.random.uniform(ks[3], (4 * H,), jnp.float32, -scale, scale)
    b_hh = jax.random.uniform(ks[4], (4 * H,), jnp.float32, -scale, scale)
    w_fc = jax.random.uniform(ks[5], (O, H), jnp.float32, -scale, scale)
    b_fc = jax.random.uniform(ks[6], (O,), jnp.float32, -scale, scale)

    fwd = jax.jit(lstm_model_forward)
    pred = jax.block_until_ready(fwd(x, w_ih, w_hh, b_ih, b_hh, w_fc, b_fc))

    ref = _reference(x, w_ih, w_hh, b_ih, b_hh, w_fc, b_fc)
    assert pred.shape == (B, O)
    assert jnp.allclose(pred, ref, atol=1e-5, rtol=1e-5)

    print("KERNEL_OK")
</pallas_src>

<mosaic_0001>
module attributes {stable_mosaic.version = 11 : i64} {
  func.func @lstm_chunk_kernel(%arg0: i32, %arg1: i32, %arg2: memref<8x8x16xf32, #tpu.memory_space<vmem>>, %arg3: memref<1x128xf32, #tpu.memory_space<vmem>>, %arg4: memref<16x128xf32, #tpu.memory_space<any>>, %arg5: memref<32x128xf32, #tpu.memory_space<any>>, %arg6: memref<8x32xf32, #tpu.memory_space<vmem>>, %arg7: memref<16x128xf32, #tpu.memory_space<vmem>>, %arg8: memref<32x128xf32, #tpu.memory_space<vmem>>, %arg9: memref<8x8x128xf32, #tpu.memory_space<vmem>>, %arg10: memref<8x32xf32, #tpu.memory_space<vmem>>, %arg11: memref<8x32xf32, #tpu.memory_space<vmem>>, %arg12: memref<2x!tpu.dma_semaphore, #tpu.memory_space<semaphore_mem>>) attributes {dimension_semantics = [#tpu.dimension_semantics<parallel>, #tpu.dimension_semantics<arbitrary>], iteration_bounds = array<i64: 1, 1>, scalar_prefetch = 0 : i64, scratch_operands = 6 : i64, tpu.core_type = #tpu.core_type<tc>, window_params = [{transform_indices = @transform_0, window_bounds = array<i64: 8, 8, 16>}, {pipeline_mode = #tpu.pipeline_mode<synchronous>, transform_indices = @transform_1, window_bounds = array<i64: 1, 128>}, {}, {}, {transform_indices = @transform_4, window_bounds = array<i64: 8, 32>}]} {
    %c0_i32 = arith.constant 0 : i32
    %0 = arith.cmpi eq, %arg1, %c0_i32 : i32
    %1 = arith.extui %0 : i1 to i32
    %c0_i32_0 = arith.constant 0 : i32
    %2 = arith.cmpi ne, %1, %c0_i32_0 : i32
    scf.if %2 {
      %c0_i32_55 = arith.constant 0 : i32
      %180 = tpu.memref_slice %arg12[%c0_i32_55] : memref<2x!tpu.dma_semaphore, #tpu.memory_space<semaphore_mem>> -> memref<1x!tpu.dma_semaphore, #tpu.memory_space<semaphore_mem>>
      %181 = tpu.memref_squeeze %180 : memref<1x!tpu.dma_semaphore, #tpu.memory_space<semaphore_mem>> -> memref<!tpu.dma_semaphore, #tpu.memory_space<semaphore_mem>>
      tpu.enqueue_dma source(%arg4 : memref<16x128xf32, #tpu.memory_space<any>>) target(%arg7 : memref<16x128xf32, #tpu.memory_space<vmem>>) target_semaphore(%181 : memref<!tpu.dma_semaphore, #tpu.memory_space<semaphore_mem>>)
      %c1_i32_56 = arith.constant 1 : i32
      %182 = tpu.memref_slice %arg12[%c1_i32_56] : memref<2x!tpu.dma_semaphore, #tpu.memory_space<semaphore_mem>> -> memref<1x!tpu.dma_semaphore, #tpu.memory_space<semaphore_mem>>
      %183 = tpu.memref_squeeze %182 : memref<1x!tpu.dma_semaphore, #tpu.memory_space<semaphore_mem>> -> memref<!tpu.dma_semaphore, #tpu.memory_space<semaphore_mem>>
      tpu.enqueue_dma source(%arg5 : memref<32x128xf32, #tpu.memory_space<any>>) target(%arg8 : memref<32x128xf32, #tpu.memory_space<vmem>>) target_semaphore(%183 : memref<!tpu.dma_semaphore, #tpu.memory_space<semaphore_mem>>)
      %c0_i32_57 = arith.constant 0 : i32
      %184 = tpu.memref_slice %arg12[%c0_i32_57] : memref<2x!tpu.dma_semaphore, #tpu.memory_space<semaphore_mem>> -> memref<1x!tpu.dma_semaphore, #tpu.memory_space<semaphore_mem>>
      %185 = tpu.memref_squeeze %184 : memref<1x!tpu.dma_semaphore, #tpu.memory_space<semaphore_mem>> -> memref<!tpu.dma_semaphore, #tpu.memory_space<semaphore_mem>>
      tpu.wait_dma2 semaphore(%185 : memref<!tpu.dma_semaphore, #tpu.memory_space<semaphore_mem>>) src(%arg4 : memref<16x128xf32, #tpu.memory_space<any>>) dst(%arg7 : memref<16x128xf32, #tpu.memory_space<vmem>>)
      %c1_i32_58 = arith.constant 1 : i32
      %186 = tpu.memref_slice %arg12[%c1_i32_58] : memref<2x!tpu.dma_semaphore, #tpu.memory_space<semaphore_mem>> -> memref<1x!tpu.dma_semaphore, #tpu.memory_space<semaphore_mem>>
      %187 = tpu.memref_squeeze %186 : memref<1x!tpu.dma_semaphore, #tpu.memory_space<semaphore_mem>> -> memref<!tpu.dma_semaphore, #tpu.memory_space<semaphore_mem>>
      tpu.wait_dma2 semaphore(%187 : memref<!tpu.dma_semaphore, #tpu.memory_space<semaphore_mem>>) src(%arg5 : memref<32x128xf32, #tpu.memory_space<any>>) dst(%arg8 : memref<32x128xf32, #tpu.memory_space<vmem>>)
      %cst_59 = arith.constant 0.000000e+00 : f32
      %188 = vector.broadcast %cst_59 : f32 to vector<8x32xf32>
      %c0_60 = arith.constant 0 : index
      %c0_61 = arith.constant 0 : index
      %189 = vector.load %arg10[%c0_60, %c0_61] : memref<8x32xf32, #tpu.memory_space<vmem>>, vector<8x32xf32>
      tpu.vector_store %arg10[%c0_60, %c0_61], %188 {strides = array<i32>} : memref<8x32xf32, #tpu.memory_space<vmem>>, vector<8x32xf32>,
      %cst_62 = arith.constant 0.000000e+00 : f32
      %190 = vector.broadcast %cst_62 : f32 to vector<8x32xf32>
      %c0_63 = arith.constant 0 : index
      %c0_64 = arith.constant 0 : index
      %191 = vector.load %arg11[%c0_63, %c0_64] : memref<8x32xf32, #tpu.memory_space<vmem>>, vector<8x32xf32>
      tpu.vector_store %arg11[%c0_63, %c0_64], %190 {strides = array<i32>} : memref<8x32xf32, #tpu.memory_space<vmem>>, vector<8x32xf32>,
    } else {
    }
    %c0 = arith.constant 0 : index
    %c0_1 = arith.constant 0 : index
    %c0_2 = arith.constant 0 : index
    %3 = vector.load %arg2[%c0, %c0_1, %c0_2] : memref<8x8x16xf32, #tpu.memory_space<vmem>>, vector<8x8x16xf32>
    %4 = vector.shape_cast %3 : vector<8x8x16xf32> to vector<64x16xf32>
    %c0_3 = arith.constant 0 : index
    %c0_4 = arith.constant 0 : index
    %5 = vector.load %arg7[%c0_3, %c0_4] : memref<16x128xf32, #tpu.memory_space<vmem>>, vector<16x128xf32>
    %cst = arith.constant dense<0.000000e+00> : vector<64x128xf32>
    %6 = tpu.matmul %4, %5, %cst {dimension_numbers = #tpu.dot_dimension_numbers<[1], [0], [0], [1], [0, 0, 1, 1], [], []>, precision = #tpu.contract_precision<fp32>} : vector<64x16xf32>, vector<16x128xf32>, vector<64x128xf32> -> vector<64x128xf32>
    %c0_5 = arith.constant 0 : index
    %c0_6 = arith.constant 0 : index
    %7 = vector.load %arg3[%c0_5, %c0_6] : memref<1x128xf32, #tpu.memory_space<vmem>>, vector<1x128xf32>
    %8 = vector.broadcast %7 : vector<1x128xf32> to vector<64x128xf32>
    %9 = arith.addf %6, %8 : vector<64x128xf32>
    %10 = vector.shape_cast %9 : vector<64x128xf32> to vector<8x8x128xf32>
    %c0_7 = arith.constant 0 : index
    %c0_8 = arith.constant 0 : index
    %c0_9 = arith.constant 0 : index
    %11 = vector.load %arg9[%c0_7, %c0_8, %c0_9] : memref<8x8x128xf32, #tpu.memory_space<vmem>>, vector<8x8x128xf32>
    tpu.vector_store %arg9[%c0_7, %c0_8, %c0_9], %10 {strides = array<i32>} : memref<8x8x128xf32, #tpu.memory_space<vmem>>, vector<8x8x128xf32>,
    %c0_10 = arith.constant 0 : index
    %c0_11 = arith.constant 0 : index
    %12 = vector.load %arg8[%c0_10, %c0_11] : memref<32x128xf32, #tpu.memory_space<vmem>>, vector<32x128xf32>
    %c0_12 = arith.constant 0 : index
    %c0_13 = arith.constant 0 : index
    %13 = vector.load %arg10[%c0_12, %c0_13] : memref<8x32xf32, #tpu.memory_space<vmem>>, vector<8x32xf32>
    %c0_14 = arith.constant 0 : index
    %c0_15 = arith.constant 0 : index
    %14 = vector.load %arg11[%c0_14, %c0_15] : memref<8x32xf32, #tpu.memory_space<vmem>>, vector<8x32xf32>
    %c0_i32_16 = arith.constant 0 : i32
    %15 = arith.index_cast %c0_i32_16 : i32 to index
    %c0_17 = arith.constant 0 : index
    %c0_18 = arith.constant 0 : index
    %16 = vector.load %arg9[%15, %c0_17, %c0_18] : memref<8x8x128xf32, #tpu.memory_space<vmem>>, vector<1x8x128xf32>
    %17 = vector.shape_cast %16 : vector<1x8x128xf32> to vector<8x128xf32>
    %cst_19 = arith.constant dense<0.000000e+00> : vector<8x128xf32>
    %18 = tpu.matmul %13, %12, %cst_19 {dimension_numbers = #tpu.dot_dimension_numbers<[1], [0], [0], [1], [0, 0, 1, 1], [], []>, precision = #tpu.contract_precision<fp32>} : vector<8x32xf32>, vector<32x128xf32>, vector<8x128xf32> -> vector<8x128xf32>
    %19 = arith.addf %17, %18 : vector<8x128xf32>
    %20 = arith.negf %19 : vector<8x128xf32>
    %21 = math.exp %20 : vector<8x128xf32>
    %cst_20 = arith.constant 1.000000e+00 : f32
    %22 = vector.broadcast %cst_20 : f32 to vector<8x128xf32>
    %23 = arith.addf %22, %21 : vector<8x128xf32>
    %24 = arith.divf %22, %23 : vector<8x128xf32>
    %25 = vector.extract_strided_slice %24 {offsets = [0, 0], sizes = [8, 32], strides = [1, 1]} : vector<8x128xf32> to vector<8x32xf32>
    %26 = vector.extract_strided_slice %24 {offsets = [0, 32], sizes = [8, 32], strides = [1, 1]} : vector<8x128xf32> to vector<8x32xf32>
    %27 = vector.extract_strided_slice %24 {offsets = [0, 96], sizes = [8, 32], strides = [1, 1]} : vector<8x128xf32> to vector<8x32xf32>
    %28 = vector.extract_strided_slice %19 {offsets = [0, 64], sizes = [8, 32], strides = [1, 1]} : vector<8x128xf32> to vector<8x32xf32>
    %29 = math.tanh %28 : vector<8x32xf32>
    %30 = arith.mulf %26, %14 : vector<8x32xf32>
    %31 = arith.mulf %25, %29 : vector<8x32xf32>
    %32 = arith.addf %30, %31 : vector<8x32xf32>
    %33 = math.tanh %32 : vector<8x32xf32>
    %34 = arith.mulf %27, %33 : vector<8x32xf32>
    %c1_i32 = arith.constant 1 : i32
    %35 = arith.index_cast %c1_i32 : i32 to index
    %c0_21 = arith.constant 0 : index
    %c0_22 = arith.constant 0 : index
    %36 = vector.load %arg9[%35, %c0_21, %c0_22] : memref<8x8x128xf32, #tpu.memory_space<vmem>>, vector<1x8x128xf32>
    %37 = vector.shape_cast %36 : vector<1x8x128xf32> to vector<8x128xf32>
    %cst_23 = arith.constant dense<0.000000e+00> : vector<8x128xf32>
    %38 = tpu.matmul %34, %12, %cst_23 {dimension_numbers = #tpu.dot_dimension_numbers<[1], [0], [0], [1], [0, 0, 1, 1], [], []>, precision = #tpu.contract_precision<fp32>} : vector<8x32xf32>, vector<32x128xf32>, vector<8x128xf32> -> vector<8x128xf32>
    %39 = arith.addf %37, %38 : vector<8x128xf32>
    %40 = arith.negf %39 : vector<8x128xf32>
    %41 = math.exp %40 : vector<8x128xf32>
    %cst_24 = arith.constant 1.000000e+00 : f32
    %42 = vector.broadcast %cst_24 : f32 to vector<8x128xf32>
    %43 = arith.addf %42, %41 : vector<8x128xf32>
    %44 = arith.divf %42, %43 : vector<8x128xf32>
    %45 = vector.extract_strided_slice %44 {offsets = [0, 0], sizes = [8, 32], strides = [1, 1]} : vector<8x128xf32> to vector<8x32xf32>
    %46 = vector.extract_strided_slice %44 {offsets = [0, 32], sizes = [8, 32], strides = [1, 1]} : vector<8x128xf32> to vector<8x32xf32>
    %47 = vector.extract_strided_slice %44 {offsets = [0, 96], sizes = [8, 32], strides = [1, 1]} : vector<8x128xf32> to vector<8x32xf32>
    %48 = vector.extract_strided_slice %39 {offsets = [0, 64], sizes = [8, 32], strides = [1, 1]} : vector<8x128xf32> to vector<8x32xf32>
    %49 = math.tanh %48 : vector<8x32xf32>
    %50 = arith.mulf %46, %32 : vector<8x32xf32>
    %51 = arith.mulf %45, %49 : vector<8x32xf32>
    %52 = arith.addf %50, %51 : vector<8x32xf32>
    %53 = math.tanh %52 : vector<8x32xf32>
    %54 = arith.mulf %47, %53 : vector<8x32xf32>
    %c2_i32 = arith.constant 2 : i32
    %55 = arith.index_cast %c2_i32 : i32 to index
    %c0_25 = arith.constant 0 : index
    %c0_26 = arith.constant 0 : index
    %56 = vector.load %arg9[%55, %c0_25, %c0_26] : memref<8x8x128xf32, #tpu.memory_space<vmem>>, vector<1x8x128xf32>
    %57 = vector.shape_cast %56 : vector<1x8x128xf32> to vector<8x128xf32>
    %cst_27 = arith.constant dense<0.000000e+00> : vector<8x128xf32>
    %58 = tpu.matmul %54, %12, %cst_27 {dimension_numbers = #tpu.dot_dimension_numbers<[1], [0], [0], [1], [0, 0, 1, 1], [], []>, precision = #tpu.contract_precision<fp32>} : vector<8x32xf32>, vector<32x128xf32>, vector<8x128xf32> -> vector<8x128xf32>
    %59 = arith.addf %57, %58 : vector<8x128xf32>
    %60 = arith.negf %59 : vector<8x128xf32>
    %61 = math.exp %60 : vector<8x128xf32>
    %cst_28 = arith.constant 1.000000e+00 : f32
    %62 = vector.broadcast %cst_28 : f32 to vector<8x128xf32>
    %63 = arith.addf %62, %61 : vector<8x128xf32>
    %64 = arith.divf %62, %63 : vector<8x128xf32>
    %65 = vector.extract_strided_slice %64 {offsets = [0, 0], sizes = [8, 32], strides = [1, 1]} : vector<8x128xf32> to vector<8x32xf32>
    %66 = vector.extract_strided_slice %64 {offsets = [0, 32], sizes = [8, 32], strides = [1, 1]} : vector<8x128xf32> to vector<8x32xf32>
    %67 = vector.extract_strided_slice %64 {offsets = [0, 96], sizes = [8, 32], strides = [1, 1]} : vector<8x128xf32> to vector<8x32xf32>
    %68 = vector.extract_strided_slice %59 {offsets = [0, 64], sizes = [8, 32], strides = [1, 1]} : vector<8x128xf32> to vector<8x32xf32>
    %69 = math.tanh %68 : vector<8x32xf32>
    %70 = arith.mulf %66, %52 : vector<8x32xf32>
    %71 = arith.mulf %65, %69 : vector<8x32xf32>
    %72 = arith.addf %70, %71 : vector<8x32xf32>
    %73 = math.tanh %72 : vector<8x32xf32>
    %74 = arith.mulf %67, %73 : vector<8x32xf32>
    %c3_i32 = arith.constant 3 : i32
    %75 = arith.index_cast %c3_i32 : i32 to index
    %c0_29 = arith.constant 0 : index
    %c0_30 = arith.constant 0 : index
    %76 = vector.load %arg9[%75, %c0_29, %c0_30] : memref<8x8x128xf32, #tpu.memory_space<vmem>>, vector<1x8x128xf32>
    %77 = vector.shape_cast %76 : vector<1x8x128xf32> to vector<8x128xf32>
    %cst_31 = arith.constant dense<0.000000e+00> : vector<8x128xf32>
    %78 = tpu.matmul %74, %12, %cst_31 {dimension_numbers = #tpu.dot_dimension_numbers<[1], [0], [0], [1], [0, 0, 1, 1], [], []>, precision = #tpu.contract_precision<fp32>} : vector<8x32xf32>, vector<32x128xf32>, vector<8x128xf32> -> vector<8x128xf32>
    %79 = arith.addf %77, %78 : vector<8x128xf32>
    %80 = arith.negf %79 : vector<8x128xf32>
    %81 = math.exp %80 : vector<8x128xf32>
    %cst_32 = arith.constant 1.000000e+00 : f32
    %82 = vector.broadcast %cst_32 : f32 to vector<8x128xf32>
    %83 = arith.addf %82, %81 : vector<8x128xf32>
    %84 = arith.divf %82, %83 : vector<8x128xf32>
    %85 = vector.extract_strided_slice %84 {offsets = [0, 0], sizes = [8, 32], strides = [1, 1]} : vector<8x128xf32> to vector<8x32xf32>
    %86 = vector.extract_strided_slice %84 {offsets = [0, 32], sizes = [8, 32], strides = [1, 1]} : vector<8x128xf32> to vector<8x32xf32>
    %87 = vector.extract_strided_slice %84 {offsets = [0, 96], sizes = [8, 32], strides = [1, 1]} : vector<8x128xf32> to vector<8x32xf32>
    %88 = vector.extract_strided_slice %79 {offsets = [0, 64], sizes = [8, 32], strides = [1, 1]} : vector<8x128xf32> to vector<8x32xf32>
    %89 = math.tanh %88 : vector<8x32xf32>
    %90 = arith.mulf %86, %72 : vector<8x32xf32>
    %91 = arith.mulf %85, %89 : vector<8x32xf32>
    %92 = arith.addf %90, %91 : vector<8x32xf32>
    %93 = math.tanh %92 : vector<8x32xf32>
    %94 = arith.mulf %87, %93 : vector<8x32xf32>
    %c4_i32 = arith.constant 4 : i32
    %95 = arith.index_cast %c4_i32 : i32 to index
    %c0_33 = arith.constant 0 : index
    %c0_34 = arith.constant 0 : index
    %96 = vector.load %arg9[%95, %c0_33, %c0_34] : memref<8x8x128xf32, #tpu.memory_space<vmem>>, vector<1x8x128xf32>
    %97 = vector.shape_cast %96 : vector<1x8x128xf32> to vector<8x128xf32>
    %cst_35 = arith.constant dense<0.000000e+00> : vector<8x128xf32>
    %98 = tpu.matmul %94, %12, %cst_35 {dimension_numbers = #tpu.dot_dimension_numbers<[1], [0], [0], [1], [0, 0, 1, 1], [], []>, precision = #tpu.contract_precision<fp32>} : vector<8x32xf32>, vector<32x128xf32>, vector<8x128xf32> -> vector<8x128xf32>
    %99 = arith.addf %97, %98 : vector<8x128xf32>
    %100 = arith.negf %99 : vector<8x128xf32>
    %101 = math.exp %100 : vector<8x128xf32>
    %cst_36 = arith.constant 1.000000e+00 : f32
    %102 = vector.broadcast %cst_36 : f32 to vector<8x128xf32>
    %103 = arith.addf %102, %101 : vector<8x128xf32>
    %104 = arith.divf %102, %103 : vector<8x128xf32>
    %105 = vector.extract_strided_slice %104 {offsets = [0, 0], sizes = [8, 32], strides = [1, 1]} : vector<8x128xf32> to vector<8x32xf32>
    %106 = vector.extract_strided_slice %104 {offsets = [0, 32], sizes = [8, 32], strides = [1, 1]} : vector<8x128xf32> to vector<8x32xf32>
    %107 = vector.extract_strided_slice %104 {offsets = [0, 96], sizes = [8, 32], strides = [1, 1]} : vector<8x128xf32> to vector<8x32xf32>
    %108 = vector.extract_strided_slice %99 {offsets = [0, 64], sizes = [8, 32], strides = [1, 1]} : vector<8x128xf32> to vector<8x32xf32>
    %109 = math.tanh %108 : vector<8x32xf32>
    %110 = arith.mulf %106, %92 : vector<8x32xf32>
    %111 = arith.mulf %105, %109 : vector<8x32xf32>
    %112 = arith.addf %110, %111 : vector<8x32xf32>
    %113 = math.tanh %112 : vector<8x32xf32>
    %114 = arith.mulf %107, %113 : vector<8x32xf32>
    %c5_i32 = arith.constant 5 : i32
    %115 = arith.index_cast %c5_i32 : i32 to index
    %c0_37 = arith.constant 0 : index
    %c0_38 = arith.constant 0 : index
    %116 = vector.load %arg9[%115, %c0_37, %c0_38] : memref<8x8x128xf32, #tpu.memory_space<vmem>>, vector<1x8x128xf32>
    %117 = vector.shape_cast %116 : vector<1x8x128xf32> to vector<8x128xf32>
    %cst_39 = arith.constant dense<0.000000e+00> : vector<8x128xf32>
    %118 = tpu.matmul %114, %12, %cst_39 {dimension_numbers = #tpu.dot_dimension_numbers<[1], [0], [0], [1], [0, 0, 1, 1], [], []>, precision = #tpu.contract_precision<fp32>} : vector<8x32xf32>, vector<32x128xf32>, vector<8x128xf32> -> vector<8x128xf32>
    %119 = arith.addf %117, %118 : vector<8x128xf32>
    %120 = arith.negf %119 : vector<8x128xf32>
    %121 = math.exp %120 : vector<8x128xf32>
    %cst_40 = arith.constant 1.000000e+00 : f32
    %122 = vector.broadcast %cst_40 : f32 to vector<8x128xf32>
    %123 = arith.addf %122, %121 : vector<8x128xf32>
    %124 = arith.divf %122, %123 : vector<8x128xf32>
    %125 = vector.extract_strided_slice %124 {offsets = [0, 0], sizes = [8, 32], strides = [1, 1]} : vector<8x128xf32> to vector<8x32xf32>
    %126 = vector.extract_strided_slice %124 {offsets = [0, 32], sizes = [8, 32], strides = [1, 1]} : vector<8x128xf32> to vector<8x32xf32>
    %127 = vector.extract_strided_slice %124 {offsets = [0, 96], sizes = [8, 32], strides = [1, 1]} : vector<8x128xf32> to vector<8x32xf32>
    %128 = vector.extract_strided_slice %119 {offsets = [0, 64], sizes = [8, 32], strides = [1, 1]} : vector<8x128xf32> to vector<8x32xf32>
    %129 = math.tanh %128 : vector<8x32xf32>
    %130 = arith.mulf %126, %112 : vector<8x32xf32>
    %131 = arith.mulf %125, %129 : vector<8x32xf32>
    %132 = arith.addf %130, %131 : vector<8x32xf32>
    %133 = math.tanh %132 : vector<8x32xf32>
    %134 = arith.mulf %127, %133 : vector<8x32xf32>
    %c6_i32 = arith.constant 6 : i32
    %135 = arith.index_cast %c6_i32 : i32 to index
    %c0_41 = arith.constant 0 : index
    %c0_42 = arith.constant 0 : index
    %136 = vector.load %arg9[%135, %c0_41, %c0_42] : memref<8x8x128xf32, #tpu.memory_space<vmem>>, vector<1x8x128xf32>
    %137 = vector.shape_cast %136 : vector<1x8x128xf32> to vector<8x128xf32>
    %cst_43 = arith.constant dense<0.000000e+00> : vector<8x128xf32>
    %138 = tpu.matmul %134, %12, %cst_43 {dimension_numbers = #tpu.dot_dimension_numbers<[1], [0], [0], [1], [0, 0, 1, 1], [], []>, precision = #tpu.contract_precision<fp32>} : vector<8x32xf32>, vector<32x128xf32>, vector<8x128xf32> -> vector<8x128xf32>
    %139 = arith.addf %137, %138 : vector<8x128xf32>
    %140 = arith.negf %139 : vector<8x128xf32>
    %141 = math.exp %140 : vector<8x128xf32>
    %cst_44 = arith.constant 1.000000e+00 : f32
    %142 = vector.broadcast %cst_44 : f32 to vector<8x128xf32>
    %143 = arith.addf %142, %141 : vector<8x128xf32>
    %144 = arith.divf %142, %143 : vector<8x128xf32>
    %145 = vector.extract_strided_slice %144 {offsets = [0, 0], sizes = [8, 32], strides = [1, 1]} : vector<8x128xf32> to vector<8x32xf32>
    %146 = vector.extract_strided_slice %144 {offsets = [0, 32], sizes = [8, 32], strides = [1, 1]} : vector<8x128xf32> to vector<8x32xf32>
    %147 = vector.extract_strided_slice %144 {offsets = [0, 96], sizes = [8, 32], strides = [1, 1]} : vector<8x128xf32> to vector<8x32xf32>
    %148 = vector.extract_strided_slice %139 {offsets = [0, 64], sizes = [8, 32], strides = [1, 1]} : vector<8x128xf32> to vector<8x32xf32>
    %149 = math.tanh %148 : vector<8x32xf32>
    %150 = arith.mulf %146, %132 : vector<8x32xf32>
    %151 = arith.mulf %145, %149 : vector<8x32xf32>
    %152 = arith.addf %150, %151 : vector<8x32xf32>
    %153 = math.tanh %152 : vector<8x32xf32>
    %154 = arith.mulf %147, %153 : vector<8x32xf32>
    %c7_i32 = arith.constant 7 : i32
    %155 = arith.index_cast %c7_i32 : i32 to index
    %c0_45 = arith.constant 0 : index
    %c0_46 = arith.constant 0 : index
    %156 = vector.load %arg9[%155, %c0_45, %c0_46] : memref<8x8x128xf32, #tpu.memory_space<vmem>>, vector<1x8x128xf32>
    %157 = vector.shape_cast %156 : vector<1x8x128xf32> to vector<8x128xf32>
    %cst_47 = arith.constant dense<0.000000e+00> : vector<8x128xf32>
    %158 = tpu.matmul %154, %12, %cst_47 {dimension_numbers = #tpu.dot_dimension_numbers<[1], [0], [0], [1], [0, 0, 1, 1], [], []>, precision = #tpu.contract_precision<fp32>} : vector<8x32xf32>, vector<32x128xf32>, vector<8x128xf32> -> vector<8x128xf32>
    %159 = arith.addf %157, %158 : vector<8x128xf32>
    %160 = arith.negf %159 : vector<8x128xf32>
    %161 = math.exp %160 : vector<8x128xf32>
    %cst_48 = arith.constant 1.000000e+00 : f32
    %162 = vector.broadcast %cst_48 : f32 to vector<8x128xf32>
    %163 = arith.addf %162, %161 : vector<8x128xf32>
    %164 = arith.divf %162, %163 : vector<8x128xf32>
    %165 = vector.extract_strided_slice %164 {offsets = [0, 0], sizes = [8, 32], strides = [1, 1]} : vector<8x128xf32> to vector<8x32xf32>
    %166 = vector.extract_strided_slice %164 {offsets = [0, 32], sizes = [8, 32], strides = [1, 1]} : vector<8x128xf32> to vector<8x32xf32>
    %167 = vector.extract_strided_slice %164 {offsets = [0, 96], sizes = [8, 32], strides = [1, 1]} : vector<8x128xf32> to vector<8x32xf32>
    %168 = vector.extract_strided_slice %159 {offsets = [0, 64], sizes = [8, 32], strides = [1, 1]} : vector<8x128xf32> to vector<8x32xf32>
    %169 = math.tanh %168 : vector<8x32xf32>
    %170 = arith.mulf %166, %152 : vector<8x32xf32>
    %171 = arith.mulf %165, %169 : vector<8x32xf32>
    %172 = arith.addf %170, %171 : vector<8x32xf32>
    %173 = math.tanh %172 : vector<8x32xf32>
    %174 = arith.mulf %167, %173 : vector<8x32xf32>
    %c8_i32 = arith.constant 8 : i32
    %c0_49 = arith.constant 0 : index
    %c0_50 = arith.constant 0 : index
    %175 = vector.load %arg10[%c0_49, %c0_50] : memref<8x32xf32, #tpu.memory_space<vmem>>, vector<8x32xf32>
    tpu.vector_store %arg10[%c0_49, %c0_50], %174 {strides = array<i32>} : memref<8x32xf32, #tpu.memory_space<vmem>>, vector<8x32xf32>,
    %c0_51 = arith.constant 0 : index
    %c0_52 = arith.constant 0 : index
    %176 = vector.load %arg11[%c0_51, %c0_52] : memref<8x32xf32, #tpu.memory_space<vmem>>, vector<8x32xf32>
    tpu.vector_store %arg11[%c0_51, %c0_52], %172 {strides = array<i32>} : memref<8x32xf32, #tpu.memory_space<vmem>>, vector<8x32xf32>,
    %c0_i32_53 = arith.constant 0 : i32
    %177 = arith.cmpi eq, %arg1, %c0_i32_53 : i32
    %178 = arith.extui %177 : i1 to i32
    %c0_i32_54 = arith.constant 0 : i32
    %179 = arith.cmpi ne, %178, %c0_i32_54 : i32
    scf.if %179 {
      %c0_55 = arith.constant 0 : index
      %c0_56 = arith.constant 0 : index
      %180 = vector.load %arg6[%c0_55, %c0_56] : memref<8x32xf32, #tpu.memory_space<vmem>>, vector<8x32xf32>
      tpu.vector_store %arg6[%c0_55, %c0_56], %174 {strides = array<i32>} : memref<8x32xf32, #tpu.memory_space<vmem>>, vector<8x32xf32>,
    } else {
    }
    return
  }
  func.func @transform_0(%arg0: i32, %arg1: i32) -> (i32, i32, i32) {
    %c0_i32 = arith.constant 0 : i32
    %c0_i32_0 = arith.constant 0 : i32
    return %arg1, %arg0, %c0_i32 : i32, i32, i32
  }
  func.func @transform_1(%arg0: i32, %arg1: i32) -> (i32, i32) {
    %c0_i32 = arith.constant 0 : i32
    %c0_i32_0 = arith.constant 0 : i32
    %c0_i32_1 = arith.constant 0 : i32
    return %c0_i32, %c0_i32_0 : i32, i32
  }
  func.func @transform_4(%arg0: i32, %arg1: i32) -> (i32, i32) {
    %c0_i32 = arith.constant 0 : i32
    %c0_i32_0 = arith.constant 0 : i32
    return %arg0, %c0_i32 : i32, i32
  }
}

</mosaic_0001>

<llo_original>
// kernel: lstm_model_forward.1
$region0: #{lstm_model_forward.1}
  #allocation0 [shape = 'u32[]', space=smem, size = 0x4, offset = 0x4, fixed_abs, tag = 'smem constant byte address 0x4 - core index']
  #allocation1 [shape = 'u32[144,128]{1,0:T(1,128)}', space=vmem, size = 0x12000, scoped, tag = 'internal scratch']
  #allocation2 [shape = 'f32[16,128]{1,0:T(8,128)}', space=vmem, size = 0x2000, scoped, tag = 'scratch operand']
  #allocation3 [shape = 'f32[32,128]{1,0:T(8,128)}', space=vmem, size = 0x4000, scoped, tag = 'scratch operand']
  #allocation4 [shape = 'f32[8,8,128]{2,1,0:T(8,128)}', space=vmem, size = 0x8000, scoped, tag = 'scratch operand']
  #allocation5 [shape = 'f32[8,32]{1,0:T(8,128)}', space=vmem, size = 0x1000, scoped, tag = 'scratch operand']
  #allocation6 [shape = 'f32[8,32]{1,0:T(8,128)}', space=vmem, size = 0x1000, scoped, tag = 'scratch operand']
  #allocation7 [shape = 's32[2]{0}', space=sflag, size = 0x8, scoped, tag = 'scratch operand']
  #allocation8 [shape = 's32[]', space=sflag, size = 0x4, offset = 0, fixed_abs, tag = 'sflag constant byte address 0x0 - dummy sync flag']
  #allocation9 [shape = 's32[]', space=sflag, size = 0x4, offset = 0, fixed_abs, tag = 'sflag constant byte address 0x0 - dummy sync flag']
  %s0 = inlined_call_operand.vmem [shape: f32[8,8,16], index: 0, kind: input, shape index: {}]
  %s1 = inlined_call_operand.vmem [shape: f32[1,128], index: 1, kind: input, shape index: {}]
  %s2 = inlined_call_operand.vmem [shape: f32[16,128], index: 2, kind: input, shape index: {}]
  %s3 = inlined_call_operand.vmem [shape: f32[32,128], index: 3, kind: input, shape index: {}]
  %s4 = inlined_call_operand.vmem [shape: f32[8,32], index: 4, kind: output, shape index: {}]
  %s5 = sld [smem:[#allocation0]]
  $region94: #{lstm_model_forward.1} parent=0
    _
  %s7 = ssub.s32 1, %s5
  %s8 = scalar_select 0, %s7, %s5
  // Predicated region
  $region2: #{lstm_model_forward.1} parent=0 // pred_check
    _
  $region3: #{lstm_model_forward.1} parent=0 // pred_check_branch
    %10 = sbr.rel (0) target = $region5
  $region4: #{lstm_model_forward.1} parent=0 // pred_region
    _
  $region5: #{lstm_model_forward.1} parent=0 // pred_fallthru
    _
  // Predicated region
  $region6: #{lstm_model_forward.1} parent=0 // pred_check
    _
  $region7: #{lstm_model_forward.1} parent=0 // pred_check_branch
    %12 = sbr.rel (0) target = $region9
  $region8: #{lstm_model_forward.1} parent=0 // pred_region
    _
  $region9: #{lstm_model_forward.1} parent=0 // pred_fallthru
    _
  %p13 = scmp.eq.s32.totalorder 0, 0
  // Predicated region
  $region10: #{lstm_model_forward.1} parent=0 // pred_check
    %p14 = pneg %p13
  $region11: #{lstm_model_forward.1} parent=0 // pred_check_branch
    %16 = sbr.rel (%p14) target = $region13
  $region12: #{lstm_model_forward.1} parent=0 // pred_region
    %p18 = scmp.lt.u32.totalorder 16, 8
    %p19 = pneg %p18
    // Predicated region
    $region14: #{lstm_model_forward.1} parent=12 // pred_check
      _
    $region15: #{lstm_model_forward.1} parent=12 // pred_check_branch
      %21 = sbr.rel (%p18) target = $region17
    $region16: #{lstm_model_forward.1} parent=12 // pred_region
      %s36 = sand.u32 16, 7
      %p37 = scmp.eq.s32.totalorder %s36, 0
      // Predicated region
      $region29: #{lstm_model_forward.1} parent=16 // pred_check
        %p38 = pneg %p37
      $region30: #{lstm_model_forward.1} parent=16 // pred_check_branch
        %40 = sbr.rel (%p38) target = $region32
      $region31: #{lstm_model_forward.1} parent=16 // pred_region
        loop: start=0, step=1, limit=1
        $region33: #{lstm_model_forward.1} parent=31 // loop_pre_header
          _
        $region34: #{lstm_model_forward.1} parent=31 // loop_header
          %s42 = sphi 0, %s46
          %p43 = scmp.ge.s32.totalorder %s42, 1
          %s47 = sphi %s2, %s2
          %s48 = sphi [#allocation2], [#allocation2]
        $region35: #{lstm_model_forward.1} parent=31 // loop_header_branch
          %45 = sbr.rel (%p43) target = $region39
        $region36: #{lstm_model_forward.1} parent=31 // loop_body
          %v49 = vld [vmem:[%s47] sm:$0xff]
          %50 = vst [vmem:[%s48] sm:$0xff] %v49
          %v51 = vld [vmem:[%s47 + $0x8] sm:$0xff]
          %52 = vst [vmem:[%s48 + $0x8] sm:$0xff] %v51
        $region37: #{lstm_model_forward.1} parent=31 // loop_footer
          %s46 = sadd.s32 1, %s42
        $region38: #{lstm_model_forward.1} parent=31 // loop_footer_branch
          %41 = sbr.rel target = $region34
        $region39: #{lstm_model_forward.1} parent=31 // loop_exit
          _
      $region32: #{lstm_model_forward.1} parent=16 // pred_fallthru
        _
      %p53 = pneg %p37
      // Predicated region
      $region40: #{lstm_model_forward.1} parent=16 // pred_check
        _
      $region41: #{lstm_model_forward.1} parent=16 // pred_check_branch
        %55 = sbr.rel (%p37) target = $region43
      $region42: #{lstm_model_forward.1} parent=16 // pred_region
        %s56 = sand.u32 16, 7
      $region43: #{lstm_model_forward.1} parent=16 // pred_fallthru
        _
    $region17: #{lstm_model_forward.1} parent=12 // pred_fallthru
      _
    // Predicated region
    $region18: #{lstm_model_forward.1} parent=12 // pred_check
      %p22 = pneg %p18
    $region19: #{lstm_model_forward.1} parent=12 // pred_check_branch
      %24 = sbr.rel (%p22) target = $region21
    $region20: #{lstm_model_forward.1} parent=12 // pred_region
      %s25 = sshllo.u32 0, 16
      loop: start=0, step=1, limit=1
      $region22: #{lstm_model_forward.1} parent=20 // loop_pre_header
        _
      $region23: #{lstm_model_forward.1} parent=20 // loop_header
        %s27 = sphi 0, %s31
        %p28 = scmp.ge.s32.totalorder %s27, 1
        %s32 = sphi %s2, %s2
        %s33 = sphi [#allocation2], [#allocation2]
      $region24: #{lstm_model_forward.1} parent=20 // loop_header_branch
        %30 = sbr.rel (%p28) target = $region28
      $region25: #{lstm_model_forward.1} parent=20 // loop_body
        %v34 = vld [vmem:[%s32] sm:%s25]
        %35 = vst [vmem:[%s33] sm:%s25] %v34
      $region26: #{lstm_model_forward.1} parent=20 // loop_footer
        %s31 = sadd.s32 1, %s27
      $region27: #{lstm_model_forward.1} parent=20 // loop_footer_branch
        %26 = sbr.rel target = $region23
      $region28: #{lstm_model_forward.1} parent=20 // loop_exit
        _
    $region21: #{lstm_model_forward.1} parent=12 // pred_fallthru
      _
    // Predicated region
    $region44: #{lstm_model_forward.1} parent=12 // pred_check
      _
    $region45: #{lstm_model_forward.1} parent=12 // pred_check_branch
      %59 = sbr.rel (0) target = $region47
    $region46: #{lstm_model_forward.1} parent=12 // pred_region
      %60 = vsyncadd [#allocation7], 256
    $region47: #{lstm_model_forward.1} parent=12 // pred_fallthru
      _
    %s61 = scalar_lea.sflag [#allocation7], 1
    %p63 = scmp.lt.u32.totalorder 32, 8
    %p64 = pneg %p63
    // Predicated region
    $region48: #{lstm_model_forward.1} parent=12 // pred_check
      _
    $region49: #{lstm_model_forward.1} parent=12 // pred_check_branch
      %66 = sbr.rel (%p63) target = $region51
    $region50: #{lstm_model_forward.1} parent=12 // pred_region
      %s81 = sand.u32 32, 7
      %p82 = scmp.eq.s32.totalorder %s81, 0
      // Predicated region
      $region63: #{lstm_model_forward.1} parent=50 // pred_check
        %p83 = pneg %p82
      $region64: #{lstm_model_forward.1} parent=50 // pred_check_branch
        %85 = sbr.rel (%p83) target = $region66
      $region65: #{lstm_model_forward.1} parent=50 // pred_region
        loop: start=0, step=1, limit=1
        $region67: #{lstm_model_forward.1} parent=65 // loop_pre_header
          _
        $region68: #{lstm_model_forward.1} parent=65 // loop_header
          %s87 = sphi 0, %s91
          %p88 = scmp.ge.s32.totalorder %s87, 1
          %s92 = sphi %s3, %s3
          %s93 = sphi [#allocation3], [#allocation3]
        $region69: #{lstm_model_forward.1} parent=65 // loop_header_branch
          %90 = sbr.rel (%p88) target = $region73
        $region70: #{lstm_model_forward.1} parent=65 // loop_body
          %v94 = vld [vmem:[%s92] sm:$0xff]
          %95 = vst [vmem:[%s93] sm:$0xff] %v94
          %v96 = vld [vmem:[%s92 + $0x8] sm:$0xff]
          %97 = vst [vmem:[%s93 + $0x8] sm:$0xff] %v96
          %v98 = vld [vmem:[%s92 + $0x10] sm:$0xff]
          %99 = vst [vmem:[%s93 + $0x10] sm:$0xff] %v98
          %v100 = vld [vmem:[%s92 + $0x18] sm:$0xff]
          %101 = vst [vmem:[%s93 + $0x18] sm:$0xff] %v100
        $region71: #{lstm_model_forward.1} parent=65 // loop_footer
          %s91 = sadd.s32 1, %s87
        $region72: #{lstm_model_forward.1} parent=65 // loop_footer_branch
          %86 = sbr.rel target = $region68
        $region73: #{lstm_model_forward.1} parent=65 // loop_exit
          _
      $region66: #{lstm_model_forward.1} parent=50 // pred_fallthru
        _
      %p102 = pneg %p82
      // Predicated region
      $region74: #{lstm_model_forward.1} parent=50 // pred_check
        _
      $region75: #{lstm_model_forward.1} parent=50 // pred_check_branch
        %104 = sbr.rel (%p82) target = $region77
      $region76: #{lstm_model_forward.1} parent=50 // pred_region
        %s105 = sand.u32 32, 7
      $region77: #{lstm_model_forward.1} parent=50 // pred_fallthru
        _
    $region51: #{lstm_model_forward.1} parent=12 // pred_fallthru
      _
    // Predicated region
    $region52: #{lstm_model_forward.1} parent=12 // pred_check
      %p67 = pneg %p63
    $region53: #{lstm_model_forward.1} parent=12 // pred_check_branch
      %69 = sbr.rel (%p67) target = $region55
    $region54: #{lstm_model_forward.1} parent=12 // pred_region
      %s70 = sshllo.u32 0, 32
      loop: start=0, step=1, limit=1
      $region56: #{lstm_model_forward.1} parent=54 // loop_pre_header
        _
      $region57: #{lstm_model_forward.1} parent=54 // loop_header
        %s72 = sphi 0, %s76
        %p73 = scmp.ge.s32.totalorder %s72, 1
        %s77 = sphi %s3, %s3
        %s78 = sphi [#allocation3], [#allocation3]
      $region58: #{lstm_model_forward.1} parent=54 // loop_header_branch
        %75 = sbr.rel (%p73) target = $region62
      $region59: #{lstm_model_forward.1} parent=54 // loop_body
        %v79 = vld [vmem:[%s77] sm:%s70]
        %80 = vst [vmem:[%s78] sm:%s70] %v79
      $region60: #{lstm_model_forward.1} parent=54 // loop_footer
        %s76 = sadd.s32 1, %s72
      $region61: #{lstm_model_forward.1} parent=54 // loop_footer_branch
        %71 = sbr.rel target = $region57
      $region62: #{lstm_model_forward.1} parent=54 // loop_exit
        _
    $region55: #{lstm_model_forward.1} parent=12 // pred_fallthru
      _
    // Predicated region
    $region78: #{lstm_model_forward.1} parent=12 // pred_check
      _
    $region79: #{lstm_model_forward.1} parent=12 // pred_check_branch
      %108 = sbr.rel (0) target = $region81
    $region80: #{lstm_model_forward.1} parent=12 // pred_region
      %109 = vsyncadd %s61, 512
    $region81: #{lstm_model_forward.1} parent=12 // pred_fallthru
      _
    %s110 = smul.u32 16, 1
    %s111 = sshll.u32 %s110, 4
    %112 = dma.done [#allocation7], %s111
    %s113 = smul.u32 32, 1
    %s114 = sshll.u32 %s113, 4
    %115 = dma.done %s61, %s114
    %vm116 = vcmask 261120
    %117 = vst.msk [vmem:[#allocation5] sm:$0xff] %vm116, 0.0
    %118 = vst.msk [vmem:[#allocation6] sm:$0xff] %vm116, 0.0
  $region13: #{lstm_model_forward.1} parent=0 // pred_fallthru
    _
  %v119 = vld [vmem:[%s0] sm:$0xff]
  %v120 = vld [vmem:[%s0 + $0x8] sm:$0xff]
  %v121 = vld [vmem:[%s0 + $0x10] sm:$0xff]
  %v122 = vld [vmem:[%s0 + $0x18] sm:$0xff]
  %v123 = vld [vmem:[%s0 + $0x20] sm:$0xff]
  %v124 = vld [vmem:[%s0 + $0x28] sm:$0xff]
  %v125 = vld [vmem:[%s0 + $0x30] sm:$0xff]
  %v126 = vld [vmem:[%s0 + $0x38] sm:$0xff]
  %v127 = vld [vmem:[#allocation2] sm:$0xff]
  %v128 = vld [vmem:[#allocation2 + $0x8] sm:$0xff]
  %v129 = vld [vmem:[%s1] sm:$0x1]
  %v131 = vlaneseq
  %v132 = vshrl.u32 %v131, 7
  %v133 = vsub.s32 0, %v132
  %v134 = vrot.slane %v129, %v133
  %vm136 = vcmask 130048
  %v138 = vsel %vm136, %v119, 0
  %v141 = vsel %vm136, %v120, 0
  %v144 = vsel %vm136, %v121, 0
  %v147 = vsel %vm136, %v122, 0
  %v150 = vsel %vm136, %v123, 0
  %v153 = vsel %vm136, %v124, 0
  %v156 = vsel %vm136, %v125, 0
  %v159 = vsel %vm136, %v126, 0
  %161 = vmatprep.subr.mxu0 0.0
  %v162 = vand.u32 %v127, 4294901760
  %163 = vmatpush1.msra.mxu0 %v162
  %164 = vmatprep.subr.mxu0 0.0
  %v165 = vand.u32 %v128, 4294901760
  %166 = vmatpush1.msra.mxu0 %v165
  %167 = vmatprep.subr.mxu0 0.0
  %168 = vmatpush1.msra.mxu0 0.0
  %169 = vmatprep.subr.mxu0 0.0
  %170 = vmatpush1.msra.mxu0 0.0
  %171 = vmatprep.subr.mxu0 0.0
  %172 = vmatpush1.msra.mxu0 0.0
  %173 = vmatprep.subr.mxu0 0.0
  %174 = vmatpush1.msra.mxu0 0.0
  %175 = vmatprep.subr.mxu0 0.0
  %176 = vmatpush1.msra.mxu0 0.0
  %177 = vmatprep.subr.mxu0 0.0
  %178 = vmatpush1.msra.mxu0 0.0
  %179 = vmatprep.subr.mxu0 0.0
  %180 = vmatpush1.msra.mxu0 0.0
  %181 = vmatprep.subr.mxu0 0.0
  %182 = vmatpush1.msra.mxu0 0.0
  %183 = vmatprep.subr.mxu0 0.0
  %184 = vmatpush1.msra.mxu0 0.0
  %185 = vmatprep.subr.mxu0 0.0
  %186 = vmatpush1.msra.mxu0 0.0
  %187 = vmatprep.subr.mxu0 0.0
  %188 = vmatpush1.msra.mxu0 0.0
  %189 = vmatprep.subr.mxu0 0.0
  %190 = vmatpush1.msra.mxu0 0.0
  %191 = vmatprep.subr.mxu0 0.0
  %192 = vmatpush1.msra.mxu0 0.0
  %193 = vmatprep.subr.mxu0 0.0
  %194 = vmatpush1.msra.mxu0 0.0
  %195 = vmatprep.subr.mxu0 0.0
  %196 = vmatpush1.msra.mxu0 0.0
  %197 = vmatprep.subr.mxu0 0.0
  %198 = vmatpush1.msra.mxu0 0.0
  %199 = vmatprep.subr.mxu0 0.0
  %200 = vmatpush1.msra.mxu0 0.0
  %201 = vmatprep.subr.mxu0 0.0
  %202 = vmatpush1.msra.mxu0 0.0
  %203 = vmatprep.subr.mxu0 0.0
  %204 = vmatpush1.msra.mxu0 0.0
  %205 = vmatprep.subr.mxu0 0.0
  %206 = vmatpush1.msra.mxu0 0.0
  %207 = vmatprep.subr.mxu0 0.0
  %208 = vmatpush1.msra.mxu0 0.0
  %209 = vmatprep.subr.mxu0 0.0
  %210 = vmatpush1.msra.mxu0 0.0
  %211 = vmatprep.subr.mxu0 0.0
  %212 = vmatpush1.msra.mxu0 0.0
  %213 = vmatprep.subr.mxu0 0.0
  %214 = vmatpush1.msra.mxu0 0.0
  %215 = vmatprep.subr.mxu0 0.0
  %216 = vmatpush1.msra.mxu0 0.0
  %217 = vmatprep.subr.mxu0 0.0
  %218 = vmatpush1.msra.mxu0 0.0
  %219 = vmatprep.subr.mxu0 0.0
  %220 = vmatpush1.msra.mxu0 0.0
  %221 = vmatprep.subr.mxu0 0.0
  %222 = vmatpush1.msra.mxu0 0.0
  %223 = vmatprep.subr.mxu0 0.0
  %224 = vmatpush1.msra.mxu0 0.0
  %225 = vmatprep.subr.mxu0 0.0
  %226 = vmatpush1.msra.mxu0 0.0
  %227 = vmatprep.mubr.f32.mxu0 0.0
  %v228 = vand.u32 %v138, 4294901760
  %v229 = vsub.f32 %v138, %v228
  %v230 = vand.u32 %v229, 4294901760
  %v231 = vsub.f32 %v229, %v230
  %v232 = vand.u32 %v231, 4294901760
  %233 = vmatmul.mubr.f32.gmra.mrb[0].mxu0 %v232
  %v234 = vpop.f32.mrb[0].mxu0
  %v235 = vadd.f32 %v134, %v234
  %v236 = vpop.f32.mrb[0].mxu0
  %237 = vmatprep.mubr.f32.mxu0 0.0
  %v238 = vand.u32 %v141, 4294901760
  %v239 = vsub.f32 %v141, %v238
  %v240 = vand.u32 %v239, 4294901760
  %v241 = vsub.f32 %v239, %v240
  %v242 = vand.u32 %v241, 4294901760
  %243 = vmatmul.mubr.f32.gmra.mrb[0].mxu0 %v242
  %v244 = vpop.f32.mrb[0].mxu0
  %v245 = vadd.f32 %v134, %v244
  %v246 = vpop.f32.mrb[0].mxu0
  %247 = vmatprep.mubr.f32.mxu0 0.0
  %v248 = vand.u32 %v144, 4294901760
  %v249 = vsub.f32 %v144, %v248
  %v250 = vand.u32 %v249, 4294901760
  %v251 = vsub.f32 %v249, %v250
  %v252 = vand.u32 %v251, 4294901760
  %253 = vmatmul.mubr.f32.gmra.mrb[0].mxu0 %v252
  %v254 = vpop.f32.mrb[0].mxu0
  %v255 = vadd.f32 %v134, %v254
  %v256 = vpop.f32.mrb[0].mxu0
  %257 = vmatprep.mubr.f32.mxu0 0.0
  %v258 = vand.u32 %v147, 4294901760
  %v259 = vsub.f32 %v147, %v258
  %v260 = vand.u32 %v259, 4294901760
  %v261 = vsub.f32 %v259, %v260
  %v262 = vand.u32 %v261, 4294901760
  %263 = vmatmul.mubr.f32.gmra.mrb[0].mxu0 %v262
  %v264 = vpop.f32.mrb[0].mxu0
  %v265 = vadd.f32 %v134, %v264
  %v266 = vpop.f32.mrb[0].mxu0
  %267 = vmatprep.mubr.f32.mxu0 0.0
  %v268 = vand.u32 %v150, 4294901760
  %v269 = vsub.f32 %v150, %v268
  %v270 = vand.u32 %v269, 4294901760
  %v271 = vsub.f32 %v269, %v270
  %v272 = vand.u32 %v271, 4294901760
  %273 = vmatmul.mubr.f32.gmra.mrb[0].mxu0 %v272
  %v274 = vpop.f32.mrb[0].mxu0
  %v275 = vadd.f32 %v134, %v274
  %v276 = vpop.f32.mrb[0].mxu0
  %277 = vmatprep.mubr.f32.mxu0 0.0
  %v278 = vand.u32 %v153, 4294901760
  %v279 = vsub.f32 %v153, %v278
  %v280 = vand.u32 %v279, 4294901760
  %v281 = vsub.f32 %v279, %v280
  %v282 = vand.u32 %v281, 4294901760
  %283 = vmatmul.mubr.f32.gmra.mrb[0].mxu0 %v282
  %v284 = vpop.f32.mrb[0].mxu0
  %v285 = vadd.f32 %v134, %v284
  %v286 = vpop.f32.mrb[0].mxu0
  %287 = vmatprep.mubr.f32.mxu0 0.0
  %v288 = vand.u32 %v156, 4294901760
  %v289 = vsub.f32 %v156, %v288
  %v290 = vand.u32 %v289, 4294901760
  %v291 = vsub.f32 %v289, %v290
  %v292 = vand.u32 %v291, 4294901760
  %293 = vmatmul.mubr.f32.gmra.mrb[0].mxu0 %v292
  %v294 = vpop.f32.mrb[0].mxu0
  %v295 = vadd.f32 %v134, %v294
  %v296 = vpop.f32.mrb[0].mxu0
  %297 = vmatprep.mubr.f32.mxu0 0.0
  %v298 = vand.u32 %v159, 4294901760
  %v299 = vsub.f32 %v159, %v298
  %v300 = vand.u32 %v299, 4294901760
  %v301 = vsub.f32 %v299, %v300
  %v302 = vand.u32 %v301, 4294901760
  %303 = vmatmul.mubr.f32.gmra.mrb[0].mxu0 %v302
  %v304 = vpop.f32.mrb[0].mxu0
  %v305 = vadd.f32 %v134, %v304
  %v306 = vpop.f32.mrb[0].mxu0
  %307 = vdwg.mxu0
  %308 = vmatprep.subr.mxu0 0.0
  %v309 = vand.u32 %v127, 4294901760
  %v310 = vsub.f32 %v127, %v309
  %v311 = vand.u32 %v310, 4294901760
  %v312 = vsub.f32 %v310, %v311
  %v313 = vand.u32 %v312, 4294901760
  %314 = vmatpush1.msra.mxu0 %v313
  %315 = vmatprep.subr.mxu0 0.0
  %v316 = vand.u32 %v128, 4294901760
  %v317 = vsub.f32 %v128, %v316
  %v318 = vand.u32 %v317, 4294901760
  %v319 = vsub.f32 %v317, %v318
  %v320 = vand.u32 %v319, 4294901760
  %321 = vmatpush1.msra.mxu0 %v320
  %322 = vmatprep.subr.mxu0 0.0
  %323 = vmatpush1.msra.mxu0 0.0
  %324 = vmatprep.subr.mxu0 0.0
  %325 = vmatpush1.msra.mxu0 0.0
  %326 = vmatprep.subr.mxu0 0.0
  %327 = vmatpush1.msra.mxu0 0.0
  %328 = vmatprep.subr.mxu0 0.0
  %329 = vmatpush1.msra.mxu0 0.0
  %330 = vmatprep.subr.mxu0 0.0
  %331 = vmatpush1.msra.mxu0 0.0
  %332 = vmatprep.subr.mxu0 0.0
  %333 = vmatpush1.msra.mxu0 0.0
  %334 = vmatprep.subr.mxu0 0.0
  %335 = vmatpush1.msra.mxu0 0.0
  %336 = vmatprep.subr.mxu0 0.0
  %337 = vmatpush1.msra.mxu0 0.0
  %338 = vmatprep.subr.mxu0 0.0
  %339 = vmatpush1.msra.mxu0 0.0
  %340 = vmatprep.subr.mxu0 0.0
  %341 = vmatpush1.msra.mxu0 0.0
  %342 = vmatprep.subr.mxu0 0.0
  %343 = vmatpush1.msra.mxu0 0.0
  %344 = vmatprep.subr.mxu0 0.0
  %345 = vmatpush1.msra.mxu0 0.0
  %346 = vmatprep.subr.mxu0 0.0
  %347 = vmatpush1.msra.mxu0 0.0
  %348 = vmatprep.subr.mxu0 0.0
  %349 = vmatpush1.msra.mxu0 0.0
  %350 = vmatprep.subr.mxu0 0.0
  %351 = vmatpush1.msra.mxu0 0.0
  %352 = vmatprep.subr.mxu0 0.0
  %353 = vmatpush1.msra.mxu0 0.0
  %354 = vmatprep.subr.mxu0 0.0
  %355 = vmatpush1.msra.mxu0 0.0
  %356 = vmatprep.subr.mxu0 0.0
  %357 = vmatpush1.msra.mxu0 0.0
  %358 = vmatprep.subr.mxu0 0.0
  %359 = vmatpush1.msra.mxu0 0.0
  %360 = vmatprep.subr.mxu0 0.0
  %361 = vmatpush1.msra.mxu0 0.0
  %362 = vmatprep.subr.mxu0 0.0
  %363 = vmatpush1.msra.mxu0 0.0
  %364 = vmatprep.subr.mxu0 0.0
  %365 = vmatpush1.msra.mxu0 0.0
  %366 = vmatprep.subr.mxu0 0.0
  %367 = vmatpush1.msra.mxu0 0.0
  %368 = vmatprep.subr.mxu0 0.0
  %369 = vmatpush1.msra.mxu0 0.0
  %370 = vmatprep.subr.mxu0 0.0
  %371 = vmatpush1.msra.mxu0 0.0
  %372 = vmatprep.subr.mxu0 0.0
  %373 = vmatpush1.msra.mxu0 0.0
  %374 = vmatprep.subr.mxu0 0.0
  %375 = vmatpush1.msra.mxu0 0.0
  %376 = vmatprep.subr.mxu0 0.0
  %377 = vmatpush1.msra.mxu0 0.0
  %378 = vmatprep.subr.mxu0 0.0
  %379 = vmatpush1.msra.mxu0 0.0
  %380 = vmatprep.subr.mxu0 0.0
  %381 = vmatpush1.msra.mxu0 0.0
  %382 = vmatprep.mubr.f32.mxu0 0.0
  %v383 = vand.u32 %v138, 4294901760
  %384 = vmatmul.mubr.f32.gmra.mrb[0].mxu0 %v383
  %v385 = vpop.f32.mrb[0].mxu0
  %v386 = vadd.f32 %v235, %v385
  %v387 = vpop.f32.mrb[0].mxu0
  %388 = vmatprep.mubr.f32.mxu0 0.0
  %v389 = vand.u32 %v141, 4294901760
  %390 = vmatmul.mubr.f32.gmra.mrb[0].mxu0 %v389
  %v391 = vpop.f32.mrb[0].mxu0
  %v392 = vadd.f32 %v245, %v391
  %v393 = vpop.f32.mrb[0].mxu0
  %394 = vmatprep.mubr.f32.mxu0 0.0
  %v395 = vand.u32 %v144, 4294901760
  %396 = vmatmul.mubr.f32.gmra.mrb[0].mxu0 %v395
  %v397 = vpop.f32.mrb[0].mxu0
  %v398 = vadd.f32 %v255, %v397
  %v399 = vpop.f32.mrb[0].mxu0
  %400 = vmatprep.mubr.f32.mxu0 0.0
  %v401 = vand.u32 %v147, 4294901760
  %402 = vmatmul.mubr.f32.gmra.mrb[0].mxu0 %v401
  %v403 = vpop.f32.mrb[0].mxu0
  %v404 = vadd.f32 %v265, %v403
  %v405 = vpop.f32.mrb[0].mxu0
  %406 = vmatprep.mubr.f32.mxu0 0.0
  %v407 = vand.u32 %v150, 4294901760
  %408 = vmatmul.mubr.f32.gmra.mrb[0].mxu0 %v407
  %v409 = vpop.f32.mrb[0].mxu0
  %v410 = vadd.f32 %v275, %v409
  %v411 = vpop.f32.mrb[0].mxu0
  %412 = vmatprep.mubr.f32.mxu0 0.0
  %v413 = vand.u32 %v153, 4294901760
  %414 = vmatmul.mubr.f32.gmra.mrb[0].mxu0 %v413
  %v415 = vpop.f32.mrb[0].mxu0
  %v416 = vadd.f32 %v285, %v415
  %v417 = vpop.f32.mrb[0].mxu0
  %418 = vmatprep.mubr.f32.mxu0 0.0
  %v419 = vand.u32 %v156, 4294901760
  %420 = vmatmul.mubr.f32.gmra.mrb[0].mxu0 %v419
  %v421 = vpop.f32.mrb[0].mxu0
  %v422 = vadd.f32 %v295, %v421
  %v423 = vpop.f32.mrb[0].mxu0
  %424 = vmatprep.mubr.f32.mxu0 0.0
  %v425 = vand.u32 %v159, 4294901760
  %426 = vmatmul.mubr.f32.gmra.mrb[0].mxu0 %v425
  %v427 = vpop.f32.mrb[0].mxu0
  %v428 = vadd.f32 %v305, %v427
  %v429 = vpop.f32.mrb[0].mxu0
  %430 = vdwg.mxu0
  %431 = vmatprep.subr.mxu0 0.0
  %v432 = vand.u32 %v127, 4294901760
  %v433 = vsub.f32 %v127, %v432
  %434 = vmatpush1.msra.mxu0 %v433
  %435 = vmatprep.subr.mxu0 0.0
  %v436 = vand.u32 %v128, 4294901760
  %v437 = vsub.f32 %v128, %v436
  %438 = vmatpush1.msra.mxu0 %v437
  %439 = vmatprep.subr.mxu0 0.0
  %440 = vmatpush1.msra.mxu0 0.0
  %441 = vmatprep.subr.mxu0 0.0
  %442 = vmatpush1.msra.mxu0 0.0
  %443 = vmatprep.subr.mxu0 0.0
  %444 = vmatpush1.msra.mxu0 0.0
  %445 = vmatprep.subr.mxu0 0.0
  %446 = vmatpush1.msra.mxu0 0.0
  %447 = vmatprep.subr.mxu0 0.0
  %448 = vmatpush1.msra.mxu0 0.0
  %449 = vmatprep.subr.mxu0 0.0
  %450 = vmatpush1.msra.mxu0 0.0
  %451 = vmatprep.subr.mxu0 0.0
  %452 = vmatpush1.msra.mxu0 0.0
  %453 = vmatprep.subr.mxu0 0.0
  %454 = vmatpush1.msra.mxu0 0.0
  %455 = vmatprep.subr.mxu0 0.0
  %456 = vmatpush1.msra.mxu0 0.0
  %457 = vmatprep.subr.mxu0 0.0
  %458 = vmatpush1.msra.mxu0 0.0
  %459 = vmatprep.subr.mxu0 0.0
  %460 = vmatpush1.msra.mxu0 0.0
  %461 = vmatprep.subr.mxu0 0.0
  %462 = vmatpush1.msra.mxu0 0.0
  %463 = vmatprep.subr.mxu0 0.0
  %464 = vmatpush1.msra.mxu0 0.0
  %465 = vmatprep.subr.mxu0 0.0
  %466 = vmatpush1.msra.mxu0 0.0
  %467 = vmatprep.subr.mxu0 0.0
  %468 = vmatpush1.msra.mxu0 0.0
  %469 = vmatprep.subr.mxu0 0.0
  %470 = vmatpush1.msra.mxu0 0.0
  %471 = vmatprep.subr.mxu0 0.0
  %472 = vmatpush1.msra.mxu0 0.0
  %473 = vmatprep.subr.mxu0 0.0
  %474 = vmatpush1.msra.mxu0 0.0
  %475 = vmatprep.subr.mxu0 0.0
  %476 = vmatpush1.msra.mxu0 0.0
  %477 = vmatprep.subr.mxu0 0.0
  %478 = vmatpush1.msra.mxu0 0.0
  %479 = vmatprep.subr.mxu0 0.0
  %480 = vmatpush1.msra.mxu0 0.0
  %481 = vmatprep.subr.mxu0 0.0
  %482 = vmatpush1.msra.mxu0 0.0
  %483 = vmatprep.subr.mxu0 0.0
  %484 = vmatpush1.msra.mxu0 0.0
  %485 = vmatprep.subr.mxu0 0.0
  %486 = vmatpush1.msra.mxu0 0.0
  %487 = vmatprep.subr.mxu0 0.0
  %488 = vmatpush1.msra.mxu0 0.0
  %489 = vmatprep.subr.mxu0 0.0
  %490 = vmatpush1.msra.mxu0 0.0
  %491 = vmatprep.subr.mxu0 0.0
  %492 = vmatpush1.msra.mxu0 0.0
  %493 = vmatprep.subr.mxu0 0.0
  %494 = vmatpush1.msra.mxu0 0.0
  %495 = vmatprep.subr.mxu0 0.0
  %496 = vmatpush1.msra.mxu0 0.0
  %497 = vmatprep.subr.mxu0 0.0
  %498 = vmatpush1.msra.mxu0 0.0
  %499 = vmatprep.mubr.f32.mxu0 0.0
  %v500 = vand.u32 %v138, 4294901760
  %v501 = vsub.f32 %v138, %v500
  %502 = vmatmul.mubr.f32.gmra.mrb[0].mxu0 %v501
  %v503 = vpop.f32.mrb[0].mxu0
  %v504 = vadd.f32 %v386, %v503
  %v505 = vpop.f32.mrb[0].mxu0
  %506 = vmatprep.mubr.f32.mxu0 0.0
  %v507 = vand.u32 %v141, 4294901760
  %v508 = vsub.f32 %v141, %v507
  %509 = vmatmul.mubr.f32.gmra.mrb[0].mxu0 %v508
  %v510 = vpop.f32.mrb[0].mxu0
  %v511 = vadd.f32 %v392, %v510
  %v512 = vpop.f32.mrb[0].mxu0
  %513 = vmatprep.mubr.f32.mxu0 0.0
  %v514 = vand.u32 %v144, 4294901760
  %v515 = vsub.f32 %v144, %v514
  %516 = vmatmul.mubr.f32.gmra.mrb[0].mxu0 %v515
  %v517 = vpop.f32.mrb[0].mxu0
  %v518 = vadd.f32 %v398, %v517
  %v519 = vpop.f32.mrb[0].mxu0
  %520 = vmatprep.mubr.f32.mxu0 0.0
  %v521 = vand.u32 %v147, 4294901760
  %v522 = vsub.f32 %v147, %v521
  %523 = vmatmul.mubr.f32.gmra.mrb[0].mxu0 %v522
  %v524 = vpop.f32.mrb[0].mxu0
  %v525 = vadd.f32 %v404, %v524
  %v526 = vpop.f32.mrb[0].mxu0
  %527 = vmatprep.mubr.f32.mxu0 0.0
  %v528 = vand.u32 %v150, 4294901760
  %v529 = vsub.f32 %v150, %v528
  %530 = vmatmul.mubr.f32.gmra.mrb[0].mxu0 %v529
  %v531 = vpop.f32.mrb[0].mxu0
  %v532 = vadd.f32 %v410, %v531
  %v533 = vpop.f32.mrb[0].mxu0
  %534 = vmatprep.mubr.f32.mxu0 0.0
  %v535 = vand.u32 %v153, 4294901760
  %v536 = vsub.f32 %v153, %v535
  %537 = vmatmul.mubr.f32.gmra.mrb[0].mxu0 %v536
  %v538 = vpop.f32.mrb[0].mxu0
  %v539 = vadd.f32 %v416, %v538
  %v540 = vpop.f32.mrb[0].mxu0
  %541 = vmatprep.mubr.f32.mxu0 0.0
  %v542 = vand.u32 %v156, 4294901760
  %v543 = vsub.f32 %v156, %v542
  %544 = vmatmul.mubr.f32.gmra.mrb[0].mxu0 %v543
  %v545 = vpop.f32.mrb[0].mxu0
  %v546 = vadd.f32 %v422, %v545
  %v547 = vpop.f32.mrb[0].mxu0
  %548 = vmatprep.mubr.f32.mxu0 0.0
  %v549 = vand.u32 %v159, 4294901760
  %v550 = vsub.f32 %v159, %v549
  %551 = vmatmul.mubr.f32.gmra.mrb[0].mxu0 %v550
  %v552 = vpop.f32.mrb[0].mxu0
  %v553 = vadd.f32 %v428, %v552
  %v554 = vpop.f32.mrb[0].mxu0
  %555 = vdwg.mxu0
  %556 = vmatprep.subr.mxu0 0.0
  %v557 = vand.u32 %v127, 4294901760
  %558 = vmatpush1.msra.mxu0 %v557
  %559 = vmatprep.subr.mxu0 0.0
  %v560 = vand.u32 %v128, 4294901760
  %561 = vmatpush1.msra.mxu0 %v560
  %562 = vmatprep.subr.mxu0 0.0
  %563 = vmatpush1.msra.mxu0 0.0
  %564 = vmatprep.subr.mxu0 0.0
  %565 = vmatpush1.msra.mxu0 0.0
  %566 = vmatprep.subr.mxu0 0.0
  %567 = vmatpush1.msra.mxu0 0.0
  %568 = vmatprep.subr.mxu0 0.0
  %569 = vmatpush1.msra.mxu0 0.0
  %570 = vmatprep.subr.mxu0 0.0
  %571 = vmatpush1.msra.mxu0 0.0
  %572 = vmatprep.subr.mxu0 0.0
  %573 = vmatpush1.msra.mxu0 0.0
  %574 = vmatprep.subr.mxu0 0.0
  %575 = vmatpush1.msra.mxu0 0.0
  %576 = vmatprep.subr.mxu0 0.0
  %577 = vmatpush1.msra.mxu0 0.0
  %578 = vmatprep.subr.mxu0 0.0
  %579 = vmatpush1.msra.mxu0 0.0
  %580 = vmatprep.subr.mxu0 0.0
  %581 = vmatpush1.msra.mxu0 0.0
  %582 = vmatprep.subr.mxu0 0.0
  %583 = vmatpush1.msra.mxu0 0.0
  %584 = vmatprep.subr.mxu0 0.0
  %585 = vmatpush1.msra.mxu0 0.0
  %586 = vmatprep.subr.mxu0 0.0
  %587 = vmatpush1.msra.mxu0 0.0
  %588 = vmatprep.subr.mxu0 0.0
  %589 = vmatpush1.msra.mxu0 0.0
  %590 = vmatprep.subr.mxu0 0.0
  %591 = vmatpush1.msra.mxu0 0.0
  %592 = vmatprep.subr.mxu0 0.0
  %593 = vmatpush1.msra.mxu0 0.0
  %594 = vmatprep.subr.mxu0 0.0
  %595 = vmatpush1.msra.mxu0 0.0
  %596 = vmatprep.subr.mxu0 0.0
  %597 = vmatpush1.msra.mxu0 0.0
  %598 = vmatprep.subr.mxu0 0.0
  %599 = vmatpush1.msra.mxu0 0.0
  %600 = vmatprep.subr.mxu0 0.0
  %601 = vmatpush1.msra.mxu0 0.0
  %602 = vmatprep.subr.mxu0 0.0
  %603 = vmatpush1.msra.mxu0 0.0
  %604 = vmatprep.subr.mxu0 0.0
  %605 = vmatpush1.msra.mxu0 0.0
  %606 = vmatprep.subr.mxu0 0.0
  %607 = vmatpush1.msra.mxu0 0.0
  %608 = vmatprep.subr.mxu0 0.0
  %609 = vmatpush1.msra.mxu0 0.0
  %610 = vmatprep.subr.mxu0 0.0
  %611 = vmatpush1.msra.mxu0 0.0
  %612 = vmatprep.subr.mxu0 0.0
  %613 = vmatpush1.msra.mxu0 0.0
  %614 = vmatprep.subr.mxu0 0.0
  %615 = vmatpush1.msra.mxu0 0.0
  %616 = vmatprep.subr.mxu0 0.0
  %617 = vmatpush1.msra.mxu0 0.0
  %618 = vmatprep.subr.mxu0 0.0
  %619 = vmatpush1.msra.mxu0 0.0
  %620 = vmatprep.subr.mxu0 0.0
  %621 = vmatpush1.msra.mxu0 0.0
  %622 = vmatprep.mubr.f32.mxu0 0.0
  %v623 = vand.u32 %v138, 4294901760
  %v624 = vsub.f32 %v138, %v623
  %v625 = vand.u32 %v624, 4294901760
  %626 = vmatmul.mubr.f32.gmra.mrb[0].mxu0 %v625
  %v627 = vpop.f32.mrb[0].mxu0
  %v628 = vadd.f32 %v504, %v627
  %v629 = vpop.f32.mrb[0].mxu0
  %630 = vmatprep.mubr.f32.mxu0 0.0
  %v631 = vand.u32 %v141, 4294901760
  %v632 = vsub.f32 %v141, %v631
  %v633 = vand.u32 %v632, 4294901760
  %634 = vmatmul.mubr.f32.gmra.mrb[0].mxu0 %v633
  %v635 = vpop.f32.mrb[0].mxu0
  %v636 = vadd.f32 %v511, %v635
  %v637 = vpop.f32.mrb[0].mxu0
  %638 = vmatprep.mubr.f32.mxu0 0.0
  %v639 = vand.u32 %v144, 4294901760
  %v640 = vsub.f32 %v144, %v639
  %v641 = vand.u32 %v640, 4294901760
  %642 = vmatmul.mubr.f32.gmra.mrb[0].mxu0 %v641
  %v643 = vpop.f32.mrb[0].mxu0
  %v644 = vadd.f32 %v518, %v643
  %v645 = vpop.f32.mrb[0].mxu0
  %646 = vmatprep.mubr.f32.mxu0 0.0
  %v647 = vand.u32 %v147, 4294901760
  %v648 = vsub.f32 %v147, %v647
  %v649 = vand.u32 %v648, 4294901760
  %650 = vmatmul.mubr.f32.gmra.mrb[0].mxu0 %v649
  %v651 = vpop.f32.mrb[0].mxu0
  %v652 = vadd.f32 %v525, %v651
  %v653 = vpop.f32.mrb[0].mxu0
  %654 = vmatprep.mubr.f32.mxu0 0.0
  %v655 = vand.u32 %v150, 4294901760
  %v656 = vsub.f32 %v150, %v655
  %v657 = vand.u32 %v656, 4294901760
  %658 = vmatmul.mubr.f32.gmra.mrb[0].mxu0 %v657
  %v659 = vpop.f32.mrb[0].mxu0
  %v660 = vadd.f32 %v532, %v659
  %v661 = vpop.f32.mrb[0].mxu0
  %662 = vmatprep.mubr.f32.mxu0 0.0
  %v663 = vand.u32 %v153, 4294901760
  %v664 = vsub.f32 %v153, %v663
  %v665 = vand.u32 %v664, 4294901760
  %666 = vmatmul.mubr.f32.gmra.mrb[0].mxu0 %v665
  %v667 = vpop.f32.mrb[0].mxu0
  %v668 = vadd.f32 %v539, %v667
  %v669 = vpop.f32.mrb[0].mxu0
  %670 = vmatprep.mubr.f32.mxu0 0.0
  %v671 = vand.u32 %v156, 4294901760
  %v672 = vsub.f32 %v156, %v671
  %v673 = vand.u32 %v672, 4294901760
  %674 = vmatmul.mubr.f32.gmra.mrb[0].mxu0 %v673
  %v675 = vpop.f32.mrb[0].mxu0
  %v676 = vadd.f32 %v546, %v675
  %v677 = vpop.f32.mrb[0].mxu0
  %678 = vmatprep.mubr.f32.mxu0 0.0
  %v679 = vand.u32 %v159, 4294901760
  %v680 = vsub.f32 %v159, %v679
  %v681 = vand.u32 %v680, 4294901760
  %682 = vmatmul.mubr.f32.gmra.mrb[0].mxu0 %v681
  %v683 = vpop.f32.mrb[0].mxu0
  %v684 = vadd.f32 %v553, %v683
  %v685 = vpop.f32.mrb[0].mxu0
  %686 = vdwg.mxu0
  %687 = vmatprep.subr.mxu0 0.0
  %v688 = vand.u32 %v127, 4294901760
  %v689 = vsub.f32 %v127, %v688
  %v690 = vand.u32 %v689, 4294901760
  %691 = vmatpush1.msra.mxu0 %v690
  %692 = vmatprep.subr.mxu0 0.0
  %v693 = vand.u32 %v128, 4294901760
  %v694 = vsub.f32 %v128, %v693
  %v695 = vand.u32 %v694, 4294901760
  %696 = vmatpush1.msra.mxu0 %v695
  %697 = vmatprep.subr.mxu0 0.0
  %698 = vmatpush1.msra.mxu0 0.0
  %699 = vmatprep.subr.mxu0 0.0
  %700 = vmatpush1.msra.mxu0 0.0
  %701 = vmatprep.subr.mxu0 0.0
  %702 = vmatpush1.msra.mxu0 0.0
  %703 = vmatprep.subr.mxu0 0.0
  %704 = vmatpush1.msra.mxu0 0.0
  %705 = vmatprep.subr.mxu0 0.0
  %706 = vmatpush1.msra.mxu0 0.0
  %707 = vmatprep.subr.mxu0 0.0
  %708 = vmatpush1.msra.mxu0 0.0
  %709 = vmatprep.subr.mxu0 0.0
  %710 = vmatpush1.msra.mxu0 0.0
  %711 = vmatprep.subr.mxu0 0.0
  %712 = vmatpush1.msra.mxu0 0.0
  %713 = vmatprep.subr.mxu0 0.0
  %714 = vmatpush1.msra.mxu0 0.0
  %715 = vmatprep.subr.mxu0 0.0
  %716 = vmatpush1.msra.mxu0 0.0
  %717 = vmatprep.subr.mxu0 0.0
  %718 = vmatpush1.msra.mxu0 0.0
  %719 = vmatprep.subr.mxu0 0.0
  %720 = vmatpush1.msra.mxu0 0.0
  %721 = vmatprep.subr.mxu0 0.0
  %722 = vmatpush1.msra.mxu0 0.0
  %723 = vmatprep.subr.mxu0 0.0
  %724 = vmatpush1.msra.mxu0 0.0
  %725 = vmatprep.subr.mxu0 0.0
  %726 = vmatpush1.msra.mxu0 0.0
  %727 = vmatprep.subr.mxu0 0.0
  %728 = vmatpush1.msra.mxu0 0.0
  %729 = vmatprep.subr.mxu0 0.0
  %730 = vmatpush1.msra.mxu0 0.0
  %731 = vmatprep.subr.mxu0 0.0
  %732 = vmatpush1.msra.mxu0 0.0
  %733 = vmatprep.subr.mxu0 0.0
  %734 = vmatpush1.msra.mxu0 0.0
  %735 = vmatprep.subr.mxu0 0.0
  %736 = vmatpush1.msra.mxu0 0.0
  %737 = vmatprep.subr.mxu0 0.0
  %738 = vmatpush1.msra.mxu0 0.0
  %739 = vmatprep.subr.mxu0 0.0
  %740 = vmatpush1.msra.mxu0 0.0
  %741 = vmatprep.subr.mxu0 0.0
  %742 = vmatpush1.msra.mxu0 0.0
  %743 = vmatprep.subr.mxu0 0.0
  %744 = vmatpush1.msra.mxu0 0.0
  %745 = vmatprep.subr.mxu0 0.0
  %746 = vmatpush1.msra.mxu0 0.0
  %747 = vmatprep.subr.mxu0 0.0
  %748 = vmatpush1.msra.mxu0 0.0
  %749 = vmatprep.subr.mxu0 0.0
  %750 = vmatpush1.msra.mxu0 0.0
  %751 = vmatprep.subr.mxu0 0.0
  %752 = vmatpush1.msra.mxu0 0.0
  %753 = vmatprep.subr.mxu0 0.0
  %754 = vmatpush1.msra.mxu0 0.0
  %755 = vmatprep.subr.mxu0 0.0
  %756 = vmatpush1.msra.mxu0 0.0
  %757 = vmatprep.mubr.f32.mxu0 0.0
  %v758 = vand.u32 %v138, 4294901760
  %759 = vmatmul.mubr.f32.gmra.mrb[0].mxu0 %v758
  %v760 = vpop.f32.mrb[0].mxu0
  %v761 = vadd.f32 %v628, %v760
  %v762 = vpop.f32.mrb[0].mxu0
  %763 = vmatprep.mubr.f32.mxu0 0.0
  %v764 = vand.u32 %v141, 4294901760
  %765 = vmatmul.mubr.f32.gmra.mrb[0].mxu0 %v764
  %v766 = vpop.f32.mrb[0].mxu0
  %v767 = vadd.f32 %v636, %v766
  %v768 = vpop.f32.mrb[0].mxu0
  %769 = vmatprep.mubr.f32.mxu0 0.0
  %v770 = vand.u32 %v144, 4294901760
  %771 = vmatmul.mubr.f32.gmra.mrb[0].mxu0 %v770
  %v772 = vpop.f32.mrb[0].mxu0
  %v773 = vadd.f32 %v644, %v772
  %v774 = vpop.f32.mrb[0].mxu0
  %775 = vmatprep.mubr.f32.mxu0 0.0
  %v776 = vand.u32 %v147, 4294901760
  %777 = vmatmul.mubr.f32.gmra.mrb[0].mxu0 %v776
  %v778 = vpop.f32.mrb[0].mxu0
  %v779 = vadd.f32 %v652, %v778
  %v780 = vpop.f32.mrb[0].mxu0
  %781 = vmatprep.mubr.f32.mxu0 0.0
  %v782 = vand.u32 %v150, 4294901760
  %783 = vmatmul.mubr.f32.gmra.mrb[0].mxu0 %v782
  %v784 = vpop.f32.mrb[0].mxu0
  %v785 = vadd.f32 %v660, %v784
  %v786 = vpop.f32.mrb[0].mxu0
  %787 = vmatprep.mubr.f32.mxu0 0.0
  %v788 = vand.u32 %v153, 4294901760
  %789 = vmatmul.mubr.f32.gmra.mrb[0].mxu0 %v788
  %v790 = vpop.f32.mrb[0].mxu0
  %v791 = vadd.f32 %v668, %v790
  %v792 = vpop.f32.mrb[0].mxu0
  %793 = vmatprep.mubr.f32.mxu0 0.0
  %v794 = vand.u32 %v156, 4294901760
  %795 = vmatmul.mubr.f32.gmra.mrb[0].mxu0 %v794
  %v796 = vpop.f32.mrb[0].mxu0
  %v797 = vadd.f32 %v676, %v796
  %v798 = vpop.f32.mrb[0].mxu0
  %799 = vmatprep.mubr.f32.mxu0 0.0
  %v800 = vand.u32 %v159, 4294901760
  %801 = vmatmul.mubr.f32.gmra.mrb[0].mxu0 %v800
  %v802 = vpop.f32.mrb[0].mxu0
  %v803 = vadd.f32 %v684, %v802
  %v804 = vpop.f32.mrb[0].mxu0
  %805 = vdwg.mxu0
  %806 = vmatprep.subr.mxu0 0.0
  %v807 = vand.u32 %v127, 4294901760
  %808 = vmatpush1.msra.mxu0 %v807
  %809 = vmatprep.subr.mxu0 0.0
  %v810 = vand.u32 %v128, 4294901760
  %811 = vmatpush1.msra.mxu0 %v810
  %812 = vmatprep.subr.mxu0 0.0
  %813 = vmatpush1.msra.mxu0 0.0
  %814 = vmatprep.subr.mxu0 0.0
  %815 = vmatpush1.msra.mxu0 0.0
  %816 = vmatprep.subr.mxu0 0.0
  %817 = vmatpush1.msra.mxu0 0.0
  %818 = vmatprep.subr.mxu0 0.0
  %819 = vmatpush1.msra.mxu0 0.0
  %820 = vmatprep.subr.mxu0 0.0
  %821 = vmatpush1.msra.mxu0 0.0
  %822 = vmatprep.subr.mxu0 0.0
  %823 = vmatpush1.msra.mxu0 0.0
  %824 = vmatprep.subr.mxu0 0.0
  %825 = vmatpush1.msra.mxu0 0.0
  %826 = vmatprep.subr.mxu0 0.0
  %827 = vmatpush1.msra.mxu0 0.0
  %828 = vmatprep.subr.mxu0 0.0
  %829 = vmatpush1.msra.mxu0 0.0
  %830 = vmatprep.subr.mxu0 0.0
  %831 = vmatpush1.msra.mxu0 0.0
  %832 = vmatprep.subr.mxu0 0.0
  %833 = vmatpush1.msra.mxu0 0.0
  %834 = vmatprep.subr.mxu0 0.0
  %835 = vmatpush1.msra.mxu0 0.0
  %836 = vmatprep.subr.mxu0 0.0
  %837 = vmatpush1.msra.mxu0 0.0
  %838 = vmatprep.subr.mxu0 0.0
  %839 = vmatpush1.msra.mxu0 0.0
  %840 = vmatprep.subr.mxu0 0.0
  %841 = vmatpush1.msra.mxu0 0.0
  %842 = vmatprep.subr.mxu0 0.0
  %843 = vmatpush1.msra.mxu0 0.0
  %844 = vmatprep.subr.mxu0 0.0
  %845 = vmatpush1.msra.mxu0 0.0
  %846 = vmatprep.subr.mxu0 0.0
  %847 = vmatpush1.msra.mxu0 0.0
  %848 = vmatprep.subr.mxu0 0.0
  %849 = vmatpush1.msra.mxu0 0.0
  %850 = vmatprep.subr.mxu0 0.0
  %851 = vmatpush1.msra.mxu0 0.0
  %852 = vmatprep.subr.mxu0 0.0
  %853 = vmatpush1.msra.mxu0 0.0
  %854 = vmatprep.subr.mxu0 0.0
  %855 = vmatpush1.msra.mxu0 0.0
  %856 = vmatprep.subr.mxu0 0.0
  %857 = vmatpush1.msra.mxu0 0.0
  %858 = vmatprep.subr.mxu0 0.0
  %859 = vmatpush1.msra.mxu0 0.0
  %860 = vmatprep.subr.mxu0 0.0
  %861 = vmatpush1.msra.mxu0 0.0
  %862 = vmatprep.subr.mxu0 0.0
  %863 = vmatpush1.msra.mxu0 0.0
  %864 = vmatprep.subr.mxu0 0.0
  %865 = vmatpush1.msra.mxu0 0.0
  %866 = vmatprep.subr.mxu0 0.0
  %867 = vmatpush1.msra.mxu0 0.0
  %868 = vmatprep.subr.mxu0 0.0
  %869 = vmatpush1.msra.mxu0 0.0
  %870 = vmatprep.subr.mxu0 0.0
  %871 = vmatpush1.msra.mxu0 0.0
  %872 = vmatprep.mubr.f32.mxu0 0.0
  %v873 = vand.u32 %v138, 4294901760
  %874 = vmatmul.mubr.f32.gmra.mrb[0].mxu0 %v873
  %v875 = vpop.f32.mrb[0].mxu0
  %v876 = vadd.f32 %v761, %v875
  %v877 = vpop.f32.mrb[0].mxu0
  %878 = vmatprep.mubr.f32.mxu0 0.0
  %v879 = vand.u32 %v141, 4294901760
  %880 = vmatmul.mubr.f32.gmra.mrb[0].mxu0 %v879
  %v881 = vpop.f32.mrb[0].mxu0
  %v882 = vadd.f32 %v767, %v881
  %v883 = vpop.f32.mrb[0].mxu0
  %884 = vmatprep.mubr.f32.mxu0 0.0
  %v885 = vand.u32 %v144, 4294901760
  %886 = vmatmul.mubr.f32.gmra.mrb[0].mxu0 %v885
  %v887 = vpop.f32.mrb[0].mxu0
  %v888 = vadd.f32 %v773, %v887
  %v889 = vpop.f32.mrb[0].mxu0
  %890 = vmatprep.mubr.f32.mxu0 0.0
  %v891 = vand.u32 %v147, 4294901760
  %892 = vmatmul.mubr.f32.gmra.mrb[0].mxu0 %v891
  %v893 = vpop.f32.mrb[0].mxu0
  %v894 = vadd.f32 %v779, %v893
  %v895 = vpop.f32.mrb[0].mxu0
  %896 = vmatprep.mubr.f32.mxu0 0.0
  %v897 = vand.u32 %v150, 4294901760
  %898 = vmatmul.mubr.f32.gmra.mrb[0].mxu0 %v897
  %v899 = vpop.f32.mrb[0].mxu0
  %v900 = vadd.f32 %v785, %v899
  %v901 = vpop.f32.mrb[0].mxu0
  %902 = vmatprep.mubr.f32.mxu0 0.0
  %v903 = vand.u32 %v153, 4294901760
  %904 = vmatmul.mubr.f32.gmra.mrb[0].mxu0 %v903
  %v905 = vpop.f32.mrb[0].mxu0
  %v906 = vadd.f32 %v791, %v905
  %v907 = vpop.f32.mrb[0].mxu0
  %908 = vmatprep.mubr.f32.mxu0 0.0
  %v909 = vand.u32 %v156, 4294901760
  %910 = vmatmul.mubr.f32.gmra.mrb[0].mxu0 %v909
  %v911 = vpop.f32.mrb[0].mxu0
  %v912 = vadd.f32 %v797, %v911
  %v913 = vpop.f32.mrb[0].mxu0
  %914 = vmatprep.mubr.f32.mxu0 0.0
  %v915 = vand.u32 %v159, 4294901760
  %916 = vmatmul.mubr.f32.gmra.mrb[0].mxu0 %v915
  %v917 = vpop.f32.mrb[0].mxu0
  %v918 = vadd.f32 %v803, %v917
  %v919 = vpop.f32.mrb[0].mxu0
  %920 = vdwg.mxu0
  %921 = vst [vmem:[#allocation4] sm:$0xff] %v876
  %922 = vst [vmem:[#allocation4 + $0x8] sm:$0xff] %v882
  %923 = vst [vmem:[#allocation4 + $0x10] sm:$0xff] %v888
  %924 = vst [vmem:[#allocation4 + $0x18] sm:$0xff] %v894
  %925 = vst [vmem:[#allocation4 + $0x20] sm:$0xff] %v900
  %926 = vst [vmem:[#allocation4 + $0x28] sm:$0xff] %v906
  %927 = vst [vmem:[#allocation4 + $0x30] sm:$0xff] %v912
  %928 = vst [vmem:[#allocation4 + $0x38] sm:$0xff] %v918
  %v929 = vld [vmem:[#allocation3] sm:$0xff]
  %v930 = vld [vmem:[#allocation3 + $0x8] sm:$0xff]
  %v931 = vld [vmem:[#allocation3 + $0x10] sm:$0xff]
  %v932 = vld [vmem:[#allocation3 + $0x18] sm:$0xff]
  %v933 = vld [vmem:[#allocation5] sm:$0xff]
  %v934 = vld [vmem:[#allocation6] sm:$0xff]
  %v935 = vld [vmem:[#allocation4] sm:$0xff]
  %vm936 = vcmask 261120
  %v938 = vsel %vm936, %v933, 0
  %940 = vmatprep.subr.mxu0 0.0
  %v941 = vand.u32 %v929, 4294901760
  %942 = vmatpush1.msra.mxu0 %v941
  %943 = vmatprep.subr.mxu0 0.0
  %v944 = vand.u32 %v930, 4294901760
  %945 = vmatpush1.msra.mxu0 %v944
  %946 = vmatprep.subr.mxu0 0.0
  %v947 = vand.u32 %v931, 4294901760
  %948 = vmatpush1.msra.mxu0 %v947
  %949 = vmatprep.subr.mxu0 0.0
  %v950 = vand.u32 %v932, 4294901760
  %951 = vmatpush1.msra.mxu0 %v950
  %952 = vmatprep.subr.mxu0 0.0
  %953 = vmatpush1.msra.mxu0 0.0
  %954 = vmatprep.subr.mxu0 0.0
  %955 = vmatpush1.msra.mxu0 0.0
  %956 = vmatprep.subr.mxu0 0.0
  %957 = vmatpush1.msra.mxu0 0.0
  %958 = vmatprep.subr.mxu0 0.0
  %959 = vmatpush1.msra.mxu0 0.0
  %960 = vmatprep.subr.mxu0 0.0
  %961 = vmatpush1.msra.mxu0 0.0
  %962 = vmatprep.subr.mxu0 0.0
  %963 = vmatpush1.msra.mxu0 0.0
  %964 = vmatprep.subr.mxu0 0.0
  %965 = vmatpush1.msra.mxu0 0.0
  %966 = vmatprep.subr.mxu0 0.0
  %967 = vmatpush1.msra.mxu0 0.0
  %968 = vmatprep.subr.mxu0 0.0
  %969 = vmatpush1.msra.mxu0 0.0
  %970 = vmatprep.subr.mxu0 0.0
  %971 = vmatpush1.msra.mxu0 0.0
  %972 = vmatprep.subr.mxu0 0.0
  %973 = vmatpush1.msra.mxu0 0.0
  %974 = vmatprep.subr.mxu0 0.0
  %975 = vmatpush1.msra.mxu0 0.0
  %976 = vmatprep.subr.mxu0 0.0
  %977 = vmatpush1.msra.mxu0 0.0
  %978 = vmatprep.subr.mxu0 0.0
  %979 = vmatpush1.msra.mxu0 0.0
  %980 = vmatprep.subr.mxu0 0.0
  %981 = vmatpush1.msra.mxu0 0.0
  %982 = vmatprep.subr.mxu0 0.0
  %983 = vmatpush1.msra.mxu0 0.0
  %984 = vmatprep.subr.mxu0 0.0
  %985 = vmatpush1.msra.mxu0 0.0
  %986 = vmatprep.subr.mxu0 0.0
  %987 = vmatpush1.msra.mxu0 0.0
  %988 = vmatprep.subr.mxu0 0.0
  %989 = vmatpush1.msra.mxu0 0.0
  %990 = vmatprep.subr.mxu0 0.0
  %991 = vmatpush1.msra.mxu0 0.0
  %992 = vmatprep.subr.mxu0 0.0
  %993 = vmatpush1.msra.mxu0 0.0
  %994 = vmatprep.subr.mxu0 0.0
  %995 = vmatpush1.msra.mxu0 0.0
  %996 = vmatprep.subr.mxu0 0.0
  %997 = vmatpush1.msra.mxu0 0.0
  %998 = vmatprep.subr.mxu0 0.0
  %999 = vmatpush1.msra.mxu0 0.0
  %1000 = vmatprep.subr.mxu0 0.0
  %1001 = vmatpush1.msra.mxu0 0.0
  %1002 = vmatprep.subr.mxu0 0.0
  %1003 = vmatpush1.msra.mxu0 0.0
  %1004 = vmatprep.subr.mxu0 0.0
  %1005 = vmatpush1.msra.mxu0 0.0
  %1006 = vmatprep.subr.mxu0 0.0
  %1007 = vmatpush1.msra.mxu0 0.0
  %1008 = vmatprep.mubr.f32.mxu0 0.0
  %v1009 = vand.u32 %v938, 4294901760
  %v1010 = vsub.f32 %v938, %v1009
  %v1011 = vand.u32 %v1010, 4294901760
  %v1012 = vsub.f32 %v1010, %v1011
  %v1013 = vand.u32 %v1012, 4294901760
  %1014 = vmatmul.mubr.f32.gmra.mrb[0].mxu0 %v1013
  %v1015 = vpop.f32.mrb[0].mxu0
  %v1016 = vadd.f32 0.0, %v1015
  %v1017 = vpop.f32.mrb[0].mxu0
  %1018 = vdwg.mxu0
  %1019 = vmatprep.subr.mxu0 0.0
  %v1020 = vand.u32 %v929, 4294901760
  %v1021 = vsub.f32 %v929, %v1020
  %v1022 = vand.u32 %v1021, 4294901760
  %v1023 = vsub.f32 %v1021, %v1022
  %v1024 = vand.u32 %v1023, 4294901760
  %1025 = vmatpush1.msra.mxu0 %v1024
  %1026 = vmatprep.subr.mxu0 0.0
  %v1027 = vand.u32 %v930, 4294901760
  %v1028 = vsub.f32 %v930, %v1027
  %v1029 = vand.u32 %v1028, 4294901760
  %v1030 = vsub.f32 %v1028, %v1029
  %v1031 = vand.u32 %v1030, 4294901760
  %1032 = vmatpush1.msra.mxu0 %v1031
  %1033 = vmatprep.subr.mxu0 0.0
  %v1034 = vand.u32 %v931, 4294901760
  %v1035 = vsub.f32 %v931, %v1034
  %v1036 = vand.u32 %v1035, 4294901760
  %v1037 = vsub.f32 %v1035, %v1036
  %v1038 = vand.u32 %v1037, 4294901760
  %1039 = vmatpush1.msra.mxu0 %v1038
  %1040 = vmatprep.subr.mxu0 0.0
  %v1041 = vand.u32 %v932, 4294901760
  %v1042 = vsub.f32 %v932, %v1041
  %v1043 = vand.u32 %v1042, 4294901760
  %v1044 = vsub.f32 %v1042, %v1043
  %v1045 = vand.u32 %v1044, 4294901760
  %1046 = vmatpush1.msra.mxu0 %v1045
  %1047 = vmatprep.subr.mxu0 0.0
  %1048 = vmatpush1.msra.mxu0 0.0
  %1049 = vmatprep.subr.mxu0 0.0
  %1050 = vmatpush1.msra.mxu0 0.0
  %1051 = vmatprep.subr.mxu0 0.0
  %1052 = vmatpush1.msra.mxu0 0.0
  %1053 = vmatprep.subr.mxu0 0.0
  %1054 = vmatpush1.msra.mxu0 0.0
  %1055 = vmatprep.subr.mxu0 0.0
  %1056 = vmatpush1.msra.mxu0 0.0
  %1057 = vmatprep.subr.mxu0 0.0
  %1058 = vmatpush1.msra.mxu0 0.0
  %1059 = vmatprep.subr.mxu0 0.0
  %1060 = vmatpush1.msra.mxu0 0.0
  %1061 = vmatprep.subr.mxu0 0.0
  %1062 = vmatpush1.msra.mxu0 0.0
  %1063 = vmatprep.subr.mxu0 0.0
  %1064 = vmatpush1.msra.mxu0 0.0
  %1065 = vmatprep.subr.mxu0 0.0
  %1066 = vmatpush1.msra.mxu0 0.0
  %1067 = vmatprep.subr.mxu0 0.0
  %1068 = vmatpush1.msra.mxu0 0.0
  %1069 = vmatprep.subr.mxu0 0.0
  %1070 = vmatpush1.msra.mxu0 0.0
  %1071 = vmatprep.subr.mxu0 0.0
  %1072 = vmatpush1.msra.mxu0 0.0
  %1073 = vmatprep.subr.mxu0 0.0
  %1074 = vmatpush1.msra.mxu0 0.0
  %1075 = vmatprep.subr.mxu0 0.0
  %1076 = vmatpush1.msra.mxu0 0.0
  %1077 = vmatprep.subr.mxu0 0.0
  %1078 = vmatpush1.msra.mxu0 0.0
  %1079 = vmatprep.subr.mxu0 0.0
  %1080 = vmatpush1.msra.mxu0 0.0
  %1081 = vmatprep.subr.mxu0 0.0
  %1082 = vmatpush1.msra.mxu0 0.0
  %1083 = vmatprep.subr.mxu0 0.0
  %1084 = vmatpush1.msra.mxu0 0.0
  %1085 = vmatprep.subr.mxu0 0.0
  %1086 = vmatpush1.msra.mxu0 0.0
  %1087 = vmatprep.subr.mxu0 0.0
  %1088 = vmatpush1.msra.mxu0 0.0
  %1089 = vmatprep.subr.mxu0 0.0
  %1090 = vmatpush1.msra.mxu0 0.0
  %1091 = vmatprep.subr.mxu0 0.0
  %1092 = vmatpush1.msra.mxu0 0.0
  %1093 = vmatprep.subr.mxu0 0.0
  %1094 = vmatpush1.msra.mxu0 0.0
  %1095 = vmatprep.subr.mxu0 0.0
  %1096 = vmatpush1.msra.mxu0 0.0
  %1097 = vmatprep.subr.mxu0 0.0
  %1098 = vmatpush1.msra.mxu0 0.0
  %1099 = vmatprep.subr.mxu0 0.0
  %1100 = vmatpush1.msra.mxu0 0.0
  %1101 = vmatprep.subr.mxu0 0.0
  %1102 = vmatpush1.msra.mxu0 0.0
  %1103 = vmatprep.mubr.f32.mxu0 0.0
  %v1104 = vand.u32 %v938, 4294901760
  %1105 = vmatmul.mubr.f32.gmra.mrb[0].mxu0 %v1104
  %v1106 = vpop.f32.mrb[0].mxu0
  %v1107 = vadd.f32 %v1016, %v1106
  %v1108 = vpop.f32.mrb[0].mxu0
  %1109 = vdwg.mxu0
  %1110 = vmatprep.subr.mxu0 0.0
  %v1111 = vand.u32 %v929, 4294901760
  %v1112 = vsub.f32 %v929, %v1111
  %1113 = vmatpush1.msra.mxu0 %v1112
  %1114 = vmatprep.subr.mxu0 0.0
  %v1115 = vand.u32 %v930, 4294901760
  %v1116 = vsub.f32 %v930, %v1115
  %1117 = vmatpush1.msra.mxu0 %v1116
  %1118 = vmatprep.subr.mxu0 0.0
  %v1119 = vand.u32 %v931, 4294901760
  %v1120 = vsub.f32 %v931, %v1119
  %1121 = vmatpush1.msra.mxu0 %v1120
  %1122 = vmatprep.subr.mxu0 0.0
  %v1123 = vand.u32 %v932, 4294901760
  %v1124 = vsub.f32 %v932, %v1123
  %1125 = vmatpush1.msra.mxu0 %v1124
  %1126 = vmatprep.subr.mxu0 0.0
  %1127 = vmatpush1.msra.mxu0 0.0
  %1128 = vmatprep.subr.mxu0 0.0
  %1129 = vmatpush1.msra.mxu0 0.0
  %1130 = vmatprep.subr.mxu0 0.0
  %1131 = vmatpush1.msra.mxu0 0.0
  %1132 = vmatprep.subr.mxu0 0.0
  %1133 = vmatpush1.msra.mxu0 0.0
  %1134 = vmatprep.subr.mxu0 0.0
  %1135 = vmatpush1.msra.mxu0 0.0
  %1136 = vmatprep.subr.mxu0 0.0
  %1137 = vmatpush1.msra.mxu0 0.0
  %1138 = vmatprep.subr.mxu0 0.0
  %1139 = vmatpush1.msra.mxu0 0.0
  %1140 = vmatprep.subr.mxu0 0.0
  %1141 = vmatpush1.msra.mxu0 0.0
  %1142 = vmatprep.subr.mxu0 0.0
  %1143 = vmatpush1.msra.mxu0 0.0
  %1144 = vmatprep.subr.mxu0 0.0
  %1145 = vmatpush1.msra.mxu0 0.0
  %1146 = vmatprep.subr.mxu0 0.0
  %1147 = vmatpush1.msra.mxu0 0.0
  %1148 = vmatprep.subr.mxu0 0.0
  %1149 = vmatpush1.msra.mxu0 0.0
  %1150 = vmatprep.subr.mxu0 0.0
  %1151 = vmatpush1.msra.mxu0 0.0
  %1152 = vmatprep.subr.mxu0 0.0
  %1153 = vmatpush1.msra.mxu0 0.0
  %1154 = vmatprep.subr.mxu0 0.0
  %1155 = vmatpush1.msra.mxu0 0.0
  %1156 = vmatprep.subr.mxu0 0.0
  %1157 = vmatpush1.msra.mxu0 0.0
  %1158 = vmatprep.subr.mxu0 0.0
  %1159 = vmatpush1.msra.mxu0 0.0
  %1160 = vmatprep.subr.mxu0 0.0
  %1161 = vmatpush1.msra.mxu0 0.0
  %1162 = vmatprep.subr.mxu0 0.0
  %1163 = vmatpush1.msra.mxu0 0.0
  %1164 = vmatprep.subr.mxu0 0.0
  %1165 = vmatpush1.msra.mxu0 0.0
  %1166 = vmatprep.subr.mxu0 0.0
  %1167 = vmatpush1.msra.mxu0 0.0
  %1168 = vmatprep.subr.mxu0 0.0
  %1169 = vmatpush1.msra.mxu0 0.0
  %1170 = vmatprep.subr.mxu0 0.0
  %1171 = vmatpush1.msra.mxu0 0.0
  %1172 = vmatprep.subr.mxu0 0.0
  %1173 = vmatpush1.msra.mxu0 0.0
  %1174 = vmatprep.subr.mxu0 0.0
  %1175 = vmatpush1.msra.mxu0 0.0
  %1176 = vmatprep.subr.mxu0 0.0
  %1177 = vmatpush1.msra.mxu0 0.0
  %1178 = vmatprep.subr.mxu0 0.0
  %1179 = vmatpush1.msra.mxu0 0.0
  %1180 = vmatprep.subr.mxu0 0.0
  %1181 = vmatpush1.msra.mxu0 0.0
  %1182 = vmatprep.mubr.f32.mxu0 0.0
  %v1183 = vand.u32 %v938, 4294901760
  %v1184 = vsub.f32 %v938, %v1183
  %1185 = vmatmul.mubr.f32.gmra.mrb[0].mxu0 %v1184
  %v1186 = vpop.f32.mrb[0].mxu0
  %v1187 = vadd.f32 %v1107, %v1186
  %v1188 = vpop.f32.mrb[0].mxu0
  %1189 = vdwg.mxu0
  %1190 = vmatprep.subr.mxu0 0.0
  %v1191 = vand.u32 %v929, 4294901760
  %1192 = vmatpush1.msra.mxu0 %v1191
  %1193 = vmatprep.subr.mxu0 0.0
  %v1194 = vand.u32 %v930, 4294901760
  %1195 = vmatpush1.msra.mxu0 %v1194
  %1196 = vmatprep.subr.mxu0 0.0
  %v1197 = vand.u32 %v931, 4294901760
  %1198 = vmatpush1.msra.mxu0 %v1197
  %1199 = vmatprep.subr.mxu0 0.0
  %v1200 = vand.u32 %v932, 4294901760
  %1201 = vmatpush1.msra.mxu0 %v1200
  %1202 = vmatprep.subr.mxu0 0.0
  %1203 = vmatpush1.msra.mxu0 0.0
  %1204 = vmatprep.subr.mxu0 0.0
  %1205 = vmatpush1.msra.mxu0 0.0
  %1206 = vmatprep.subr.mxu0 0.0
  %1207 = vmatpush1.msra.mxu0 0.0
  %1208 = vmatprep.subr.mxu0 0.0
  %1209 = vmatpush1.msra.mxu0 0.0
  %1210 = vmatprep.subr.mxu0 0.0
  %1211 = vmatpush1.msra.mxu0 0.0
  %1212 = vmatprep.subr.mxu0 0.0
  %1213 = vmatpush1.msra.mxu0 0.0
  %1214 = vmatprep.subr.mxu0 0.0
  %1215 = vmatpush1.msra.mxu0 0.0
  %1216 = vmatprep.subr.mxu0 0.0
  %1217 = vmatpush1.msra.mxu0 0.0
  %1218 = vmatprep.subr.mxu0 0.0
  %1219 = vmatpush1.msra.mxu0 0.0
  %1220 = vmatprep.subr.mxu0 0.0
  %1221 = vmatpush1.msra.mxu0 0.0
  %1222 = vmatprep.subr.mxu0 0.0
  %1223 = vmatpush1.msra.mxu0 0.0
  %1224 = vmatprep.subr.mxu0 0.0
  %1225 = vmatpush1.msra.mxu0 0.0
  %1226 = vmatprep.subr.mxu0 0.0
  %1227 = vmatpush1.msra.mxu0 0.0
  %1228 = vmatprep.subr.mxu0 0.0
  %1229 = vmatpush1.msra.mxu0 0.0
  %1230 = vmatprep.subr.mxu0 0.0
  %1231 = vmatpush1.msra.mxu0 0.0
  %1232 = vmatprep.subr.mxu0 0.0
  %1233 = vmatpush1.msra.mxu0 0.0
  %1234 = vmatprep.subr.mxu0 0.0
  %1235 = vmatpush1.msra.mxu0 0.0
  %1236 = vmatprep.subr.mxu0 0.0
  %1237 = vmatpush1.msra.mxu0 0.0
  %1238 = vmatprep.subr.mxu0 0.0
  %1239 = vmatpush1.msra.mxu0 0.0
  %1240 = vmatprep.subr.mxu0 0.0
  %1241 = vmatpush1.msra.mxu0 0.0
  %1242 = vmatprep.subr.mxu0 0.0
  %1243 = vmatpush1.msra.mxu0 0.0
  %1244 = vmatprep.subr.mxu0 0.0
  %1245 = vmatpush1.msra.mxu0 0.0
  %1246 = vmatprep.subr.mxu0 0.0
  %1247 = vmatpush1.msra.mxu0 0.0
  %1248 = vmatprep.subr.mxu0 0.0
  %1249 = vmatpush1.msra.mxu0 0.0
  %1250 = vmatprep.subr.mxu0 0.0
  %1251 = vmatpush1.msra.mxu0 0.0
  %1252 = vmatprep.subr.mxu0 0.0
  %1253 = vmatpush1.msra.mxu0 0.0
  %1254 = vmatprep.subr.mxu0 0.0
  %1255 = vmatpush1.msra.mxu0 0.0
  %1256 = vmatprep.subr.mxu0 0.0
  %1257 = vmatpush1.msra.mxu0 0.0
  %1258 = vmatprep.mubr.f32.mxu0 0.0
  %v1259 = vand.u32 %v938, 4294901760
  %v1260 = vsub.f32 %v938, %v1259
  %v1261 = vand.u32 %v1260, 4294901760
  %1262 = vmatmul.mubr.f32.gmra.mrb[0].mxu0 %v1261
  %v1263 = vpop.f32.mrb[0].mxu0
  %v1264 = vadd.f32 %v1187, %v1263
  %v1265 = vpop.f32.mrb[0].mxu0
  %1266 = vdwg.mxu0
  %1267 = vmatprep.subr.mxu0 0.0
  %v1268 = vand.u32 %v929, 4294901760
  %v1269 = vsub.f32 %v929, %v1268
  %v1270 = vand.u32 %v1269, 4294901760
  %1271 = vmatpush1.msra.mxu0 %v1270
  %1272 = vmatprep.subr.mxu0 0.0
  %v1273 = vand.u32 %v930, 4294901760
  %v1274 = vsub.f32 %v930, %v1273
  %v1275 = vand.u32 %v1274, 4294901760
  %1276 = vmatpush1.msra.mxu0 %v1275
  %1277 = vmatprep.subr.mxu0 0.0
  %v1278 = vand.u32 %v931, 4294901760
  %v1279 = vsub.f32 %v931, %v1278
  %v1280 = vand.u32 %v1279, 4294901760
  %1281 = vmatpush1.msra.mxu0 %v1280
  %1282 = vmatprep.subr.mxu0 0.0
  %v1283 = vand.u32 %v932, 4294901760
  %v1284 = vsub.f32 %v932, %v1283
  %v1285 = vand.u32 %v1284, 4294901760
  %1286 = vmatpush1.msra.mxu0 %v1285
  %1287 = vmatprep.subr.mxu0 0.0
  %1288 = vmatpush1.msra.mxu0 0.0
  %1289 = vmatprep.subr.mxu0 0.0
  %1290 = vmatpush1.msra.mxu0 0.0
  %1291 = vmatprep.subr.mxu0 0.0
  %1292 = vmatpush1.msra.mxu0 0.0
  %1293 = vmatprep.subr.mxu0 0.0
  %1294 = vmatpush1.msra.mxu0 0.0
  %1295 = vmatprep.subr.mxu0 0.0
  %1296 = vmatpush1.msra.mxu0 0.0
  %1297 = vmatprep.subr.mxu0 0.0
  %1298 = vmatpush1.msra.mxu0 0.0
  %1299 = vmatprep.subr.mxu0 0.0
  %1300 = vmatpush1.msra.mxu0 0.0
  %1301 = vmatprep.subr.mxu0 0.0
  %1302 = vmatpush1.msra.mxu0 0.0
  %1303 = vmatprep.subr.mxu0 0.0
  %1304 = vmatpush1.msra.mxu0 0.0
  %1305 = vmatprep.subr.mxu0 0.0
  %1306 = vmatpush1.msra.mxu0 0.0
  %1307 = vmatprep.subr.mxu0 0.0
  %1308 = vmatpush1.msra.mxu0 0.0
  %1309 = vmatprep.subr.mxu0 0.0
  %1310 = vmatpush1.msra.mxu0 0.0
  %1311 = vmatprep.subr.mxu0 0.0
  %1312 = vmatpush1.msra.mxu0 0.0
  %1313 = vmatprep.subr.mxu0 0.0
  %1314 = vmatpush1.msra.mxu0 0.0
  %1315 = vmatprep.subr.mxu0 0.0
  %1316 = vmatpush1.msra.mxu0 0.0
  %1317 = vmatprep.subr.mxu0 0.0
  %1318 = vmatpush1.msra.mxu0 0.0
  %1319 = vmatprep.subr.mxu0 0.0
  %1320 = vmatpush1.msra.mxu0 0.0
  %1321 = vmatprep.subr.mxu0 0.0
  %1322 = vmatpush1.msra.mxu0 0.0
  %1323 = vmatprep.subr.mxu0 0.0
  %1324 = vmatpush1.msra.mxu0 0.0
  %1325 = vmatprep.subr.mxu0 0.0
  %1326 = vmatpush1.msra.mxu0 0.0
  %1327 = vmatprep.subr.mxu0 0.0
  %1328 = vmatpush1.msra.mxu0 0.0
  %1329 = vmatprep.subr.mxu0 0.0
  %1330 = vmatpush1.msra.mxu0 0.0
  %1331 = vmatprep.subr.mxu0 0.0
  %1332 = vmatpush1.msra.mxu0 0.0
  %1333 = vmatprep.subr.mxu0 0.0
  %1334 = vmatpush1.msra.mxu0 0.0
  %1335 = vmatprep.subr.mxu0 0.0
  %1336 = vmatpush1.msra.mxu0 0.0
  %1337 = vmatprep.subr.mxu0 0.0
  %1338 = vmatpush1.msra.mxu0 0.0
  %1339 = vmatprep.subr.mxu0 0.0
  %1340 = vmatpush1.msra.mxu0 0.0
  %1341 = vmatprep.subr.mxu0 0.0
  %1342 = vmatpush1.msra.mxu0 0.0
  %1343 = vmatprep.mubr.f32.mxu0 0.0
  %v1344 = vand.u32 %v938, 4294901760
  %1345 = vmatmul.mubr.f32.gmra.mrb[0].mxu0 %v1344
  %v1346 = vpop.f32.mrb[0].mxu0
  %v1347 = vadd.f32 %v1264, %v1346
  %v1348 = vpop.f32.mrb[0].mxu0
  %1349 = vdwg.mxu0
  %1350 = vmatprep.subr.mxu0 0.0
  %v1351 = vand.u32 %v929, 4294901760
  %1352 = vmatpush1.msra.mxu0 %v1351
  %1353 = vmatprep.subr.mxu0 0.0
  %v1354 = vand.u32 %v930, 4294901760
  %1355 = vmatpush1.msra.mxu0 %v1354
  %1356 = vmatprep.subr.mxu0 0.0
  %v1357 = vand.u32 %v931, 4294901760
  %1358 = vmatpush1.msra.mxu0 %v1357
  %1359 = vmatprep.subr.mxu0 0.0
  %v1360 = vand.u32 %v932, 4294901760
  %1361 = vmatpush1.msra.mxu0 %v1360
  %1362 = vmatprep.subr.mxu0 0.0
  %1363 = vmatpush1.msra.mxu0 0.0
  %1364 = vmatprep.subr.mxu0 0.0
  %1365 = vmatpush1.msra.mxu0 0.0
  %1366 = vmatprep.subr.mxu0 0.0
  %1367 = vmatpush1.msra.mxu0 0.0
  %1368 = vmatprep.subr.mxu0 0.0
  %1369 = vmatpush1.msra.mxu0 0.0
  %1370 = vmatprep.subr.mxu0 0.0
  %1371 = vmatpush1.msra.mxu0 0.0
  %1372 = vmatprep.subr.mxu0 0.0
  %1373 = vmatpush1.msra.mxu0 0.0
  %1374 = vmatprep.subr.mxu0 0.0
  %1375 = vmatpush1.msra.mxu0 0.0
  %1376 = vmatprep.subr.mxu0 0.0
  %1377 = vmatpush1.msra.mxu0 0.0
  %1378 = vmatprep.subr.mxu0 0.0
  %1379 = vmatpush1.msra.mxu0 0.0
  %1380 = vmatprep.subr.mxu0 0.0
  %1381 = vmatpush1.msra.mxu0 0.0
  %1382 = vmatprep.subr.mxu0 0.0
  %1383 = vmatpush1.msra.mxu0 0.0
  %1384 = vmatprep.subr.mxu0 0.0
  %1385 = vmatpush1.msra.mxu0 0.0
  %1386 = vmatprep.subr.mxu0 0.0
  %1387 = vmatpush1.msra.mxu0 0.0
  %1388 = vmatprep.subr.mxu0 0.0
  %1389 = vmatpush1.msra.mxu0 0.0
  %1390 = vmatprep.subr.mxu0 0.0
  %1391 = vmatpush1.msra.mxu0 0.0
  %1392 = vmatprep.subr.mxu0 0.0
  %1393 = vmatpush1.msra.mxu0 0.0
  %1394 = vmatprep.subr.mxu0 0.0
  %1395 = vmatpush1.msra.mxu0 0.0
  %1396 = vmatprep.subr.mxu0 0.0
  %1397 = vmatpush1.msra.mxu0 0.0
  %1398 = vmatprep.subr.mxu0 0.0
  %1399 = vmatpush1.msra.mxu0 0.0
  %1400 = vmatprep.subr.mxu0 0.0
  %1401 = vmatpush1.msra.mxu0 0.0
  %1402 = vmatprep.subr.mxu0 0.0
  %1403 = vmatpush1.msra.mxu0 0.0
  %1404 = vmatprep.subr.mxu0 0.0
  %1405 = vmatpush1.msra.mxu0 0.0
  %1406 = vmatprep.subr.mxu0 0.0
  %1407 = vmatpush1.msra.mxu0 0.0
  %1408 = vmatprep.subr.mxu0 0.0
  %1409 = vmatpush1.msra.mxu0 0.0
  %1410 = vmatprep.subr.mxu0 0.0
  %1411 = vmatpush1.msra.mxu0 0.0
  %1412 = vmatprep.subr.mxu0 0.0
  %1413 = vmatpush1.msra.mxu0 0.0
  %1414 = vmatprep.subr.mxu0 0.0
  %1415 = vmatpush1.msra.mxu0 0.0
  %1416 = vmatprep.subr.mxu0 0.0
  %1417 = vmatpush1.msra.mxu0 0.0
  %1418 = vmatprep.mubr.f32.mxu0 0.0
  %v1419 = vand.u32 %v938, 4294901760
  %1420 = vmatmul.mubr.f32.gmra.mrb[0].mxu0 %v1419
  %v1421 = vpop.f32.mrb[0].mxu0
  %v1422 = vadd.f32 %v1347, %v1421
  %v1423 = vpop.f32.mrb[0].mxu0
  %1424 = vdwg.mxu0
  %v1425 = vadd.f32 %v935, %v1422
  %v1426 = vxor.u32 %v1425, 2147483648
  %v1427 = vmul.f32 %v1426, 1.442695
  %v1428 = vpow.pop %v1427
  %v1429 = vadd.f32 %v1428, 1.0
  %v1430 = vrcp.pop %v1429
  %v1431 = vmul.f32 1.0, %v1430
  %v1432 = vtanh.pop %v1425
  %1434 = vrot.lane.b32.xlu0 %v934, 32
  %v1435 = vpop.permute.xlu0 %1434
  %v1437 = vmul.f32 %v1431, %v1435
  %1439 = vrot.lane.b32.xlu0 %v1432, 64
  %v1440 = vpop.permute.xlu0 %1439
  %v1442 = vmul.f32 %v1431, %v1440
  %1444 = vrot.lane.b32.xlu0 %v1442, 32
  %v1445 = vpop.permute.xlu0 %1444
  %v1447 = vadd.f32 %v1437, %v1445
  %v1448 = vtanh.pop %v1447
  %1450 = vrot.lane.b32.xlu0 %v1448, 64
  %v1451 = vpop.permute.xlu0 %1450
  %v1453 = vmul.f32 %v1431, %v1451
  %s1454 = scalar_lea.vmem [#allocation4], 8
  %v1455 = vld [vmem:[%s1454] sm:$0xff]
  %1457 = vrot.lane.b32.xlu0 %v1453, 32
  %v1458 = vpop.permute.xlu0 %1457
  %v1459 = vsel %vm936, %v1458, 0
  %1461 = vmatprep.subr.mxu0 0.0
  %v1462 = vand.u32 %v929, 4294901760
  %1463 = vmatpush1.msra.mxu0 %v1462
  %1464 = vmatprep.subr.mxu0 0.0
  %v1465 = vand.u32 %v930, 4294901760
  %1466 = vmatpush1.msra.mxu0 %v1465
  %1467 = vmatprep.subr.mxu0 0.0
  %v1468 = vand.u32 %v931, 4294901760
  %1469 = vmatpush1.msra.mxu0 %v1468
  %1470 = vmatprep.subr.mxu0 0.0
  %v1471 = vand.u32 %v932, 4294901760
  %1472 = vmatpush1.msra.mxu0 %v1471
  %1473 = vmatprep.subr.mxu0 0.0
  %1474 = vmatpush1.msra.mxu0 0.0
  %1475 = vmatprep.subr.mxu0 0.0
  %1476 = vmatpush1.msra.mxu0 0.0
  %1477 = vmatprep.subr.mxu0 0.0
  %1478 = vmatpush1.msra.mxu0 0.0
  %1479 = vmatprep.subr.mxu0 0.0
  %1480 = vmatpush1.msra.mxu0 0.0
  %1481 = vmatprep.subr.mxu0 0.0
  %1482 = vmatpush1.msra.mxu0 0.0
  %1483 = vmatprep.subr.mxu0 0.0
  %1484 = vmatpush1.msra.mxu0 0.0
  %1485 = vmatprep.subr.mxu0 0.0
  %1486 = vmatpush1.msra.mxu0 0.0
  %1487 = vmatprep.subr.mxu0 0.0
  %1488 = vmatpush1.msra.mxu0 0.0
  %1489 = vmatprep.subr.mxu0 0.0
  %1490 = vmatpush1.msra.mxu0 0.0
  %1491 = vmatprep.subr.mxu0 0.0
  %1492 = vmatpush1.msra.mxu0 0.0
  %1493 = vmatprep.subr.mxu0 0.0
  %1494 = vmatpush1.msra.mxu0 0.0
  %1495 = vmatprep.subr.mxu0 0.0
  %1496 = vmatpush1.msra.mxu0 0.0
  %1497 = vmatprep.subr.mxu0 0.0
  %1498 = vmatpush1.msra.mxu0 0.0
  %1499 = vmatprep.subr.mxu0 0.0
  %1500 = vmatpush1.msra.mxu0 0.0
  %1501 = vmatprep.subr.mxu0 0.0
  %1502 = vmatpush1.msra.mxu0 0.0
  %1503 = vmatprep.subr.mxu0 0.0
  %1504 = vmatpush1.msra.mxu0 0.0
  %1505 = vmatprep.subr.mxu0 0.0
  %1506 = vmatpush1.msra.mxu0 0.0
  %1507 = vmatprep.subr.mxu0 0.0
  %1508 = vmatpush1.msra.mxu0 0.0
  %1509 = vmatprep.subr.mxu0 0.0
  %1510 = vmatpush1.msra.mxu0 0.0
  %1511 = vmatprep.subr.mxu0 0.0
  %1512 = vmatpush1.msra.mxu0 0.0
  %1513 = vmatprep.subr.mxu0 0.0
  %1514 = vmatpush1.msra.mxu0 0.0
  %1515 = vmatprep.subr.mxu0 0.0
  %1516 = vmatpush1.msra.mxu0 0.0
  %1517 = vmatprep.subr.mxu0 0.0
  %1518 = vmatpush1.msra.mxu0 0.0
  %1519 = vmatprep.subr.mxu0 0.0
  %1520 = vmatpush1.msra.mxu0 0.0
  %1521 = vmatprep.subr.mxu0 0.0
  %1522 = vmatpush1.msra.mxu0 0.0
  %1523 = vmatprep.subr.mxu0 0.0
  %1524 = vmatpush1.msra.mxu0 0.0
  %1525 = vmatprep.subr.mxu0 0.0
  %1526 = vmatpush1.msra.mxu0 0.0
  %1527 = vmatprep.subr.mxu0 0.0
  %1528 = vmatpush1.msra.mxu0 0.0
  %1529 = vmatprep.mubr.f32.mxu0 0.0
  %v1530 = vand.u32 %v1459, 4294901760
  %v1531 = vsub.f32 %v1459, %v1530
  %v1532 = vand.u32 %v1531, 4294901760
  %v1533 = vsub.f32 %v1531, %v1532
  %v1534 = vand.u32 %v1533, 4294901760
  %1535 = vmatmul.mubr.f32.gmra.mrb[0].mxu0 %v1534
  %v1536 = vpop.f32.mrb[0].mxu0
  %v1537 = vadd.f32 0.0, %v1536
  %v1538 = vpop.f32.mrb[0].mxu0
  %1539 = vdwg.mxu0
  %1540 = vmatprep.subr.mxu0 0.0
  %v1541 = vand.u32 %v929, 4294901760
  %v1542 = vsub.f32 %v929, %v1541
  %v1543 = vand.u32 %v1542, 4294901760
  %v1544 = vsub.f32 %v1542, %v1543
  %v1545 = vand.u32 %v1544, 4294901760
  %1546 = vmatpush1.msra.mxu0 %v1545
  %1547 = vmatprep.subr.mxu0 0.0
  %v1548 = vand.u32 %v930, 4294901760
  %v1549 = vsub.f32 %v930, %v1548
  %v1550 = vand.u32 %v1549, 4294901760
  %v1551 = vsub.f32 %v1549, %v1550
  %v1552 = vand.u32 %v1551, 4294901760
  %1553 = vmatpush1.msra.mxu0 %v1552
  %1554 = vmatprep.subr.mxu0 0.0
  %v1555 = vand.u32 %v931, 4294901760
  %v1556 = vsub.f32 %v931, %v1555
  %v1557 = vand.u32 %v1556, 4294901760
  %v1558 = vsub.f32 %v1556, %v1557
  %v1559 = vand.u32 %v1558, 4294901760
  %1560 = vmatpush1.msra.mxu0 %v1559
  %1561 = vmatprep.subr.mxu0 0.0
  %v1562 = vand.u32 %v932, 4294901760
  %v1563 = vsub.f32 %v932, %v1562
  %v1564 = vand.u32 %v1563, 4294901760
  %v1565 = vsub.f32 %v1563, %v1564
  %v1566 = vand.u32 %v1565, 4294901760
  %1567 = vmatpush1.msra.mxu0 %v1566
  %1568 = vmatprep.subr.mxu0 0.0
  %1569 = vmatpush1.msra.mxu0 0.0
  %1570 = vmatprep.subr.mxu0 0.0
  %1571 = vmatpush1.msra.mxu0 0.0
  %1572 = vmatprep.subr.mxu0 0.0
  %1573 = vmatpush1.msra.mxu0 0.0
  %1574 = vmatprep.subr.mxu0 0.0
  %1575 = vmatpush1.msra.mxu0 0.0
  %1576 = vmatprep.subr.mxu0 0.0
  %1577 = vmatpush1.msra.mxu0 0.0
  %1578 = vmatprep.subr.mxu0 0.0
  %1579 = vmatpush1.msra.mxu0 0.0
  %1580 = vmatprep.subr.mxu0 0.0
  %1581 = vmatpush1.msra.mxu0 0.0
  %1582 = vmatprep.subr.mxu0 0.0
  %1583 = vmatpush1.msra.mxu0 0.0
  %1584 = vmatprep.subr.mxu0 0.0
  %1585 = vmatpush1.msra.mxu0 0.0
  %1586 = vmatprep.subr.mxu0 0.0
  %1587 = vmatpush1.msra.mxu0 0.0
  %1588 = vmatprep.subr.mxu0 0.0
  %1589 = vmatpush1.msra.mxu0 0.0
  %1590 = vmatprep.subr.mxu0 0.0
  %1591 = vmatpush1.msra.mxu0 0.0
  %1592 = vmatprep.subr.mxu0 0.0
  %1593 = vmatpush1.msra.mxu0 0.0
  %1594 = vmatprep.subr.mxu0 0.0
  %1595 = vmatpush1.msra.mxu0 0.0
  %1596 = vmatprep.subr.mxu0 0.0
  %1597 = vmatpush1.msra.mxu0 0.0
  %1598 = vmatprep.subr.mxu0 0.0
  %1599 = vmatpush1.msra.mxu0 0.0
  %1600 = vmatprep.subr.mxu0 0.0
  %1601 = vmatpush1.msra.mxu0 0.0
  %1602 = vmatprep.subr.mxu0 0.0
  %1603 = vmatpush1.msra.mxu0 0.0
  %1604 = vmatprep.subr.mxu0 0.0
  %1605 = vmatpush1.msra.mxu0 0.0
  %1606 = vmatprep.subr.mxu0 0.0
  %1607 = vmatpush1.msra.mxu0 0.0
  %1608 = vmatprep.subr.mxu0 0.0
  %1609 = vmatpush1.msra.mxu0 0.0
  %1610 = vmatprep.subr.mxu0 0.0
  %1611 = vmatpush1.msra.mxu0 0.0
  %1612 = vmatprep.subr.mxu0 0.0
  %1613 = vmatpush1.msra.mxu0 0.0
  %1614 = vmatprep.subr.mxu0 0.0
  %1615 = vmatpush1.msra.mxu0 0.0
  %1616 = vmatprep.subr.mxu0 0.0
  %1617 = vmatpush1.msra.mxu0 0.0
  %1618 = vmatprep.subr.mxu0 0.0
  %1619 = vmatpush1.msra.mxu0 0.0
  %1620 = vmatprep.subr.mxu0 0.0
  %1621 = vmatpush1.msra.mxu0 0.0
  %1622 = vmatprep.subr.mxu0 0.0
  %1623 = vmatpush1.msra.mxu0 0.0
  %1624 = vmatprep.mubr.f32.mxu0 0.0
  %v1625 = vand.u32 %v1459, 4294901760
  %1626 = vmatmul.mubr.f32.gmra.mrb[0].mxu0 %v1625
  %v1627 = vpop.f32.mrb[0].mxu0
  %v1628 = vadd.f32 %v1537, %v1627
  %v1629 = vpop.f32.mrb[0].mxu0
  %1630 = vdwg.mxu0
  %1631 = vmatprep.subr.mxu0 0.0
  %v1632 = vand.u32 %v929, 4294901760
  %v1633 = vsub.f32 %v929, %v1632
  %1634 = vmatpush1.msra.mxu0 %v1633
  %1635 = vmatprep.subr.mxu0 0.0
  %v1636 = vand.u32 %v930, 4294901760
  %v1637 = vsub.f32 %v930, %v1636
  %1638 = vmatpush1.msra.mxu0 %v1637
  %1639 = vmatprep.subr.mxu0 0.0
  %v1640 = vand.u32 %v931, 4294901760
  %v1641 = vsub.f32 %v931, %v1640
  %1642 = vmatpush1.msra.mxu0 %v1641
  %1643 = vmatprep.subr.mxu0 0.0
  %v1644 = vand.u32 %v932, 4294901760
  %v1645 = vsub.f32 %v932, %v1644
  %1646 = vmatpush1.msra.mxu0 %v1645
  %1647 = vmatprep.subr.mxu0 0.0
  %1648 = vmatpush1.msra.mxu0 0.0
  %1649 = vmatprep.subr.mxu0 0.0
  %1650 = vmatpush1.msra.mxu0 0.0
  %1651 = vmatprep.subr.mxu0 0.0
  %1652 = vmatpush1.msra.mxu0 0.0
  %1653 = vmatprep.subr.mxu0 0.0
  %1654 = vmatpush1.msra.mxu0 0.0
  %1655 = vmatprep.subr.mxu0 0.0
  %1656 = vmatpush1.msra.mxu0 0.0
  %1657 = vmatprep.subr.mxu0 0.0
  %1658 = vmatpush1.msra.mxu0 0.0
  %1659 = vmatprep.subr.mxu0 0.0
  %1660 = vmatpush1.msra.mxu0 0.0
  %1661 = vmatprep.subr.mxu0 0.0
  %1662 = vmatpush1.msra.mxu0 0.0
  %1663 = vmatprep.subr.mxu0 0.0
  %1664 = vmatpush1.msra.mxu0 0.0
  %1665 = vmatprep.subr.mxu0 0.0
  %1666 = vmatpush1.msra.mxu0 0.0
  %1667 = vmatprep.subr.mxu0 0.0
  %1668 = vmatpush1.msra.mxu0 0.0
  %1669 = vmatprep.subr.mxu0 0.0
  %1670 = vmatpush1.msra.mxu0 0.0
  %1671 = vmatprep.subr.mxu0 0.0
  %1672 = vmatpush1.msra.mxu0 0.0
  %1673 = vmatprep.subr.mxu0 0.0
  %1674 = vmatpush1.msra.mxu0 0.0
  %1675 = vmatprep.subr.mxu0 0.0
  %1676 = vmatpush1.msra.mxu0 0.0
  %1677 = vmatprep.subr.mxu0 0.0
  %1678 = vmatpush1.msra.mxu0 0.0
  %1679 = vmatprep.subr.mxu0 0.0
  %1680 = vmatpush1.msra.mxu0 0.0
  %1681 = vmatprep.subr.mxu0 0.0
  %1682 = vmatpush1.msra.mxu0 0.0
  %1683 = vmatprep.subr.mxu0 0.0
  %1684 = vmatpush1.msra.mxu0 0.0
  %1685 = vmatprep.subr.mxu0 0.0
  %1686 = vmatpush1.msra.mxu0 0.0
  %1687 = vmatprep.subr.mxu0 0.0
  %1688 = vmatpush1.msra.mxu0 0.0
  %1689 = vmatprep.subr.mxu0 0.0
  %1690 = vmatpush1.msra.mxu0 0.0
  %1691 = vmatprep.subr.mxu0 0.0
  %1692 = vmatpush1.msra.mxu0 0.0
  %1693 = vmatprep.subr.mxu0 0.0
  %1694 = vmatpush1.msra.mxu0 0.0
  %1695 = vmatprep.subr.mxu0 0.0
  %1696 = vmatpush1.msra.mxu0 0.0
  %1697 = vmatprep.subr.mxu0 0.0
  %1698 = vmatpush1.msra.mxu0 0.0
  %1699 = vmatprep.subr.mxu0 0.0
  %1700 = vmatpush1.msra.mxu0 0.0
  %1701 = vmatprep.subr.mxu0 0.0
  %1702 = vmatpush1.msra.mxu0 0.0
  %1703 = vmatprep.mubr.f32.mxu0 0.0
  %v1704 = vand.u32 %v1459, 4294901760
  %v1705 = vsub.f32 %v1459, %v1704
  %1706 = vmatmul.mubr.f32.gmra.mrb[0].mxu0 %v1705
  %v1707 = vpop.f32.mrb[0].mxu0
  %v1708 = vadd.f32 %v1628, %v1707
  %v1709 = vpop.f32.mrb[0].mxu0
  %1710 = vdwg.mxu0
  %1711 = vmatprep.subr.mxu0 0.0
  %v1712 = vand.u32 %v929, 4294901760
  %1713 = vmatpush1.msra.mxu0 %v1712
  %1714 = vmatprep.subr.mxu0 0.0
  %v1715 = vand.u32 %v930, 4294901760
  %1716 = vmatpush1.msra.mxu0 %v1715
  %1717 = vmatprep.subr.mxu0 0.0
  %v1718 = vand.u32 %v931, 4294901760
  %1719 = vmatpush1.msra.mxu0 %v1718
  %1720 = vmatprep.subr.mxu0 0.0
  %v1721 = vand.u32 %v932, 4294901760
  %1722 = vmatpush1.msra.mxu0 %v1721
  %1723 = vmatprep.subr.mxu0 0.0
  %1724 = vmatpush1.msra.mxu0 0.0
  %1725 = vmatprep.subr.mxu0 0.0
  %1726 = vmatpush1.msra.mxu0 0.0
  %1727 = vmatprep.subr.mxu0 0.0
  %1728 = vmatpush1.msra.mxu0 0.0
  %1729 = vmatprep.subr.mxu0 0.0
  %1730 = vmatpush1.msra.mxu0 0.0
  %1731 = vmatprep.subr.mxu0 0.0
  %1732 = vmatpush1.msra.mxu0 0.0
  %1733 = vmatprep.subr.mxu0 0.0
  %1734 = vmatpush1.msra.mxu0 0.0
  %1735 = vmatprep.subr.mxu0 0.0
  %1736 = vmatpush1.msra.mxu0 0.0
  %1737 = vmatprep.subr.mxu0 0.0
  %1738 = vmatpush1.msra.mxu0 0.0
  %1739 = vmatprep.subr.mxu0 0.0
  %1740 = vmatpush1.msra.mxu0 0.0
  %1741 = vmatprep.subr.mxu0 0.0
  %1742 = vmatpush1.msra.mxu0 0.0
  %1743 = vmatprep.subr.mxu0 0.0
  %1744 = vmatpush1.msra.mxu0 0.0
  %1745 = vmatprep.subr.mxu0 0.0
  %1746 = vmatpush1.msra.mxu0 0.0
  %1747 = vmatprep.subr.mxu0 0.0
  %1748 = vmatpush1.msra.mxu0 0.0
  %1749 = vmatprep.subr.mxu0 0.0
  %1750 = vmatpush1.msra.mxu0 0.0
  %1751 = vmatprep.subr.mxu0 0.0
  %1752 = vmatpush1.msra.mxu0 0.0
  %1753 = vmatprep.subr.mxu0 0.0
  %1754 = vmatpush1.msra.mxu0 0.0
  %1755 = vmatprep.subr.mxu0 0.0
  %1756 = vmatpush1.msra.mxu0 0.0
  %1757 = vmatprep.subr.mxu0 0.0
  %1758 = vmatpush1.msra.mxu0 0.0
  %1759 = vmatprep.subr.mxu0 0.0
  %1760 = vmatpush1.msra.mxu0 0.0
  %1761 = vmatprep.subr.mxu0 0.0
  %1762 = vmatpush1.msra.mxu0 0.0
  %1763 = vmatprep.subr.mxu0 0.0
  %1764 = vmatpush1.msra.mxu0 0.0
  %1765 = vmatprep.subr.mxu0 0.0
  %1766 = vmatpush1.msra.mxu0 0.0
  %1767 = vmatprep.subr.mxu0 0.0
  %1768 = vmatpush1.msra.mxu0 0.0
  %1769 = vmatprep.subr.mxu0 0.0
  %1770 = vmatpush1.msra.mxu0 0.0
  %1771 = vmatprep.subr.mxu0 0.0
  %1772 = vmatpush1.msra.mxu0 0.0
  %1773 = vmatprep.subr.mxu0 0.0
  %1774 = vmatpush1.msra.mxu0 0.0
  %1775 = vmatprep.subr.mxu0 0.0
  %1776 = vmatpush1.msra.mxu0 0.0
  %1777 = vmatprep.subr.mxu0 0.0
  %1778 = vmatpush1.msra.mxu0 0.0
  %1779 = vmatprep.mubr.f32.mxu0 0.0
  %v1780 = vand.u32 %v1459, 4294901760
  %v1781 = vsub.f32 %v1459, %v1780
  %v1782 = vand.u32 %v1781, 4294901760
  %1783 = vmatmul.mubr.f32.gmra.mrb[0].mxu0 %v1782
  %v1784 = vpop.f32.mrb[0].mxu0
  %v1785 = vadd.f32 %v1708, %v1784
  %v1786 = vpop.f32.mrb[0].mxu0
  %1787 = vdwg.mxu0
  %1788 = vmatprep.subr.mxu0 0.0
  %v1789 = vand.u32 %v929, 4294901760
  %v1790 = vsub.f32 %v929, %v1789
  %v1791 = vand.u32 %v1790, 4294901760
  %1792 = vmatpush1.msra.mxu0 %v1791
  %1793 = vmatprep.subr.mxu0 0.0
  %v1794 = vand.u32 %v930, 4294901760
  %v1795 = vsub.f32 %v930, %v1794
  %v1796 = vand.u32 %v1795, 4294901760
  %1797 = vmatpush1.msra.mxu0 %v1796
  %1798 = vmatprep.subr.mxu0 0.0
  %v1799 = vand.u32 %v931, 4294901760
  %v1800 = vsub.f32 %v931, %v1799
  %v1801 = vand.u32 %v1800, 4294901760
  %1802 = vmatpush1.msra.mxu0 %v1801
  %1803 = vmatprep.subr.mxu0 0.0
  %v1804 = vand.u32 %v932, 4294901760
  %v1805 = vsub.f32 %v932, %v1804
  %v1806 = vand.u32 %v1805, 4294901760
  %1807 = vmatpush1.msra.mxu0 %v1806
  %1808 = vmatprep.subr.mxu0 0.0
  %1809 = vmatpush1.msra.mxu0 0.0
  %1810 = vmatprep.subr.mxu0 0.0
  %1811 = vmatpush1.msra.mxu0 0.0
  %1812 = vmatprep.subr.mxu0 0.0
  %1813 = vmatpush1.msra.mxu0 0.0
  %1814 = vmatprep.subr.mxu0 0.0
  %1815 = vmatpush1.msra.mxu0 0.0
  %1816 = vmatprep.subr.mxu0 0.0
  %1817 = vmatpush1.msra.mxu0 0.0
  %1818 = vmatprep.subr.mxu0 0.0
  %1819 = vmatpush1.msra.mxu0 0.0
  %1820 = vmatprep.subr.mxu0 0.0
  %1821 = vmatpush1.msra.mxu0 0.0
  %1822 = vmatprep.subr.mxu0 0.0
  %1823 = vmatpush1.msra.mxu0 0.0
  %1824 = vmatprep.subr.mxu0 0.0
  %1825 = vmatpush1.msra.mxu0 0.0
  %1826 = vmatprep.subr.mxu0 0.0
  %1827 = vmatpush1.msra.mxu0 0.0
  %1828 = vmatprep.subr.mxu0 0.0
  %1829 = vmatpush1.msra.mxu0 0.0
  %1830 = vmatprep.subr.mxu0 0.0
  %1831 = vmatpush1.msra.mxu0 0.0
  %1832 = vmatprep.subr.mxu0 0.0
  %1833 = vmatpush1.msra.mxu0 0.0
  %1834 = vmatprep.subr.mxu0 0.0
  %1835 = vmatpush1.msra.mxu0 0.0
  %1836 = vmatprep.subr.mxu0 0.0
  %1837 = vmatpush1.msra.mxu0 0.0
  %1838 = vmatprep.subr.mxu0 0.0
  %1839 = vmatpush1.msra.mxu0 0.0
  %1840 = vmatprep.subr.mxu0 0.0
  %1841 = vmatpush1.msra.mxu0 0.0
  %1842 = vmatprep.subr.mxu0 0.0
  %1843 = vmatpush1.msra.mxu0 0.0
  %1844 = vmatprep.subr.mxu0 0.0
  %1845 = vmatpush1.msra.mxu0 0.0
  %1846 = vmatprep.subr.mxu0 0.0
  %1847 = vmatpush1.msra.mxu0 0.0
  %1848 = vmatprep.subr.mxu0 0.0
  %1849 = vmatpush1.msra.mxu0 0.0
  %1850 = vmatprep.subr.mxu0 0.0
  %1851 = vmatpush1.msra.mxu0 0.0
  %1852 = vmatprep.subr.mxu0 0.0
  %1853 = vmatpush1.msra.mxu0 0.0
  %1854 = vmatprep.subr.mxu0 0.0
  %1855 = vmatpush1.msra.mxu0 0.0
  %1856 = vmatprep.subr.mxu0 0.0
  %1857 = vmatpush1.msra.mxu0 0.0
  %1858 = vmatprep.subr.mxu0 0.0
  %1859 = vmatpush1.msra.mxu0 0.0
  %1860 = vmatprep.subr.mxu0 0.0
  %1861 = vmatpush1.msra.mxu0 0.0
  %1862 = vmatprep.subr.mxu0 0.0
  %1863 = vmatpush1.msra.mxu0 0.0
  %1864 = vmatprep.mubr.f32.mxu0 0.0
  %v1865 = vand.u32 %v1459, 4294901760
  %1866 = vmatmul.mubr.f32.gmra.mrb[0].mxu0 %v1865
  %v1867 = vpop.f32.mrb[0].mxu0
  %v1868 = vadd.f32 %v1785, %v1867
  %v1869 = vpop.f32.mrb[0].mxu0
  %1870 = vdwg.mxu0
  %1871 = vmatprep.subr.mxu0 0.0
  %v1872 = vand.u32 %v929, 4294901760
  %1873 = vmatpush1.msra.mxu0 %v1872
  %1874 = vmatprep.subr.mxu0 0.0
  %v1875 = vand.u32 %v930, 4294901760
  %1876 = vmatpush1.msra.mxu0 %v1875
  %1877 = vmatprep.subr.mxu0 0.0
  %v1878 = vand.u32 %v931, 4294901760
  %1879 = vmatpush1.msra.mxu0 %v1878
  %1880 = vmatprep.subr.mxu0 0.0
  %v1881 = vand.u32 %v932, 4294901760
  %1882 = vmatpush1.msra.mxu0 %v1881
  %1883 = vmatprep.subr.mxu0 0.0
  %1884 = vmatpush1.msra.mxu0 0.0
  %1885 = vmatprep.subr.mxu0 0.0
  %1886 = vmatpush1.msra.mxu0 0.0
  %1887 = vmatprep.subr.mxu0 0.0
  %1888 = vmatpush1.msra.mxu0 0.0
  %1889 = vmatprep.subr.mxu0 0.0
  %1890 = vmatpush1.msra.mxu0 0.0
  %1891 = vmatprep.subr.mxu0 0.0
  %1892 = vmatpush1.msra.mxu0 0.0
  %1893 = vmatprep.subr.mxu0 0.0
  %1894 = vmatpush1.msra.mxu0 0.0
  %1895 = vmatprep.subr.mxu0 0.0
  %1896 = vmatpush1.msra.mxu0 0.0
  %1897 = vmatprep.subr.mxu0 0.0
  %1898 = vmatpush1.msra.mxu0 0.0
  %1899 = vmatprep.subr.mxu0 0.0
  %1900 = vmatpush1.msra.mxu0 0.0
  %1901 = vmatprep.subr.mxu0 0.0
  %1902 = vmatpush1.msra.mxu0 0.0
  %1903 = vmatprep.subr.mxu0 0.0
  %1904 = vmatpush1.msra.mxu0 0.0
  %1905 = vmatprep.subr.mxu0 0.0
  %1906 = vmatpush1.msra.mxu0 0.0
  %1907 = vmatprep.subr.mxu0 0.0
  %1908 = vmatpush1.msra.mxu0 0.0
  %1909 = vmatprep.subr.mxu0 0.0
  %1910 = vmatpush1.msra.mxu0 0.0
  %1911 = vmatprep.subr.mxu0 0.0
  %1912 = vmatpush1.msra.mxu0 0.0
  %1913 = vmatprep.subr.mxu0 0.0
  %1914 = vmatpush1.msra.mxu0 0.0
  %1915 = vmatprep.subr.mxu0 0.0
  %1916 = vmatpush1.msra.mxu0 0.0
  %1917 = vmatprep.subr.mxu0 0.0
  %1918 = vmatpush1.msra.mxu0 0.0
  %1919 = vmatprep.subr.mxu0 0.0
  %1920 = vmatpush1.msra.mxu0 0.0
  %1921 = vmatprep.subr.mxu0 0.0
  %1922 = vmatpush1.msra.mxu0 0.0
  %1923 = vmatprep.subr.mxu0 0.0
  %1924 = vmatpush1.msra.mxu0 0.0
  %1925 = vmatprep.subr.mxu0 0.0
  %1926 = vmatpush1.msra.mxu0 0.0
  %1927 = vmatprep.subr.mxu0 0.0
  %1928 = vmatpush1.msra.mxu0 0.0
  %1929 = vmatprep.subr.mxu0 0.0
  %1930 = vmatpush1.msra.mxu0 0.0
  %1931 = vmatprep.subr.mxu0 0.0
  %1932 = vmatpush1.msra.mxu0 0.0
  %1933 = vmatprep.subr.mxu0 0.0
  %1934 = vmatpush1.msra.mxu0 0.0
  %1935 = vmatprep.subr.mxu0 0.0
  %1936 = vmatpush1.msra.mxu0 0.0
  %1937 = vmatprep.subr.mxu0 0.0
  %1938 = vmatpush1.msra.mxu0 0.0
  %1939 = vmatprep.mubr.f32.mxu0 0.0
  %v1940 = vand.u32 %v1459, 4294901760
  %1941 = vmatmul.mubr.f32.gmra.mrb[0].mxu0 %v1940
  %v1942 = vpop.f32.mrb[0].mxu0
  %v1943 = vadd.f32 %v1868, %v1942
  %v1944 = vpop.f32.mrb[0].mxu0
  %1945 = vdwg.mxu0
  %v1946 = vadd.f32 %v1455, %v1943
  %v1947 = vxor.u32 %v1946, 2147483648
  %v1948 = vmul.f32 %v1947, 1.442695
  %v1949 = vpow.pop %v1948
  %v1950 = vadd.f32 %v1949, 1.0
  %v1951 = vrcp.pop %v1950
  %v1952 = vmul.f32 1.0, %v1951
  %v1953 = vtanh.pop %v1946
  %v1954 = vmul.f32 %v1952, %v1447
  %1956 = vrot.lane.b32.xlu0 %v1953, 64
  %v1957 = vpop.permute.xlu0 %1956
  %v1959 = vmul.f32 %v1952, %v1957
  %1961 = vrot.lane.b32.xlu0 %v1959, 32
  %v1962 = vpop.permute.xlu0 %1961
  %v1964 = vadd.f32 %v1954, %v1962
  %v1965 = vtanh.pop %v1964
  %1967 = vrot.lane.b32.xlu0 %v1965, 64
  %v1968 = vpop.permute.xlu0 %1967
  %v1970 = vmul.f32 %v1952, %v1968
  %s1971 = scalar_lea.vmem [#allocation4], 16
  %v1972 = vld [vmem:[%s1971] sm:$0xff]
  %1974 = vrot.lane.b32.xlu0 %v1970, 32
  %v1975 = vpop.permute.xlu0 %1974
  %v1976 = vsel %vm936, %v1975, 0
  %1978 = vmatprep.subr.mxu0 0.0
  %v1979 = vand.u32 %v929, 4294901760
  %1980 = vmatpush1.msra.mxu0 %v1979
  %1981 = vmatprep.subr.mxu0 0.0
  %v1982 = vand.u32 %v930, 4294901760
  %1983 = vmatpush1.msra.mxu0 %v1982
  %1984 = vmatprep.subr.mxu0 0.0
  %v1985 = vand.u32 %v931, 4294901760
  %1986 = vmatpush1.msra.mxu0 %v1985
  %1987 = vmatprep.subr.mxu0 0.0
  %v1988 = vand.u32 %v932, 4294901760
  %1989 = vmatpush1.msra.mxu0 %v1988
  %1990 = vmatprep.subr.mxu0 0.0
  %1991 = vmatpush1.msra.mxu0 0.0
  %1992 = vmatprep.subr.mxu0 0.0
  %1993 = vmatpush1.msra.mxu0 0.0
  %1994 = vmatprep.subr.mxu0 0.0
  %1995 = vmatpush1.msra.mxu0 0.0
  %1996 = vmatprep.subr.mxu0 0.0
  %1997 = vmatpush1.msra.mxu0 0.0
  %1998 = vmatprep.subr.mxu0 0.0
  %1999 = vmatpush1.msra.mxu0 0.0
  %2000 = vmatprep.subr.mxu0 0.0
  %2001 = vmatpush1.msra.mxu0 0.0
  %2002 = vmatprep.subr.mxu0 0.0
  %2003 = vmatpush1.msra.mxu0 0.0
  %2004 = vmatprep.subr.mxu0 0.0
  %2005 = vmatpush1.msra.mxu0 0.0
  %2006 = vmatprep.subr.mxu0 0.0
  %2007 = vmatpush1.msra.mxu0 0.0
  %2008 = vmatprep.subr.mxu0 0.0
  %2009 = vmatpush1.msra.mxu0 0.0
  %2010 = vmatprep.subr.mxu0 0.0
  %2011 = vmatpush1.msra.mxu0 0.0
  %2012 = vmatprep.subr.mxu0 0.0
  %2013 = vmatpush1.msra.mxu0 0.0
  %2014 = vmatprep.subr.mxu0 0.0
  %2015 = vmatpush1.msra.mxu0 0.0
  %2016 = vmatprep.subr.mxu0 0.0
  %2017 = vmatpush1.msra.mxu0 0.0
  %2018 = vmatprep.subr.mxu0 0.0
  %2019 = vmatpush1.msra.mxu0 0.0
  %2020 = vmatprep.subr.mxu0 0.0
  %2021 = vmatpush1.msra.mxu0 0.0
  %2022 = vmatprep.subr.mxu0 0.0
  %2023 = vmatpush1.msra.mxu0 0.0
  %2024 = vmatprep.subr.mxu0 0.0
  %2025 = vmatpush1.msra.mxu0 0.0
  %2026 = vmatprep.subr.mxu0 0.0
  %2027 = vmatpush1.msra.mxu0 0.0
  %2028 = vmatprep.subr.mxu0 0.0
  %2029 = vmatpush1.msra.mxu0 0.0
  %2030 = vmatprep.subr.mxu0 0.0
  %2031 = vmatpush1.msra.mxu0 0.0
  %2032 = vmatprep.subr.mxu0 0.0
  %2033 = vmatpush1.msra.mxu0 0.0
  %2034 = vmatprep.subr.mxu0 0.0
  %2035 = vmatpush1.msra.mxu0 0.0
  %2036 = vmatprep.subr.mxu0 0.0
  %2037 = vmatpush1.msra.mxu0 0.0
  %2038 = vmatprep.subr.mxu0 0.0
  %2039 = vmatpush1.msra.mxu0 0.0
  %2040 = vmatprep.subr.mxu0 0.0
  %2041 = vmatpush1.msra.mxu0 0.0
  %2042 = vmatprep.subr.mxu0 0.0
  %2043 = vmatpush1.msra.mxu0 0.0
  %2044 = vmatprep.subr.mxu0 0.0
  %2045 = vmatpush1.msra.mxu0 0.0
  %2046 = vmatprep.mubr.f32.mxu0 0.0
  %v2047 = vand.u32 %v1976, 4294901760
  %v2048 = vsub.f32 %v1976, %v2047
  %v2049 = vand.u32 %v2048, 4294901760
  %v2050 = vsub.f32 %v2048, %v2049
  %v2051 = vand.u32 %v2050, 4294901760
  %2052 = vmatmul.mubr.f32.gmra.mrb[0].mxu0 %v2051
  %v2053 = vpop.f32.mrb[0].mxu0
  %v2054 = vadd.f32 0.0, %v2053
  %v2055 = vpop.f32.mrb[0].mxu0
  %2056 = vdwg.mxu0
  %2057 = vmatprep.subr.mxu0 0.0
  %v2058 = vand.u32 %v929, 4294901760
  %v2059 = vsub.f32 %v929, %v2058
  %v2060 = vand.u32 %v2059, 4294901760
  %v2061 = vsub.f32 %v2059, %v2060
  %v2062 = vand.u32 %v2061, 4294901760
  %2063 = vmatpush1.msra.mxu0 %v2062
  %2064 = vmatprep.subr.mxu0 0.0
  %v2065 = vand.u32 %v930, 4294901760
  %v2066 = vsub.f32 %v930, %v2065
  %v2067 = vand.u32 %v2066, 4294901760
  %v2068 = vsub.f32 %v2066, %v2067
  %v2069 = vand.u32 %v2068, 4294901760
  %2070 = vmatpush1.msra.mxu0 %v2069
  %2071 = vmatprep.subr.mxu0 0.0
  %v2072 = vand.u32 %v931, 4294901760
  %v2073 = vsub.f32 %v931, %v2072
  %v2074 = vand.u32 %v2073, 4294901760
  %v2075 = vsub.f32 %v2073, %v2074
  %v2076 = vand.u32 %v2075, 4294901760
  %2077 = vmatpush1.msra.mxu0 %v2076
  %2078 = vmatprep.subr.mxu0 0.0
  %v2079 = vand.u32 %v932, 4294901760
  %v2080 = vsub.f32 %v932, %v2079
  %v2081 = vand.u32 %v2080, 4294901760
  %v2082 = vsub.f32 %v2080, %v2081
  %v2083 = vand.u32 %v2082, 4294901760
  %2084 = vmatpush1.msra.mxu0 %v2083
  %2085 = vmatprep.subr.mxu0 0.0
  %2086 = vmatpush1.msra.mxu0 0.0
  %2087 = vmatprep.subr.mxu0 0.0
  %2088 = vmatpush1.msra.mxu0 0.0
  %2089 = vmatprep.subr.mxu0 0.0
  %2090 = vmatpush1.msra.mxu0 0.0
  %2091 = vmatprep.subr.mxu0 0.0
  %2092 = vmatpush1.msra.mxu0 0.0
  %2093 = vmatprep.subr.mxu0 0.0
  %2094 = vmatpush1.msra.mxu0 0.0
  %2095 = vmatprep.subr.mxu0 0.0
  %2096 = vmatpush1.msra.mxu0 0.0
  %2097 = vmatprep.subr.mxu0 0.0
  %2098 = vmatpush1.msra.mxu0 0.0
  %2099 = vmatprep.subr.mxu0 0.0
  %2100 = vmatpush1.msra.mxu0 0.0
  %2101 = vmatprep.subr.mxu0 0.0
  %2102 = vmatpush1.msra.mxu0 0.0
  %2103 = vmatprep.subr.mxu0 0.0
  %2104 = vmatpush1.msra.mxu0 0.0
  %2105 = vmatprep.subr.mxu0 0.0
  %2106 = vmatpush1.msra.mxu0 0.0
  %2107 = vmatprep.subr.mxu0 0.0
  %2108 = vmatpush1.msra.mxu0 0.0
  %2109 = vmatprep.subr.mxu0 0.0
  %2110 = vmatpush1.msra.mxu0 0.0
  %2111 = vmatprep.subr.mxu0 0.0
  %2112 = vmatpush1.msra.mxu0 0.0
  %2113 = vmatprep.subr.mxu0 0.0
  %2114 = vmatpush1.msra.mxu0 0.0
  %2115 = vmatprep.subr.mxu0 0.0
  %2116 = vmatpush1.msra.mxu0 0.0
  %2117 = vmatprep.subr.mxu0 0.0
  %2118 = vmatpush1.msra.mxu0 0.0
  %2119 = vmatprep.subr.mxu0 0.0
  %2120 = vmatpush1.msra.mxu0 0.0
  %2121 = vmatprep.subr.mxu0 0.0
  %2122 = vmatpush1.msra.mxu0 0.0
  %2123 = vmatprep.subr.mxu0 0.0
  %2124 = vmatpush1.msra.mxu0 0.0
  %2125 = vmatprep.subr.mxu0 0.0
  %2126 = vmatpush1.msra.mxu0 0.0
  %2127 = vmatprep.subr.mxu0 0.0
  %2128 = vmatpush1.msra.mxu0 0.0
  %2129 = vmatprep.subr.mxu0 0.0
  %2130 = vmatpush1.msra.mxu0 0.0
  %2131 = vmatprep.subr.mxu0 0.0
  %2132 = vmatpush1.msra.mxu0 0.0
  %2133 = vmatprep.subr.mxu0 0.0
  %2134 = vmatpush1.msra.mxu0 0.0
  %2135 = vmatprep.subr.mxu0 0.0
  %2136 = vmatpush1.msra.mxu0 0.0
  %2137 = vmatprep.subr.mxu0 0.0
  %2138 = vmatpush1.msra.mxu0 0.0
  %2139 = vmatprep.subr.mxu0 0.0
  %2140 = vmatpush1.msra.mxu0 0.0
  %2141 = vmatprep.mubr.f32.mxu0 0.0
  %v2142 = vand.u32 %v1976, 4294901760
  %2143 = vmatmul.mubr.f32.gmra.mrb[0].mxu0 %v2142
  %v2144 = vpop.f32.mrb[0].mxu0
  %v2145 = vadd.f32 %v2054, %v2144
  %v2146 = vpop.f32.mrb[0].mxu0
  %2147 = vdwg.mxu0
  %2148 = vmatprep.subr.mxu0 0.0
  %v2149 = vand.u32 %v929, 4294901760
  %v2150 = vsub.f32 %v929, %v2149
  %2151 = vmatpush1.msra.mxu0 %v2150
  %2152 = vmatprep.subr.mxu0 0.0
  %v2153 = vand.u32 %v930, 4294901760
  %v2154 = vsub.f32 %v930, %v2153
  %2155 = vmatpush1.msra.mxu0 %v2154
  %2156 = vmatprep.subr.mxu0 0.0
  %v2157 = vand.u32 %v931, 4294901760
  %v2158 = vsub.f32 %v931, %v2157
  %2159 = vmatpush1.msra.mxu0 %v2158
  %2160 = vmatprep.subr.mxu0 0.0
  %v2161 = vand.u32 %v932, 4294901760
  %v2162 = vsub.f32 %v932, %v2161
  %2163 = vmatpush1.msra.mxu0 %v2162
  %2164 = vmatprep.subr.mxu0 0.0
  %2165 = vmatpush1.msra.mxu0 0.0
  %2166 = vmatprep.subr.mxu0 0.0
  %2167 = vmatpush1.msra.mxu0 0.0
  %2168 = vmatprep.subr.mxu0 0.0
  %2169 = vmatpush1.msra.mxu0 0.0
  %2170 = vmatprep.subr.mxu0 0.0
  %2171 = vmatpush1.msra.mxu0 0.0
  %2172 = vmatprep.subr.mxu0 0.0
  %2173 = vmatpush1.msra.mxu0 0.0
  %2174 = vmatprep.subr.mxu0 0.0
  %2175 = vmatpush1.msra.mxu0 0.0
  %2176 = vmatprep.subr.mxu0 0.0
  %2177 = vmatpush1.msra.mxu0 0.0
  %2178 = vmatprep.subr.mxu0 0.0
  %2179 = vmatpush1.msra.mxu0 0.0
  %2180 = vmatprep.subr.mxu0 0.0
  %2181 = vmatpush1.msra.mxu0 0.0
  %2182 = vmatprep.subr.mxu0 0.0
  %2183 = vmatpush1.msra.mxu0 0.0
  %2184 = vmatprep.subr.mxu0 0.0
  %2185 = vmatpush1.msra.mxu0 0.0
  %2186 = vmatprep.subr.mxu0 0.0
  %2187 = vmatpush1.msra.mxu0 0.0
  %2188 = vmatprep.subr.mxu0 0.0
  %2189 = vmatpush1.msra.mxu0 0.0
  %2190 = vmatprep.subr.mxu0 0.0
  %2191 = vmatpush1.msra.mxu0 0.0
  %2192 = vmatprep.subr.mxu0 0.0
  %2193 = vmatpush1.msra.mxu0 0.0
  %2194 = vmatprep.subr.mxu0 0.0
  %2195 = vmatpush1.msra.mxu0 0.0
  %2196 = vmatprep.subr.mxu0 0.0
  %2197 = vmatpush1.msra.mxu0 0.0
  %2198 = vmatprep.subr.mxu0 0.0
  %2199 = vmatpush1.msra.mxu0 0.0
  %2200 = vmatprep.subr.mxu0 0.0
  %2201 = vmatpush1.msra.mxu0 0.0
  %2202 = vmatprep.subr.mxu0 0.0
  %2203 = vmatpush1.msra.mxu0 0.0
  %2204 = vmatprep.subr.mxu0 0.0
  %2205 = vmatpush1.msra.mxu0 0.0
  %2206 = vmatprep.subr.mxu0 0.0
  %2207 = vmatpush1.msra.mxu0 0.0
  %2208 = vmatprep.subr.mxu0 0.0
  %2209 = vmatpush1.msra.mxu0 0.0
  %2210 = vmatprep.subr.mxu0 0.0
  %2211 = vmatpush1.msra.mxu0 0.0
  %2212 = vmatprep.subr.mxu0 0.0
  %2213 = vmatpush1.msra.mxu0 0.0
  %2214 = vmatprep.subr.mxu0 0.0
  %2215 = vmatpush1.msra.mxu0 0.0
  %2216 = vmatprep.subr.mxu0 0.0
  %2217 = vmatpush1.msra.mxu0 0.0
  %2218 = vmatprep.subr.mxu0 0.0
  %2219 = vmatpush1.msra.mxu0 0.0
  %2220 = vmatprep.mubr.f32.mxu0 0.0
  %v2221 = vand.u32 %v1976, 4294901760
  %v2222 = vsub.f32 %v1976, %v2221
  %2223 = vmatmul.mubr.f32.gmra.mrb[0].mxu0 %v2222
  %v2224 = vpop.f32.mrb[0].mxu0
  %v2225 = vadd.f32 %v2145, %v2224
  %v2226 = vpop.f32.mrb[0].mxu0
  %2227 = vdwg.mxu0
  %2228 = vmatprep.subr.mxu0 0.0
  %v2229 = vand.u32 %v929, 4294901760
  %2230 = vmatpush1.msra.mxu0 %v2229
  %2231 = vmatprep.subr.mxu0 0.0
  %v2232 = vand.u32 %v930, 4294901760
  %2233 = vmatpush1.msra.mxu0 %v2232
  %2234 = vmatprep.subr.mxu0 0.0
  %v2235 = vand.u32 %v931, 4294901760
  %2236 = vmatpush1.msra.mxu0 %v2235
  %2237 = vmatprep.subr.mxu0 0.0
  %v2238 = vand.u32 %v932, 4294901760
  %2239 = vmatpush1.msra.mxu0 %v2238
  %2240 = vmatprep.subr.mxu0 0.0
  %2241 = vmatpush1.msra.mxu0 0.0
  %2242 = vmatprep.subr.mxu0 0.0
  %2243 = vmatpush1.msra.mxu0 0.0
  %2244 = vmatprep.subr.mxu0 0.0
  %2245 = vmatpush1.msra.mxu0 0.0
  %2246 = vmatprep.subr.mxu0 0.0
  %2247 = vmatpush1.msra.mxu0 0.0
  %2248 = vmatprep.subr.mxu0 0.0
  %2249 = vmatpush1.msra.mxu0 0.0
  %2250 = vmatprep.subr.mxu0 0.0
  %2251 = vmatpush1.msra.mxu0 0.0
  %2252 = vmatprep.subr.mxu0 0.0
  %2253 = vmatpush1.msra.mxu0 0.0
  %2254 = vmatprep.subr.mxu0 0.0
  %2255 = vmatpush1.msra.mxu0 0.0
  %2256 = vmatprep.subr.mxu0 0.0
  %2257 = vmatpush1.msra.mxu0 0.0
  %2258 = vmatprep.subr.mxu0 0.0
  %2259 = vmatpush1.msra.mxu0 0.0
  %2260 = vmatprep.subr.mxu0 0.0
  %2261 = vmatpush1.msra.mxu0 0.0
  %2262 = vmatprep.subr.mxu0 0.0
  %2263 = vmatpush1.msra.mxu0 0.0
  %2264 = vmatprep.subr.mxu0 0.0
  %2265 = vmatpush1.msra.mxu0 0.0
  %2266 = vmatprep.subr.mxu0 0.0
  %2267 = vmatpush1.msra.mxu0 0.0
  %2268 = vmatprep.subr.mxu0 0.0
  %2269 = vmatpush1.msra.mxu0 0.0
  %2270 = vmatprep.subr.mxu0 0.0
  %2271 = vmatpush1.msra.mxu0 0.0
  %2272 = vmatprep.subr.mxu0 0.0
  %2273 = vmatpush1.msra.mxu0 0.0
  %2274 = vmatprep.subr.mxu0 0.0
  %2275 = vmatpush1.msra.mxu0 0.0
  %2276 = vmatprep.subr.mxu0 0.0
  %2277 = vmatpush1.msra.mxu0 0.0
  %2278 = vmatprep.subr.mxu0 0.0
  %2279 = vmatpush1.msra.mxu0 0.0
  %2280 = vmatprep.subr.mxu0 0.0
  %2281 = vmatpush1.msra.mxu0 0.0
  %2282 = vmatprep.subr.mxu0 0.0
  %2283 = vmatpush1.msra.mxu0 0.0
  %2284 = vmatprep.subr.mxu0 0.0
  %2285 = vmatpush1.msra.mxu0 0.0
  %2286 = vmatprep.subr.mxu0 0.0
  %2287 = vmatpush1.msra.mxu0 0.0
  %2288 = vmatprep.subr.mxu0 0.0
  %2289 = vmatpush1.msra.mxu0 0.0
  %2290 = vmatprep.subr.mxu0 0.0
  %2291 = vmatpush1.msra.mxu0 0.0
  %2292 = vmatprep.subr.mxu0 0.0
  %2293 = vmatpush1.msra.mxu0 0.0
  %2294 = vmatprep.subr.mxu0 0.0
  %2295 = vmatpush1.msra.mxu0 0.0
  %2296 = vmatprep.mubr.f32.mxu0 0.0
  %v2297 = vand.u32 %v1976, 4294901760
  %v2298 = vsub.f32 %v1976, %v2297
  %v2299 = vand.u32 %v2298, 4294901760
  %2300 = vmatmul.mubr.f32.gmra.mrb[0].mxu0 %v2299
  %v2301 = vpop.f32.mrb[0].mxu0
  %v2302 = vadd.f32 %v2225, %v2301
  %v2303 = vpop.f32.mrb[0].mxu0
  %2304 = vdwg.mxu0
  %2305 = vmatprep.subr.mxu0 0.0
  %v2306 = vand.u32 %v929, 4294901760
  %v2307 = vsub.f32 %v929, %v2306
  %v2308 = vand.u32 %v2307, 4294901760
  %2309 = vmatpush1.msra.mxu0 %v2308
  %2310 = vmatprep.subr.mxu0 0.0
  %v2311 = vand.u32 %v930, 4294901760
  %v2312 = vsub.f32 %v930, %v2311
  %v2313 = vand.u32 %v2312, 4294901760
  %2314 = vmatpush1.msra.mxu0 %v2313
  %2315 = vmatprep.subr.mxu0 0.0
  %v2316 = vand.u32 %v931, 4294901760
  %v2317 = vsub.f32 %v931, %v2316
  %v2318 = vand.u32 %v2317, 4294901760
  %2319 = vmatpush1.msra.mxu0 %v2318
  %2320 = vmatprep.subr.mxu0 0.0
  %v2321 = vand.u32 %v932, 4294901760
  %v2322 = vsub.f32 %v932, %v2321
  %v2323 = vand.u32 %v2322, 4294901760
  %2324 = vmatpush1.msra.mxu0 %v2323
  %2325 = vmatprep.subr.mxu0 0.0
  %2326 = vmatpush1.msra.mxu0 0.0
  %2327 = vmatprep.subr.mxu0 0.0
  %2328 = vmatpush1.msra.mxu0 0.0
  %2329 = vmatprep.subr.mxu0 0.0
  %2330 = vmatpush1.msra.mxu0 0.0
  %2331 = vmatprep.subr.mxu0 0.0
  %2332 = vmatpush1.msra.mxu0 0.0
  %2333 = vmatprep.subr.mxu0 0.0
  %2334 = vmatpush1.msra.mxu0 0.0
  %2335 = vmatprep.subr.mxu0 0.0
  %2336 = vmatpush1.msra.mxu0 0.0
  %2337 = vmatprep.subr.mxu0 0.0
  %2338 = vmatpush1.msra.mxu0 0.0
  %2339 = vmatprep.subr.mxu0 0.0
  %2340 = vmatpush1.msra.mxu0 0.0
  %2341 = vmatprep.subr.mxu0 0.0
  %2342 = vmatpush1.msra.mxu0 0.0
  %2343 = vmatprep.subr.mxu0 0.0
  %2344 = vmatpush1.msra.mxu0 0.0
  %2345 = vmatprep.subr.mxu0 0.0
  %2346 = vmatpush1.msra.mxu0 0.0
  %2347 = vmatprep.subr.mxu0 0.0
  %2348 = vmatpush1.msra.mxu0 0.0
  %2349 = vmatprep.subr.mxu0 0.0
  %2350 = vmatpush1.msra.mxu0 0.0
  %2351 = vmatprep.subr.mxu0 0.0
  %2352 = vmatpush1.msra.mxu0 0.0
  %2353 = vmatprep.subr.mxu0 0.0
  %2354 = vmatpush1.msra.mxu0 0.0
  %2355 = vmatprep.subr.mxu0 0.0
  %2356 = vmatpush1.msra.mxu0 0.0
  %2357 = vmatprep.subr.mxu0 0.0
  %2358 = vmatpush1.msra.mxu0 0.0
  %2359 = vmatprep.subr.mxu0 0.0
  %2360 = vmatpush1.msra.mxu0 0.0
  %2361 = vmatprep.subr.mxu0 0.0
  %2362 = vmatpush1.msra.mxu0 0.0
  %2363 = vmatprep.subr.mxu0 0.0
  %2364 = vmatpush1.msra.mxu0 0.0
  %2365 = vmatprep.subr.mxu0 0.0
  %2366 = vmatpush1.msra.mxu0 0.0
  %2367 = vmatprep.subr.mxu0 0.0
  %2368 = vmatpush1.msra.mxu0 0.0
  %2369 = vmatprep.subr.mxu0 0.0
  %2370 = vmatpush1.msra.mxu0 0.0
  %2371 = vmatprep.subr.mxu0 0.0
  %2372 = vmatpush1.msra.mxu0 0.0
  %2373 = vmatprep.subr.mxu0 0.0
  %2374 = vmatpush1.msra.mxu0 0.0
  %2375 = vmatprep.subr.mxu0 0.0
  %2376 = vmatpush1.msra.mxu0 0.0
  %2377 = vmatprep.subr.mxu0 0.0
  %2378 = vmatpush1.msra.mxu0 0.0
  %2379 = vmatprep.subr.mxu0 0.0
  %2380 = vmatpush1.msra.mxu0 0.0
  %2381 = vmatprep.mubr.f32.mxu0 0.0
  %v2382 = vand.u32 %v1976, 4294901760
  %2383 = vmatmul.mubr.f32.gmra.mrb[0].mxu0 %v2382
  %v2384 = vpop.f32.mrb[0].mxu0
  %v2385 = vadd.f32 %v2302, %v2384
  %v2386 = vpop.f32.mrb[0].mxu0
  %2387 = vdwg.mxu0
  %2388 = vmatprep.subr.mxu0 0.0
  %v2389 = vand.u32 %v929, 4294901760
  %2390 = vmatpush1.msra.mxu0 %v2389
  %2391 = vmatprep.subr.mxu0 0.0
  %v2392 = vand.u32 %v930, 4294901760
  %2393 = vmatpush1.msra.mxu0 %v2392
  %2394 = vmatprep.subr.mxu0 0.0
  %v2395 = vand.u32 %v931, 4294901760
  %2396 = vmatpush1.msra.mxu0 %v2395
  %2397 = vmatprep.subr.mxu0 0.0
  %v2398 = vand.u32 %v932, 4294901760
  %2399 = vmatpush1.msra.mxu0 %v2398
  %2400 = vmatprep.subr.mxu0 0.0
  %2401 = vmatpush1.msra.mxu0 0.0
  %2402 = vmatprep.subr.mxu0 0.0
  %2403 = vmatpush1.msra.mxu0 0.0
  %2404 = vmatprep.subr.mxu0 0.0
  %2405 = vmatpush1.msra.mxu0 0.0
  %2406 = vmatprep.subr.mxu0 0.0
  %2407 = vmatpush1.msra.mxu0 0.0
  %2408 = vmatprep.subr.mxu0 0.0
  %2409 = vmatpush1.msra.mxu0 0.0
  %2410 = vmatprep.subr.mxu0 0.0
  %2411 = vmatpush1.msra.mxu0 0.0
  %2412 = vmatprep.subr.mxu0 0.0
  %2413 = vmatpush1.msra.mxu0 0.0
  %2414 = vmatprep.subr.mxu0 0.0
  %2415 = vmatpush1.msra.mxu0 0.0
  %2416 = vmatprep.subr.mxu0 0.0
  %2417 = vmatpush1.msra.mxu0 0.0
  %2418 = vmatprep.subr.mxu0 0.0
  %2419 = vmatpush1.msra.mxu0 0.0
  %2420 = vmatprep.subr.mxu0 0.0
  %2421 = vmatpush1.msra.mxu0 0.0
  %2422 = vmatprep.subr.mxu0 0.0
  %2423 = vmatpush1.msra.mxu0 0.0
  %2424 = vmatprep.subr.mxu0 0.0
  %2425 = vmatpush1.msra.mxu0 0.0
  %2426 = vmatprep.subr.mxu0 0.0
  %2427 = vmatpush1.msra.mxu0 0.0
  %2428 = vmatprep.subr.mxu0 0.0
  %2429 = vmatpush1.msra.mxu0 0.0
  %2430 = vmatprep.subr.mxu0 0.0
  %2431 = vmatpush1.msra.mxu0 0.0
  %2432 = vmatprep.subr.mxu0 0.0
  %2433 = vmatpush1.msra.mxu0 0.0
  %2434 = vmatprep.subr.mxu0 0.0
  %2435 = vmatpush1.msra.mxu0 0.0
  %2436 = vmatprep.subr.mxu0 0.0
  %2437 = vmatpush1.msra.mxu0 0.0
  %2438 = vmatprep.subr.mxu0 0.0
  %2439 = vmatpush1.msra.mxu0 0.0
  %2440 = vmatprep.subr.mxu0 0.0
  %2441 = vmatpush1.msra.mxu0 0.0
  %2442 = vmatprep.subr.mxu0 0.0
  %2443 = vmatpush1.msra.mxu0 0.0
  %2444 = vmatprep.subr.mxu0 0.0
  %2445 = vmatpush1.msra.mxu0 0.0
  %2446 = vmatprep.subr.mxu0 0.0
  %2447 = vmatpush1.msra.mxu0 0.0
  %2448 = vmatprep.subr.mxu0 0.0
  %2449 = vmatpush1.msra.mxu0 0.0
  %2450 = vmatprep.subr.mxu0 0.0
  %2451 = vmatpush1.msra.mxu0 0.0
  %2452 = vmatprep.subr.mxu0 0.0
  %2453 = vmatpush1.msra.mxu0 0.0
  %2454 = vmatprep.subr.mxu0 0.0
  %2455 = vmatpush1.msra.mxu0 0.0
  %2456 = vmatprep.mubr.f32.mxu0 0.0
  %v2457 = vand.u32 %v1976, 4294901760
  %2458 = vmatmul.mubr.f32.gmra.mrb[0].mxu0 %v2457
  %v2459 = vpop.f32.mrb[0].mxu0
  %v2460 = vadd.f32 %v2385, %v2459
  %v2461 = vpop.f32.mrb[0].mxu0
  %2462 = vdwg.mxu0
  %v2463 = vadd.f32 %v1972, %v2460
  %v2464 = vxor.u32 %v2463, 2147483648
  %v2465 = vmul.f32 %v2464, 1.442695
  %v2466 = vpow.pop %v2465
  %v2467 = vadd.f32 %v2466, 1.0
  %v2468 = vrcp.pop %v2467
  %v2469 = vmul.f32 1.0, %v2468
  %v2470 = vtanh.pop %v2463
  %v2471 = vmul.f32 %v2469, %v1964
  %2473 = vrot.lane.b32.xlu0 %v2470, 64
  %v2474 = vpop.permute.xlu0 %2473
  %v2476 = vmul.f32 %v2469, %v2474
  %2478 = vrot.lane.b32.xlu0 %v2476, 32
  %v2479 = vpop.permute.xlu0 %2478
  %v2481 = vadd.f32 %v2471, %v2479
  %v2482 = vtanh.pop %v2481
  %2484 = vrot.lane.b32.xlu0 %v2482, 64
  %v2485 = vpop.permute.xlu0 %2484
  %v2487 = vmul.f32 %v2469, %v2485
  %s2488 = scalar_lea.vmem [#allocation4], 24
  %v2489 = vld [vmem:[%s2488] sm:$0xff]
  %2491 = vrot.lane.b32.xlu0 %v2487, 32
  %v2492 = vpop.permute.xlu0 %2491
  %v2493 = vsel %vm936, %v2492, 0
  %2495 = vmatprep.subr.mxu0 0.0
  %v2496 = vand.u32 %v929, 4294901760
  %2497 = vmatpush1.msra.mxu0 %v2496
  %2498 = vmatprep.subr.mxu0 0.0
  %v2499 = vand.u32 %v930, 4294901760
  %2500 = vmatpush1.msra.mxu0 %v2499
  %2501 = vmatprep.subr.mxu0 0.0
  %v2502 = vand.u32 %v931, 4294901760
  %2503 = vmatpush1.msra.mxu0 %v2502
  %2504 = vmatprep.subr.mxu0 0.0
  %v2505 = vand.u32 %v932, 4294901760
  %2506 = vmatpush1.msra.mxu0 %v2505
  %2507 = vmatprep.subr.mxu0 0.0
  %2508 = vmatpush1.msra.mxu0 0.0
  %2509 = vmatprep.subr.mxu0 0.0
  %2510 = vmatpush1.msra.mxu0 0.0
  %2511 = vmatprep.subr.mxu0 0.0
  %2512 = vmatpush1.msra.mxu0 0.0
  %2513 = vmatprep.subr.mxu0 0.0
  %2514 = vmatpush1.msra.mxu0 0.0
  %2515 = vmatprep.subr.mxu0 0.0
  %2516 = vmatpush1.msra.mxu0 0.0
  %2517 = vmatprep.subr.mxu0 0.0
  %2518 = vmatpush1.msra.mxu0 0.0
  %2519 = vmatprep.subr.mxu0 0.0
  %2520 = vmatpush1.msra.mxu0 0.0
  %2521 = vmatprep.subr.mxu0 0.0
  %2522 = vmatpush1.msra.mxu0 0.0
  %2523 = vmatprep.subr.mxu0 0.0
  %2524 = vmatpush1.msra.mxu0 0.0
  %2525 = vmatprep.subr.mxu0 0.0
  %2526 = vmatpush1.msra.mxu0 0.0
  %2527 = vmatprep.subr.mxu0 0.0
  %2528 = vmatpush1.msra.mxu0 0.0
  %2529 = vmatprep.subr.mxu0 0.0
  %2530 = vmatpush1.msra.mxu0 0.0
  %2531 = vmatprep.subr.mxu0 0.0
  %2532 = vmatpush1.msra.mxu0 0.0
  %2533 = vmatprep.subr.mxu0 0.0
  %2534 = vmatpush1.msra.mxu0 0.0
  %2535 = vmatprep.subr.mxu0 0.0
  %2536 = vmatpush1.msra.mxu0 0.0
  %2537 = vmatprep.subr.mxu0 0.0
  %2538 = vmatpush1.msra.mxu0 0.0
  %2539 = vmatprep.subr.mxu0 0.0
  %2540 = vmatpush1.msra.mxu0 0.0
  %2541 = vmatprep.subr.mxu0 0.0
  %2542 = vmatpush1.msra.mxu0 0.0
  %2543 = vmatprep.subr.mxu0 0.0
  %2544 = vmatpush1.msra.mxu0 0.0
  %2545 = vmatprep.subr.mxu0 0.0
  %2546 = vmatpush1.msra.mxu0 0.0
  %2547 = vmatprep.subr.mxu0 0.0
  %2548 = vmatpush1.msra.mxu0 0.0
  %2549 = vmatprep.subr.mxu0 0.0
  %2550 = vmatpush1.msra.mxu0 0.0
  %2551 = vmatprep.subr.mxu0 0.0
  %2552 = vmatpush1.msra.mxu0 0.0
  %2553 = vmatprep.subr.mxu0 0.0
  %2554 = vmatpush1.msra.mxu0 0.0
  %2555 = vmatprep.subr.mxu0 0.0
  %2556 = vmatpush1.msra.mxu0 0.0
  %2557 = vmatprep.subr.mxu0 0.0
  %2558 = vmatpush1.msra.mxu0 0.0
  %2559 = vmatprep.subr.mxu0 0.0
  %2560 = vmatpush1.msra.mxu0 0.0
  %2561 = vmatprep.subr.mxu0 0.0
  %2562 = vmatpush1.msra.mxu0 0.0
  %2563 = vmatprep.mubr.f32.mxu0 0.0
  %v2564 = vand.u32 %v2493, 4294901760
  %v2565 = vsub.f32 %v2493, %v2564
  %v2566 = vand.u32 %v2565, 4294901760
  %v2567 = vsub.f32 %v2565, %v2566
  %v2568 = vand.u32 %v2567, 4294901760
  %2569 = vmatmul.mubr.f32.gmra.mrb[0].mxu0 %v2568
  %v2570 = vpop.f32.mrb[0].mxu0
  %v2571 = vadd.f32 0.0, %v2570
  %v2572 = vpop.f32.mrb[0].mxu0
  %2573 = vdwg.mxu0
  %2574 = vmatprep.subr.mxu0 0.0
  %v2575 = vand.u32 %v929, 4294901760
  %v2576 = vsub.f32 %v929, %v2575
  %v2577 = vand.u32 %v2576, 4294901760
  %v2578 = vsub.f32 %v2576, %v2577
  %v2579 = vand.u32 %v2578, 4294901760
  %2580 = vmatpush1.msra.mxu0 %v2579
  %2581 = vmatprep.subr.mxu0 0.0
  %v2582 = vand.u32 %v930, 4294901760
  %v2583 = vsub.f32 %v930, %v2582
  %v2584 = vand.u32 %v2583, 4294901760
  %v2585 = vsub.f32 %v2583, %v2584
  %v2586 = vand.u32 %v2585, 4294901760
  %2587 = vmatpush1.msra.mxu0 %v2586
  %2588 = vmatprep.subr.mxu0 0.0
  %v2589 = vand.u32 %v931, 4294901760
  %v2590 = vsub.f32 %v931, %v2589
  %v2591 = vand.u32 %v2590, 4294901760
  %v2592 = vsub.f32 %v2590, %v2591
  %v2593 = vand.u32 %v2592, 4294901760
  %2594 = vmatpush1.msra.mxu0 %v2593
  %2595 = vmatprep.subr.mxu0 0.0
  %v2596 = vand.u32 %v932, 4294901760
  %v2597 = vsub.f32 %v932, %v2596
  %v2598 = vand.u32 %v2597, 4294901760
  %v2599 = vsub.f32 %v2597, %v2598
  %v2600 = vand.u32 %v2599, 4294901760
  %2601 = vmatpush1.msra.mxu0 %v2600
  %2602 = vmatprep.subr.mxu0 0.0
  %2603 = vmatpush1.msra.mxu0 0.0
  %2604 = vmatprep.subr.mxu0 0.0
  %2605 = vmatpush1.msra.mxu0 0.0
  %2606 = vmatprep.subr.mxu0 0.0
  %2607 = vmatpush1.msra.mxu0 0.0
  %2608 = vmatprep.subr.mxu0 0.0
  %2609 = vmatpush1.msra.mxu0 0.0
  %2610 = vmatprep.subr.mxu0 0.0
  %2611 = vmatpush1.msra.mxu0 0.0
  %2612 = vmatprep.subr.mxu0 0.0
  %2613 = vmatpush1.msra.mxu0 0.0
  %2614 = vmatprep.subr.mxu0 0.0
  %2615 = vmatpush1.msra.mxu0 0.0
  %2616 = vmatprep.subr.mxu0 0.0
  %2617 = vmatpush1.msra.mxu0 0.0
  %2618 = vmatprep.subr.mxu0 0.0
  %2619 = vmatpush1.msra.mxu0 0.0
  %2620 = vmatprep.subr.mxu0 0.0
  %2621 = vmatpush1.msra.mxu0 0.0
  %2622 = vmatprep.subr.mxu0 0.0
  %2623 = vmatpush1.msra.mxu0 0.0
  %2624 = vmatprep.subr.mxu0 0.0
  %2625 = vmatpush1.msra.mxu0 0.0
  %2626 = vmatprep.subr.mxu0 0.0
  %2627 = vmatpush1.msra.mxu0 0.0
  %2628 = vmatprep.subr.mxu0 0.0
  %2629 = vmatpush1.msra.mxu0 0.0
  %2630 = vmatprep.subr.mxu0 0.0
  %2631 = vmatpush1.msra.mxu0 0.0
  %2632 = vmatprep.subr.mxu0 0.0
  %2633 = vmatpush1.msra.mxu0 0.0
  %2634 = vmatprep.subr.mxu0 0.0
  %2635 = vmatpush1.msra.mxu0 0.0
  %2636 = vmatprep.subr.mxu0 0.0
  %2637 = vmatpush1.msra.mxu0 0.0
  %2638 = vmatprep.subr.mxu0 0.0
  %2639 = vmatpush1.msra.mxu0 0.0
  %2640 = vmatprep.subr.mxu0 0.0
  %2641 = vmatpush1.msra.mxu0 0.0
  %2642 = vmatprep.subr.mxu0 0.0
  %2643 = vmatpush1.msra.mxu0 0.0
  %2644 = vmatprep.subr.mxu0 0.0
  %2645 = vmatpush1.msra.mxu0 0.0
  %2646 = vmatprep.subr.mxu0 0.0
  %2647 = vmatpush1.msra.mxu0 0.0
  %2648 = vmatprep.subr.mxu0 0.0
  %2649 = vmatpush1.msra.mxu0 0.0
  %2650 = vmatprep.subr.mxu0 0.0
  %2651 = vmatpush1.msra.mxu0 0.0
  %2652 = vmatprep.subr.mxu0 0.0
  %2653 = vmatpush1.msra.mxu0 0.0
  %2654 = vmatprep.subr.mxu0 0.0
  %2655 = vmatpush1.msra.mxu0 0.0
  %2656 = vmatprep.subr.mxu0 0.0
  %2657 = vmatpush1.msra.mxu0 0.0
  %2658 = vmatprep.mubr.f32.mxu0 0.0
  %v2659 = vand.u32 %v2493, 4294901760
  %2660 = vmatmul.mubr.f32.gmra.mrb[0].mxu0 %v2659
  %v2661 = vpop.f32.mrb[0].mxu0
  %v2662 = vadd.f32 %v2571, %v2661
  %v2663 = vpop.f32.mrb[0].mxu0
  %2664 = vdwg.mxu0
  %2665 = vmatprep.subr.mxu0 0.0
  %v2666 = vand.u32 %v929, 4294901760
  %v2667 = vsub.f32 %v929, %v2666
  %2668 = vmatpush1.msra.mxu0 %v2667
  %2669 = vmatprep.subr.mxu0 0.0
  %v2670 = vand.u32 %v930, 4294901760
  %v2671 = vsub.f32 %v930, %v2670
  %2672 = vmatpush1.msra.mxu0 %v2671
  %2673 = vmatprep.subr.mxu0 0.0
  %v2674 = vand.u32 %v931, 4294901760
  %v2675 = vsub.f32 %v931, %v2674
  %2676 = vmatpush1.msra.mxu0 %v2675
  %2677 = vmatprep.subr.mxu0 0.0
  %v2678 = vand.u32 %v932, 4294901760
  %v2679 = vsub.f32 %v932, %v2678
  %2680 = vmatpush1.msra.mxu0 %v2679
  %2681 = vmatprep.subr.mxu0 0.0
  %2682 = vmatpush1.msra.mxu0 0.0
  %2683 = vmatprep.subr.mxu0 0.0
  %2684 = vmatpush1.msra.mxu0 0.0
  %2685 = vmatprep.subr.mxu0 0.0
  %2686 = vmatpush1.msra.mxu0 0.0
  %2687 = vmatprep.subr.mxu0 0.0
  %2688 = vmatpush1.msra.mxu0 0.0
  %2689 = vmatprep.subr.mxu0 0.0
  %2690 = vmatpush1.msra.mxu0 0.0
  %2691 = vmatprep.subr.mxu0 0.0
  %2692 = vmatpush1.msra.mxu0 0.0
  %2693 = vmatprep.subr.mxu0 0.0
  %2694 = vmatpush1.msra.mxu0 0.0
  %2695 = vmatprep.subr.mxu0 0.0
  %2696 = vmatpush1.msra.mxu0 0.0
  %2697 = vmatprep.subr.mxu0 0.0
  %2698 = vmatpush1.msra.mxu0 0.0
  %2699 = vmatprep.subr.mxu0 0.0
  %2700 = vmatpush1.msra.mxu0 0.0
  %2701 = vmatprep.subr.mxu0 0.0
  %2702 = vmatpush1.msra.mxu0 0.0
  %2703 = vmatprep.subr.mxu0 0.0
  %2704 = vmatpush1.msra.mxu0 0.0
  %2705 = vmatprep.subr.mxu0 0.0
  %2706 = vmatpush1.msra.mxu0 0.0
  %2707 = vmatprep.subr.mxu0 0.0
  %2708 = vmatpush1.msra.mxu0 0.0
  %2709 = vmatprep.subr.mxu0 0.0
  %2710 = vmatpush1.msra.mxu0 0.0
  %2711 = vmatprep.subr.mxu0 0.0
  %2712 = vmatpush1.msra.mxu0 0.0
  %2713 = vmatprep.subr.mxu0 0.0
  %2714 = vmatpush1.msra.mxu0 0.0
  %2715 = vmatprep.subr.mxu0 0.0
  %2716 = vmatpush1.msra.mxu0 0.0
  %2717 = vmatprep.subr.mxu0 0.0
  %2718 = vmatpush1.msra.mxu0 0.0
  %2719 = vmatprep.subr.mxu0 0.0
  %2720 = vmatpush1.msra.mxu0 0.0
  %2721 = vmatprep.subr.mxu0 0.0
  %2722 = vmatpush1.msra.mxu0 0.0
  %2723 = vmatprep.subr.mxu0 0.0
  %2724 = vmatpush1.msra.mxu0 0.0
  %2725 = vmatprep.subr.mxu0 0.0
  %2726 = vmatpush1.msra.mxu0 0.0
  %2727 = vmatprep.subr.mxu0 0.0
  %2728 = vmatpush1.msra.mxu0 0.0
  %2729 = vmatprep.subr.mxu0 0.0
  %2730 = vmatpush1.msra.mxu0 0.0
  %2731 = vmatprep.subr.mxu0 0.0
  %2732 = vmatpush1.msra.mxu0 0.0
  %2733 = vmatprep.subr.mxu0 0.0
  %2734 = vmatpush1.msra.mxu0 0.0
  %2735 = vmatprep.subr.mxu0 0.0
  %2736 = vmatpush1.msra.mxu0 0.0
  %2737 = vmatprep.mubr.f32.mxu0 0.0
  %v2738 = vand.u32 %v2493, 4294901760
  %v2739 = vsub.f32 %v2493, %v2738
  %2740 = vmatmul.mubr.f32.gmra.mrb[0].mxu0 %v2739
  %v2741 = vpop.f32.mrb[0].mxu0
  %v2742 = vadd.f32 %v2662, %v2741
  %v2743 = vpop.f32.mrb[0].mxu0
  %2744 = vdwg.mxu0
  %2745 = vmatprep.subr.mxu0 0.0
  %v2746 = vand.u32 %v929, 4294901760
  %2747 = vmatpush1.msra.mxu0 %v2746
  %2748 = vmatprep.subr.mxu0 0.0
  %v2749 = vand.u32 %v930, 4294901760
  %2750 = vmatpush1.msra.mxu0 %v2749
  %2751 = vmatprep.subr.mxu0 0.0
  %v2752 = vand.u32 %v931, 4294901760
  %2753 = vmatpush1.msra.mxu0 %v2752
  %2754 = vmatprep.subr.mxu0 0.0
  %v2755 = vand.u32 %v932, 4294901760
  %2756 = vmatpush1.msra.mxu0 %v2755
  %2757 = vmatprep.subr.mxu0 0.0
  %2758 = vmatpush1.msra.mxu0 0.0
  %2759 = vmatprep.subr.mxu0 0.0
  %2760 = vmatpush1.msra.mxu0 0.0
  %2761 = vmatprep.subr.mxu0 0.0
  %2762 = vmatpush1.msra.mxu0 0.0
  %2763 = vmatprep.subr.mxu0 0.0
  %2764 = vmatpush1.msra.mxu0 0.0
  %2765 = vmatprep.subr.mxu0 0.0
  %2766 = vmatpush1.msra.mxu0 0.0
  %2767 = vmatprep.subr.mxu0 0.0
  %2768 = vmatpush1.msra.mxu0 0.0
  %2769 = vmatprep.subr.mxu0 0.0
  %2770 = vmatpush1.msra.mxu0 0.0
  %2771 = vmatprep.subr.mxu0 0.0
  %2772 = vmatpush1.msra.mxu0 0.0
  %2773 = vmatprep.subr.mxu0 0.0
  %2774 = vmatpush1.msra.mxu0 0.0
  %2775 = vmatprep.subr.mxu0 0.0
  %2776 = vmatpush1.msra.mxu0 0.0
  %2777 = vmatprep.subr.mxu0 0.0
  %2778 = vmatpush1.msra.mxu0 0.0
  %2779 = vmatprep.subr.mxu0 0.0
  %2780 = vmatpush1.msra.mxu0 0.0
  %2781 = vmatprep.subr.mxu0 0.0
  %2782 = vmatpush1.msra.mxu0 0.0
  %2783 = vmatprep.subr.mxu0 0.0
  %2784 = vmatpush1.msra.mxu0 0.0
  %2785 = vmatprep.subr.mxu0 0.0
  %2786 = vmatpush1.msra.mxu0 0.0
  %2787 = vmatprep.subr.mxu0 0.0
  %2788 = vmatpush1.msra.mxu0 0.0
  %2789 = vmatprep.subr.mxu0 0.0
  %2790 = vmatpush1.msra.mxu0 0.0
  %2791 = vmatprep.subr.mxu0 0.0
  %2792 = vmatpush1.msra.mxu0 0.0
  %2793 = vmatprep.subr.mxu0 0.0
  %2794 = vmatpush1.msra.mxu0 0.0
  %2795 = vmatprep.subr.mxu0 0.0
  %2796 = vmatpush1.msra.mxu0 0.0
  %2797 = vmatprep.subr.mxu0 0.0
  %2798 = vmatpush1.msra.mxu0 0.0
  %2799 = vmatprep.subr.mxu0 0.0
  %2800 = vmatpush1.msra.mxu0 0.0
  %2801 = vmatprep.subr.mxu0 0.0
  %2802 = vmatpush1.msra.mxu0 0.0
  %2803 = vmatprep.subr.mxu0 0.0
  %2804 = vmatpush1.msra.mxu0 0.0
  %2805 = vmatprep.subr.mxu0 0.0
  %2806 = vmatpush1.msra.mxu0 0.0
  %2807 = vmatprep.subr.mxu0 0.0
  %2808 = vmatpush1.msra.mxu0 0.0
  %2809 = vmatprep.subr.mxu0 0.0
  %2810 = vmatpush1.msra.mxu0 0.0
  %2811 = vmatprep.subr.mxu0 0.0
  %2812 = vmatpush1.msra.mxu0 0.0
  %2813 = vmatprep.mubr.f32.mxu0 0.0
  %v2814 = vand.u32 %v2493, 4294901760
  %v2815 = vsub.f32 %v2493, %v2814
  %v2816 = vand.u32 %v2815, 4294901760
  %2817 = vmatmul.mubr.f32.gmra.mrb[0].mxu0 %v2816
  %v2818 = vpop.f32.mrb[0].mxu0
  %v2819 = vadd.f32 %v2742, %v2818
  %v2820 = vpop.f32.mrb[0].mxu0
  %2821 = vdwg.mxu0
  %2822 = vmatprep.subr.mxu0 0.0
  %v2823 = vand.u32 %v929, 4294901760
  %v2824 = vsub.f32 %v929, %v2823
  %v2825 = vand.u32 %v2824, 4294901760
  %2826 = vmatpush1.msra.mxu0 %v2825
  %2827 = vmatprep.subr.mxu0 0.0
  %v2828 = vand.u32 %v930, 4294901760
  %v2829 = vsub.f32 %v930, %v2828
  %v2830 = vand.u32 %v2829, 4294901760
  %2831 = vmatpush1.msra.mxu0 %v2830
  %2832 = vmatprep.subr.mxu0 0.0
  %v2833 = vand.u32 %v931, 4294901760
  %v2834 = vsub.f32 %v931, %v2833
  %v2835 = vand.u32 %v2834, 4294901760
  %2836 = vmatpush1.msra.mxu0 %v2835
  %2837 = vmatprep.subr.mxu0 0.0
  %v2838 = vand.u32 %v932, 4294901760
  %v2839 = vsub.f32 %v932, %v2838
  %v2840 = vand.u32 %v2839, 4294901760
  %2841 = vmatpush1.msra.mxu0 %v2840
  %2842 = vmatprep.subr.mxu0 0.0
  %2843 = vmatpush1.msra.mxu0 0.0
  %2844 = vmatprep.subr.mxu0 0.0
  %2845 = vmatpush1.msra.mxu0 0.0
  %2846 = vmatprep.subr.mxu0 0.0
  %2847 = vmatpush1.msra.mxu0 0.0
  %2848 = vmatprep.subr.mxu0 0.0
  %2849 = vmatpush1.msra.mxu0 0.0
  %2850 = vmatprep.subr.mxu0 0.0
  %2851 = vmatpush1.msra.mxu0 0.0
  %2852 = vmatprep.subr.mxu0 0.0
  %2853 = vmatpush1.msra.mxu0 0.0
  %2854 = vmatprep.subr.mxu0 0.0
  %2855 = vmatpush1.msra.mxu0 0.0
  %2856 = vmatprep.subr.mxu0 0.0
  %2857 = vmatpush1.msra.mxu0 0.0
  %2858 = vmatprep.subr.mxu0 0.0
  %2859 = vmatpush1.msra.mxu0 0.0
  %2860 = vmatprep.subr.mxu0 0.0
  %2861 = vmatpush1.msra.mxu0 0.0
  %2862 = vmatprep.subr.mxu0 0.0
  %2863 = vmatpush1.msra.mxu0 0.0
  %2864 = vmatprep.subr.mxu0 0.0
  %2865 = vmatpush1.msra.mxu0 0.0
  %2866 = vmatprep.subr.mxu0 0.0
  %2867 = vmatpush1.msra.mxu0 0.0
  %2868 = vmatprep.subr.mxu0 0.0
  %2869 = vmatpush1.msra.mxu0 0.0
  %2870 = vmatprep.subr.mxu0 0.0
  %2871 = vmatpush1.msra.mxu0 0.0
  %2872 = vmatprep.subr.mxu0 0.0
  %2873 = vmatpush1.msra.mxu0 0.0
  %2874 = vmatprep.subr.mxu0 0.0
  %2875 = vmatpush1.msra.mxu0 0.0
  %2876 = vmatprep.subr.mxu0 0.0
  %2877 = vmatpush1.msra.mxu0 0.0
  %2878 = vmatprep.subr.mxu0 0.0
  %2879 = vmatpush1.msra.mxu0 0.0
  %2880 = vmatprep.subr.mxu0 0.0
  %2881 = vmatpush1.msra.mxu0 0.0
  %2882 = vmatprep.subr.mxu0 0.0
  %2883 = vmatpush1.msra.mxu0 0.0
  %2884 = vmatprep.subr.mxu0 0.0
  %2885 = vmatpush1.msra.mxu0 0.0
  %2886 = vmatprep.subr.mxu0 0.0
  %2887 = vmatpush1.msra.mxu0 0.0
  %2888 = vmatprep.subr.mxu0 0.0
  %2889 = vmatpush1.msra.mxu0 0.0
  %2890 = vmatprep.subr.mxu0 0.0
  %2891 = vmatpush1.msra.mxu0 0.0
  %2892 = vmatprep.subr.mxu0 0.0
  %2893 = vmatpush1.msra.mxu0 0.0
  %2894 = vmatprep.subr.mxu0 0.0
  %2895 = vmatpush1.msra.mxu0 0.0
  %2896 = vmatprep.subr.mxu0 0.0
  %2897 = vmatpush1.msra.mxu0 0.0
  %2898 = vmatprep.mubr.f32.mxu0 0.0
  %v2899 = vand.u32 %v2493, 4294901760
  %2900 = vmatmul.mubr.f32.gmra.mrb[0].mxu0 %v2899
  %v2901 = vpop.f32.mrb[0].mxu0
  %v2902 = vadd.f32 %v2819, %v2901
  %v2903 = vpop.f32.mrb[0].mxu0
  %2904 = vdwg.mxu0
  %2905 = vmatprep.subr.mxu0 0.0
  %v2906 = vand.u32 %v929, 4294901760
  %2907 = vmatpush1.msra.mxu0 %v2906
  %2908 = vmatprep.subr.mxu0 0.0
  %v2909 = vand.u32 %v930, 4294901760
  %2910 = vmatpush1.msra.mxu0 %v2909
  %2911 = vmatprep.subr.mxu0 0.0
  %v2912 = vand.u32 %v931, 4294901760
  %2913 = vmatpush1.msra.mxu0 %v2912
  %2914 = vmatprep.subr.mxu0 0.0
  %v2915 = vand.u32 %v932, 4294901760
  %2916 = vmatpush1.msra.mxu0 %v2915
  %2917 = vmatprep.subr.mxu0 0.0
  %2918 = vmatpush1.msra.mxu0 0.0
  %2919 = vmatprep.subr.mxu0 0.0
  %2920 = vmatpush1.msra.mxu0 0.0
  %2921 = vmatprep.subr.mxu0 0.0
  %2922 = vmatpush1.msra.mxu0 0.0
  %2923 = vmatprep.subr.mxu0 0.0
  %2924 = vmatpush1.msra.mxu0 0.0
  %2925 = vmatprep.subr.mxu0 0.0
  %2926 = vmatpush1.msra.mxu0 0.0
  %2927 = vmatprep.subr.mxu0 0.0
  %2928 = vmatpush1.msra.mxu0 0.0
  %2929 = vmatprep.subr.mxu0 0.0
  %2930 = vmatpush1.msra.mxu0 0.0
  %2931 = vmatprep.subr.mxu0 0.0
  %2932 = vmatpush1.msra.mxu0 0.0
  %2933 = vmatprep.subr.mxu0 0.0
  %2934 = vmatpush1.msra.mxu0 0.0
  %2935 = vmatprep.subr.mxu0 0.0
  %2936 = vmatpush1.msra.mxu0 0.0
  %2937 = vmatprep.subr.mxu0 0.0
  %2938 = vmatpush1.msra.mxu0 0.0
  %2939 = vmatprep.subr.mxu0 0.0
  %2940 = vmatpush1.msra.mxu0 0.0
  %2941 = vmatprep.subr.mxu0 0.0
  %2942 = vmatpush1.msra.mxu0 0.0
  %2943 = vmatprep.subr.mxu0 0.0
  %2944 = vmatpush1.msra.mxu0 0.0
  %2945 = vmatprep.subr.mxu0 0.0
  %2946 = vmatpush1.msra.mxu0 0.0
  %2947 = vmatprep.subr.mxu0 0.0
  %2948 = vmatpush1.msra.mxu0 0.0
  %2949 = vmatprep.subr.mxu0 0.0
  %2950 = vmatpush1.msra.mxu0 0.0
  %2951 = vmatprep.subr.mxu0 0.0
  %2952 = vmatpush1.msra.mxu0 0.0
  %2953 = vmatprep.subr.mxu0 0.0
  %2954 = vmatpush1.msra.mxu0 0.0
  %2955 = vmatprep.subr.mxu0 0.0
  %2956 = vmatpush1.msra.mxu0 0.0
  %2957 = vmatprep.subr.mxu0 0.0
  %2958 = vmatpush1.msra.mxu0 0.0
  %2959 = vmatprep.subr.mxu0 0.0
  %2960 = vmatpush1.msra.mxu0 0.0
  %2961 = vmatprep.subr.mxu0 0.0
  %2962 = vmatpush1.msra.mxu0 0.0
  %2963 = vmatprep.subr.mxu0 0.0
  %2964 = vmatpush1.msra.mxu0 0.0
  %2965 = vmatprep.subr.mxu0 0.0
  %2966 = vmatpush1.msra.mxu0 0.0
  %2967 = vmatprep.subr.mxu0 0.0
  %2968 = vmatpush1.msra.mxu0 0.0
  %2969 = vmatprep.subr.mxu0 0.0
  %2970 = vmatpush1.msra.mxu0 0.0
  %2971 = vmatprep.subr.mxu0 0.0
  %2972 = vmatpush1.msra.mxu0 0.0
  %2973 = vmatprep.mubr.f32.mxu0 0.0
  %v2974 = vand.u32 %v2493, 4294901760
  %2975 = vmatmul.mubr.f32.gmra.mrb[0].mxu0 %v2974
  %v2976 = vpop.f32.mrb[0].mxu0
  %v2977 = vadd.f32 %v2902, %v2976
  %v2978 = vpop.f32.mrb[0].mxu0
  %2979 = vdwg.mxu0
  %v2980 = vadd.f32 %v2489, %v2977
  %v2981 = vxor.u32 %v2980, 2147483648
  %v2982 = vmul.f32 %v2981, 1.442695
  %v2983 = vpow.pop %v2982
  %v2984 = vadd.f32 %v2983, 1.0
  %v2985 = vrcp.pop %v2984
  %v2986 = vmul.f32 1.0, %v2985
  %v2987 = vtanh.pop %v2980
  %v2988 = vmul.f32 %v2986, %v2481
  %2990 = vrot.lane.b32.xlu0 %v2987, 64
  %v2991 = vpop.permute.xlu0 %2990
  %v2993 = vmul.f32 %v2986, %v2991
  %2995 = vrot.lane.b32.xlu0 %v2993, 32
  %v2996 = vpop.permute.xlu0 %2995
  %v2998 = vadd.f32 %v2988, %v2996
  %v2999 = vtanh.pop %v2998
  %3001 = vrot.lane.b32.xlu0 %v2999, 64
  %v3002 = vpop.permute.xlu0 %3001
  %v3004 = vmul.f32 %v2986, %v3002
  %s3005 = scalar_lea.vmem [#allocation4], 32
  %v3006 = vld [vmem:[%s3005] sm:$0xff]
  %3008 = vrot.lane.b32.xlu0 %v3004, 32
  %v3009 = vpop.permute.xlu0 %3008
  %v3010 = vsel %vm936, %v3009, 0
  %3012 = vmatprep.subr.mxu0 0.0
  %v3013 = vand.u32 %v929, 4294901760
  %3014 = vmatpush1.msra.mxu0 %v3013
  %3015 = vmatprep.subr.mxu0 0.0
  %v3016 = vand.u32 %v930, 4294901760
  %3017 = vmatpush1.msra.mxu0 %v3016
  %3018 = vmatprep.subr.mxu0 0.0
  %v3019 = vand.u32 %v931, 4294901760
  %3020 = vmatpush1.msra.mxu0 %v3019
  %3021 = vmatprep.subr.mxu0 0.0
  %v3022 = vand.u32 %v932, 4294901760
  %3023 = vmatpush1.msra.mxu0 %v3022
  %3024 = vmatprep.subr.mxu0 0.0
  %3025 = vmatpush1.msra.mxu0 0.0
  %3026 = vmatprep.subr.mxu0 0.0
  %3027 = vmatpush1.msra.mxu0 0.0
  %3028 = vmatprep.subr.mxu0 0.0
  %3029 = vmatpush1.msra.mxu0 0.0
  %3030 = vmatprep.subr.mxu0 0.0
  %3031 = vmatpush1.msra.mxu0 0.0
  %3032 = vmatprep.subr.mxu0 0.0
  %3033 = vmatpush1.msra.mxu0 0.0
  %3034 = vmatprep.subr.mxu0 0.0
  %3035 = vmatpush1.msra.mxu0 0.0
  %3036 = vmatprep.subr.mxu0 0.0
  %3037 = vmatpush1.msra.mxu0 0.0
  %3038 = vmatprep.subr.mxu0 0.0
  %3039 = vmatpush1.msra.mxu0 0.0
  %3040 = vmatprep.subr.mxu0 0.0
  %3041 = vmatpush1.msra.mxu0 0.0
  %3042 = vmatprep.subr.mxu0 0.0
  %3043 = vmatpush1.msra.mxu0 0.0
  %3044 = vmatprep.subr.mxu0 0.0
  %3045 = vmatpush1.msra.mxu0 0.0
  %3046 = vmatprep.subr.mxu0 0.0
  %3047 = vmatpush1.msra.mxu0 0.0
  %3048 = vmatprep.subr.mxu0 0.0
  %3049 = vmatpush1.msra.mxu0 0.0
  %3050 = vmatprep.subr.mxu0 0.0
  %3051 = vmatpush1.msra.mxu0 0.0
  %3052 = vmatprep.subr.mxu0 0.0
  %3053 = vmatpush1.msra.mxu0 0.0
  %3054 = vmatprep.subr.mxu0 0.0
  %3055 = vmatpush1.msra.mxu0 0.0
  %3056 = vmatprep.subr.mxu0 0.0
  %3057 = vmatpush1.msra.mxu0 0.0
  %3058 = vmatprep.subr.mxu0 0.0
  %3059 = vmatpush1.msra.mxu0 0.0
  %3060 = vmatprep.subr.mxu0 0.0
  %3061 = vmatpush1.msra.mxu0 0.0
  %3062 = vmatprep.subr.mxu0 0.0
  %3063 = vmatpush1.msra.mxu0 0.0
  %3064 = vmatprep.subr.mxu0 0.0
  %3065 = vmatpush1.msra.mxu0 0.0
  %3066 = vmatprep.subr.mxu0 0.0
  %3067 = vmatpush1.msra.mxu0 0.0
  %3068 = vmatprep.subr.mxu0 0.0
  %3069 = vmatpush1.msra.mxu0 0.0
  %3070 = vmatprep.subr.mxu0 0.0
  %3071 = vmatpush1.msra.mxu0 0.0
  %3072 = vmatprep.subr.mxu0 0.0
  %3073 = vmatpush1.msra.mxu0 0.0
  %3074 = vmatprep.subr.mxu0 0.0
  %3075 = vmatpush1.msra.mxu0 0.0
  %3076 = vmatprep.subr.mxu0 0.0
  %3077 = vmatpush1.msra.mxu0 0.0
  %3078 = vmatprep.subr.mxu0 0.0
  %3079 = vmatpush1.msra.mxu0 0.0
  %3080 = vmatprep.mubr.f32.mxu0 0.0
  %v3081 = vand.u32 %v3010, 4294901760
  %v3082 = vsub.f32 %v3010, %v3081
  %v3083 = vand.u32 %v3082, 4294901760
  %v3084 = vsub.f32 %v3082, %v3083
  %v3085 = vand.u32 %v3084, 4294901760
  %3086 = vmatmul.mubr.f32.gmra.mrb[0].mxu0 %v3085
  %v3087 = vpop.f32.mrb[0].mxu0
  %v3088 = vadd.f32 0.0, %v3087
  %v3089 = vpop.f32.mrb[0].mxu0
  %3090 = vdwg.mxu0
  %3091 = vmatprep.subr.mxu0 0.0
  %v3092 = vand.u32 %v929, 4294901760
  %v3093 = vsub.f32 %v929, %v3092
  %v3094 = vand.u32 %v3093, 4294901760
  %v3095 = vsub.f32 %v3093, %v3094
  %v3096 = vand.u32 %v3095, 4294901760
  %3097 = vmatpush1.msra.mxu0 %v3096
  %3098 = vmatprep.subr.mxu0 0.0
  %v3099 = vand.u32 %v930, 4294901760
  %v3100 = vsub.f32 %v930, %v3099
  %v3101 = vand.u32 %v3100, 4294901760
  %v3102 = vsub.f32 %v3100, %v3101
  %v3103 = vand.u32 %v3102, 4294901760
  %3104 = vmatpush1.msra.mxu0 %v3103
  %3105 = vmatprep.subr.mxu0 0.0
  %v3106 = vand.u32 %v931, 4294901760
  %v3107 = vsub.f32 %v931, %v3106
  %v3108 = vand.u32 %v3107, 4294901760
  %v3109 = vsub.f32 %v3107, %v3108
  %v3110 = vand.u32 %v3109, 4294901760
  %3111 = vmatpush1.msra.mxu0 %v3110
  %3112 = vmatprep.subr.mxu0 0.0
  %v3113 = vand.u32 %v932, 4294901760
  %v3114 = vsub.f32 %v932, %v3113
  %v3115 = vand.u32 %v3114, 4294901760
  %v3116 = vsub.f32 %v3114, %v3115
  %v3117 = vand.u32 %v3116, 4294901760
  %3118 = vmatpush1.msra.mxu0 %v3117
  %3119 = vmatprep.subr.mxu0 0.0
  %3120 = vmatpush1.msra.mxu0 0.0
  %3121 = vmatprep.subr.mxu0 0.0
  %3122 = vmatpush1.msra.mxu0 0.0
  %3123 = vmatprep.subr.mxu0 0.0
  %3124 = vmatpush1.msra.mxu0 0.0
  %3125 = vmatprep.subr.mxu0 0.0
  %3126 = vmatpush1.msra.mxu0 0.0
  %3127 = vmatprep.subr.mxu0 0.0
  %3128 = vmatpush1.msra.mxu0 0.0
  %3129 = vmatprep.subr.mxu0 0.0
  %3130 = vmatpush1.msra.mxu0 0.0
  %3131 = vmatprep.subr.mxu0 0.0
  %3132 = vmatpush1.msra.mxu0 0.0
  %3133 = vmatprep.subr.mxu0 0.0
  %3134 = vmatpush1.msra.mxu0 0.0
  %3135 = vmatprep.subr.mxu0 0.0
  %3136 = vmatpush1.msra.mxu0 0.0
  %3137 = vmatprep.subr.mxu0 0.0
  %3138 = vmatpush1.msra.mxu0 0.0
  %3139 = vmatprep.subr.mxu0 0.0
  %3140 = vmatpush1.msra.mxu0 0.0
  %3141 = vmatprep.subr.mxu0 0.0
  %3142 = vmatpush1.msra.mxu0 0.0
  %3143 = vmatprep.subr.mxu0 0.0
  %3144 = vmatpush1.msra.mxu0 0.0
  %3145 = vmatprep.subr.mxu0 0.0
  %3146 = vmatpush1.msra.mxu0 0.0
  %3147 = vmatprep.subr.mxu0 0.0
  %3148 = vmatpush1.msra.mxu0 0.0
  %3149 = vmatprep.subr.mxu0 0.0
  %3150 = vmatpush1.msra.mxu0 0.0
  %3151 = vmatprep.subr.mxu0 0.0
  %3152 = vmatpush1.msra.mxu0 0.0
  %3153 = vmatprep.subr.mxu0 0.0
  %3154 = vmatpush1.msra.mxu0 0.0
  %3155 = vmatprep.subr.mxu0 0.0
  %3156 = vmatpush1.msra.mxu0 0.0
  %3157 = vmatprep.subr.mxu0 0.0
  %3158 = vmatpush1.msra.mxu0 0.0
  %3159 = vmatprep.subr.mxu0 0.0
  %3160 = vmatpush1.msra.mxu0 0.0
  %3161 = vmatprep.subr.mxu0 0.0
  %3162 = vmatpush1.msra.mxu0 0.0
  %3163 = vmatprep.subr.mxu0 0.0
  %3164 = vmatpush1.msra.mxu0 0.0
  %3165 = vmatprep.subr.mxu0 0.0
  %3166 = vmatpush1.msra.mxu0 0.0
  %3167 = vmatprep.subr.mxu0 0.0
  %3168 = vmatpush1.msra.mxu0 0.0
  %3169 = vmatprep.subr.mxu0 0.0
  %3170 = vmatpush1.msra.mxu0 0.0
  %3171 = vmatprep.subr.mxu0 0.0
  %3172 = vmatpush1.msra.mxu0 0.0
  %3173 = vmatprep.subr.mxu0 0.0
  %3174 = vmatpush1.msra.mxu0 0.0
  %3175 = vmatprep.mubr.f32.mxu0 0.0
  %v3176 = vand.u32 %v3010, 4294901760
  %3177 = vmatmul.mubr.f32.gmra.mrb[0].mxu0 %v3176
  %v3178 = vpop.f32.mrb[0].mxu0
  %v3179 = vadd.f32 %v3088, %v3178
  %v3180 = vpop.f32.mrb[0].mxu0
  %3181 = vdwg.mxu0
  %3182 = vmatprep.subr.mxu0 0.0
  %v3183 = vand.u32 %v929, 4294901760
  %v3184 = vsub.f32 %v929, %v3183
  %3185 = vmatpush1.msra.mxu0 %v3184
  %3186 = vmatprep.subr.mxu0 0.0
  %v3187 = vand.u32 %v930, 4294901760
  %v3188 = vsub.f32 %v930, %v3187
  %3189 = vmatpush1.msra.mxu0 %v3188
  %3190 = vmatprep.subr.mxu0 0.0
  %v3191 = vand.u32 %v931, 4294901760
  %v3192 = vsub.f32 %v931, %v3191
  %3193 = vmatpush1.msra.mxu0 %v3192
  %3194 = vmatprep.subr.mxu0 0.0
  %v3195 = vand.u32 %v932, 4294901760
  %v3196 = vsub.f32 %v932, %v3195
  %3197 = vmatpush1.msra.mxu0 %v3196
  %3198 = vmatprep.subr.mxu0 0.0
  %3199 = vmatpush1.msra.mxu0 0.0
  %3200 = vmatprep.subr.mxu0 0.0
  %3201 = vmatpush1.msra.mxu0 0.0
  %3202 = vmatprep.subr.mxu0 0.0
  %3203 = vmatpush1.msra.mxu0 0.0
  %3204 = vmatprep.subr.mxu0 0.0
  %3205 = vmatpush1.msra.mxu0 0.0
  %3206 = vmatprep.subr.mxu0 0.0
  %3207 = vmatpush1.msra.mxu0 0.0
  %3208 = vmatprep.subr.mxu0 0.0
  %3209 = vmatpush1.msra.mxu0 0.0
  %3210 = vmatprep.subr.mxu0 0.0
  %3211 = vmatpush1.msra.mxu0 0.0
  %3212 = vmatprep.subr.mxu0 0.0
  %3213 = vmatpush1.msra.mxu0 0.0
  %3214 = vmatprep.subr.mxu0 0.0
  %3215 = vmatpush1.msra.mxu0 0.0
  %3216 = vmatprep.subr.mxu0 0.0
  %3217 = vmatpush1.msra.mxu0 0.0
  %3218 = vmatprep.subr.mxu0 0.0
  %3219 = vmatpush1.msra.mxu0 0.0
  %3220 = vmatprep.subr.mxu0 0.0
  %3221 = vmatpush1.msra.mxu0 0.0
  %3222 = vmatprep.subr.mxu0 0.0
  %3223 = vmatpush1.msra.mxu0 0.0
  %3224 = vmatprep.subr.mxu0 0.0
  %3225 = vmatpush1.msra.mxu0 0.0
  %3226 = vmatprep.subr.mxu0 0.0
  %3227 = vmatpush1.msra.mxu0 0.0
  %3228 = vmatprep.subr.mxu0 0.0
  %3229 = vmatpush1.msra.mxu0 0.0
  %3230 = vmatprep.subr.mxu0 0.0
  %3231 = vmatpush1.msra.mxu0 0.0
  %3232 = vmatprep.subr.mxu0 0.0
  %3233 = vmatpush1.msra.mxu0 0.0
  %3234 = vmatprep.subr.mxu0 0.0
  %3235 = vmatpush1.msra.mxu0 0.0
  %3236 = vmatprep.subr.mxu0 0.0
  %3237 = vmatpush1.msra.mxu0 0.0
  %3238 = vmatprep.subr.mxu0 0.0
  %3239 = vmatpush1.msra.mxu0 0.0
  %3240 = vmatprep.subr.mxu0 0.0
  %3241 = vmatpush1.msra.mxu0 0.0
  %3242 = vmatprep.subr.mxu0 0.0
  %3243 = vmatpush1.msra.mxu0 0.0
  %3244 = vmatprep.subr.mxu0 0.0
  %3245 = vmatpush1.msra.mxu0 0.0
  %3246 = vmatprep.subr.mxu0 0.0
  %3247 = vmatpush1.msra.mxu0 0.0
  %3248 = vmatprep.subr.mxu0 0.0
  %3249 = vmatpush1.msra.mxu0 0.0
  %3250 = vmatprep.subr.mxu0 0.0
  %3251 = vmatpush1.msra.mxu0 0.0
  %3252 = vmatprep.subr.mxu0 0.0
  %3253 = vmatpush1.msra.mxu0 0.0
  %3254 = vmatprep.mubr.f32.mxu0 0.0
  %v3255 = vand.u32 %v3010, 4294901760
  %v3256 = vsub.f32 %v3010, %v3255
  %3257 = vmatmul.mubr.f32.gmra.mrb[0].mxu0 %v3256
  %v3258 = vpop.f32.mrb[0].mxu0
  %v3259 = vadd.f32 %v3179, %v3258
  %v3260 = vpop.f32.mrb[0].mxu0
  %3261 = vdwg.mxu0
  %3262 = vmatprep.subr.mxu0 0.0
  %v3263 = vand.u32 %v929, 4294901760
  %3264 = vmatpush1.msra.mxu0 %v3263
  %3265 = vmatprep.subr.mxu0 0.0
  %v3266 = vand.u32 %v930, 4294901760
  %3267 = vmatpush1.msra.mxu0 %v3266
  %3268 = vmatprep.subr.mxu0 0.0
  %v3269 = vand.u32 %v931, 4294901760
  %3270 = vmatpush1.msra.mxu0 %v3269
  %3271 = vmatprep.subr.mxu0 0.0
  %v3272 = vand.u32 %v932, 4294901760
  %3273 = vmatpush1.msra.mxu0 %v3272
  %3274 = vmatprep.subr.mxu0 0.0
  %3275 = vmatpush1.msra.mxu0 0.0
  %3276 = vmatprep.subr.mxu0 0.0
  %3277 = vmatpush1.msra.mxu0 0.0
  %3278 = vmatprep.subr.mxu0 0.0
  %3279 = vmatpush1.msra.mxu0 0.0
  %3280 = vmatprep.subr.mxu0 0.0
  %3281 = vmatpush1.msra.mxu0 0.0
  %3282 = vmatprep.subr.mxu0 0.0
  %3283 = vmatpush1.msra.mxu0 0.0
  %3284 = vmatprep.subr.mxu0 0.0
  %3285 = vmatpush1.msra.mxu0 0.0
  %3286 = vmatprep.subr.mxu0 0.0
  %3287 = vmatpush1.msra.mxu0 0.0
  %3288 = vmatprep.subr.mxu0 0.0
  %3289 = vmatpush1.msra.mxu0 0.0
  %3290 = vmatprep.subr.mxu0 0.0
  %3291 = vmatpush1.msra.mxu0 0.0
  %3292 = vmatprep.subr.mxu0 0.0
  %3293 = vmatpush1.msra.mxu0 0.0
  %3294 = vmatprep.subr.mxu0 0.0
  %3295 = vmatpush1.msra.mxu0 0.0
  %3296 = vmatprep.subr.mxu0 0.0
  %3297 = vmatpush1.msra.mxu0 0.0
  %3298 = vmatprep.subr.mxu0 0.0
  %3299 = vmatpush1.msra.mxu0 0.0
  %3300 = vmatprep.subr.mxu0 0.0
  %3301 = vmatpush1.msra.mxu0 0.0
  %3302 = vmatprep.subr.mxu0 0.0
  %3303 = vmatpush1.msra.mxu0 0.0
  %3304 = vmatprep.subr.mxu0 0.0
  %3305 = vmatpush1.msra.mxu0 0.0
  %3306 = vmatprep.subr.mxu0 0.0
  %3307 = vmatpush1.msra.mxu0 0.0
  %3308 = vmatprep.subr.mxu0 0.0
  %3309 = vmatpush1.msra.mxu0 0.0
  %3310 = vmatprep.subr.mxu0 0.0
  %3311 = vmatpush1.msra.mxu0 0.0
  %3312 = vmatprep.subr.mxu0 0.0
  %3313 = vmatpush1.msra.mxu0 0.0
  %3314 = vmatprep.subr.mxu0 0.0
  %3315 = vmatpush1.msra.mxu0 0.0
  %3316 = vmatprep.subr.mxu0 0.0
  %3317 = vmatpush1.msra.mxu0 0.0
  %3318 = vmatprep.subr.mxu0 0.0
  %3319 = vmatpush1.msra.mxu0 0.0
  %3320 = vmatprep.subr.mxu0 0.0
  %3321 = vmatpush1.msra.mxu0 0.0
  %3322 = vmatprep.subr.mxu0 0.0
  %3323 = vmatpush1.msra.mxu0 0.0
  %3324 = vmatprep.subr.mxu0 0.0
  %3325 = vmatpush1.msra.mxu0 0.0
  %3326 = vmatprep.subr.mxu0 0.0
  %3327 = vmatpush1.msra.mxu0 0.0
  %3328 = vmatprep.subr.mxu0 0.0
  %3329 = vmatpush1.msra.mxu0 0.0
  %3330 = vmatprep.mubr.f32.mxu0 0.0
  %v3331 = vand.u32 %v3010, 4294901760
  %v3332 = vsub.f32 %v3010, %v3331
  %v3333 = vand.u32 %v3332, 4294901760
  %3334 = vmatmul.mubr.f32.gmra.mrb[0].mxu0 %v3333
  %v3335 = vpop.f32.mrb[0].mxu0
  %v3336 = vadd.f32 %v3259, %v3335
  %v3337 = vpop.f32.mrb[0].mxu0
  %3338 = vdwg.mxu0
  %3339 = vmatprep.subr.mxu0 0.0
  %v3340 = vand.u32 %v929, 4294901760
  %v3341 = vsub.f32 %v929, %v3340
  %v3342 = vand.u32 %v3341, 4294901760
  %3343 = vmatpush1.msra.mxu0 %v3342
  %3344 = vmatprep.subr.mxu0 0.0
  %v3345 = vand.u32 %v930, 4294901760
  %v3346 = vsub.f32 %v930, %v3345
  %v3347 = vand.u32 %v3346, 4294901760
  %3348 = vmatpush1.msra.mxu0 %v3347
  %3349 = vmatprep.subr.mxu0 0.0
  %v3350 = vand.u32 %v931, 4294901760
  %v3351 = vsub.f32 %v931, %v3350
  %v3352 = vand.u32 %v3351, 4294901760
  %3353 = vmatpush1.msra.mxu0 %v3352
  %3354 = vmatprep.subr.mxu0 0.0
  %v3355 = vand.u32 %v932, 4294901760
  %v3356 = vsub.f32 %v932, %v3355
  %v3357 = vand.u32 %v3356, 4294901760
  %3358 = vmatpush1.msra.mxu0 %v3357
  %3359 = vmatprep.subr.mxu0 0.0
  %3360 = vmatpush1.msra.mxu0 0.0
  %3361 = vmatprep.subr.mxu0 0.0
  %3362 = vmatpush1.msra.mxu0 0.0
  %3363 = vmatprep.subr.mxu0 0.0
  %3364 = vmatpush1.msra.mxu0 0.0
  %3365 = vmatprep.subr.mxu0 0.0
  %3366 = vmatpush1.msra.mxu0 0.0
  %3367 = vmatprep.subr.mxu0 0.0
  %3368 = vmatpush1.msra.mxu0 0.0
  %3369 = vmatprep.subr.mxu0 0.0
  %3370 = vmatpush1.msra.mxu0 0.0
  %3371 = vmatprep.subr.mxu0 0.0
  %3372 = vmatpush1.msra.mxu0 0.0
  %3373 = vmatprep.subr.mxu0 0.0
  %3374 = vmatpush1.msra.mxu0 0.0
  %3375 = vmatprep.subr.mxu0 0.0
  %3376 = vmatpush1.msra.mxu0 0.0
  %3377 = vmatprep.subr.mxu0 0.0
  %3378 = vmatpush1.msra.mxu0 0.0
  %3379 = vmatprep.subr.mxu0 0.0
  %3380 = vmatpush1.msra.mxu0 0.0
  %3381 = vmatprep.subr.mxu0 0.0
  %3382 = vmatpush1.msra.mxu0 0.0
  %3383 = vmatprep.subr.mxu0 0.0
  %3384 = vmatpush1.msra.mxu0 0.0
  %3385 = vmatprep.subr.mxu0 0.0
  %3386 = vmatpush1.msra.mxu0 0.0
  %3387 = vmatprep.subr.mxu0 0.0
  %3388 = vmatpush1.msra.mxu0 0.0
  %3389 = vmatprep.subr.mxu0 0.0
  %3390 = vmatpush1.msra.mxu0 0.0
  %3391 = vmatprep.subr.mxu0 0.0
  %3392 = vmatpush1.msra.mxu0 0.0
  %3393 = vmatprep.subr.mxu0 0.0
  %3394 = vmatpush1.msra.mxu0 0.0
  %3395 = vmatprep.subr.mxu0 0.0
  %3396 = vmatpush1.msra.mxu0 0.0
  %3397 = vmatprep.subr.mxu0 0.0
  %3398 = vmatpush1.msra.mxu0 0.0
  %3399 = vmatprep.subr.mxu0 0.0
  %3400 = vmatpush1.msra.mxu0 0.0
  %3401 = vmatprep.subr.mxu0 0.0
  %3402 = vmatpush1.msra.mxu0 0.0
  %3403 = vmatprep.subr.mxu0 0.0
  %3404 = vmatpush1.msra.mxu0 0.0
  %3405 = vmatprep.subr.mxu0 0.0
  %3406 = vmatpush1.msra.mxu0 0.0
  %3407 = vmatprep.subr.mxu0 0.0
  %3408 = vmatpush1.msra.mxu0 0.0
  %3409 = vmatprep.subr.mxu0 0.0
  %3410 = vmatpush1.msra.mxu0 0.0
  %3411 = vmatprep.subr.mxu0 0.0
  %3412 = vmatpush1.msra.mxu0 0.0
  %3413 = vmatprep.subr.mxu0 0.0
  %3414 = vmatpush1.msra.mxu0 0.0
  %3415 = vmatprep.mubr.f32.mxu0 0.0
  %v3416 = vand.u32 %v3010, 4294901760
  %3417 = vmatmul.mubr.f32.gmra.mrb[0].mxu0 %v3416
  %v3418 = vpop.f32.mrb[0].mxu0
  %v3419 = vadd.f32 %v3336, %v3418
  %v3420 = vpop.f32.mrb[0].mxu0
  %3421 = vdwg.mxu0
  %3422 = vmatprep.subr.mxu0 0.0
  %v3423 = vand.u32 %v929, 4294901760
  %3424 = vmatpush1.msra.mxu0 %v3423
  %3425 = vmatprep.subr.mxu0 0.0
  %v3426 = vand.u32 %v930, 4294901760
  %3427 = vmatpush1.msra.mxu0 %v3426
  %3428 = vmatprep.subr.mxu0 0.0
  %v3429 = vand.u32 %v931, 4294901760
  %3430 = vmatpush1.msra.mxu0 %v3429
  %3431 = vmatprep.subr.mxu0 0.0
  %v3432 = vand.u32 %v932, 4294901760
  %3433 = vmatpush1.msra.mxu0 %v3432
  %3434 = vmatprep.subr.mxu0 0.0
  %3435 = vmatpush1.msra.mxu0 0.0
  %3436 = vmatprep.subr.mxu0 0.0
  %3437 = vmatpush1.msra.mxu0 0.0
  %3438 = vmatprep.subr.mxu0 0.0
  %3439 = vmatpush1.msra.mxu0 0.0
  %3440 = vmatprep.subr.mxu0 0.0
  %3441 = vmatpush1.msra.mxu0 0.0
  %3442 = vmatprep.subr.mxu0 0.0
  %3443 = vmatpush1.msra.mxu0 0.0
  %3444 = vmatprep.subr.mxu0 0.0
  %3445 = vmatpush1.msra.mxu0 0.0
  %3446 = vmatprep.subr.mxu0 0.0
  %3447 = vmatpush1.msra.mxu0 0.0
  %3448 = vmatprep.subr.mxu0 0.0
  %3449 = vmatpush1.msra.mxu0 0.0
  %3450 = vmatprep.subr.mxu0 0.0
  %3451 = vmatpush1.msra.mxu0 0.0
  %3452 = vmatprep.subr.mxu0 0.0
  %3453 = vmatpush1.msra.mxu0 0.0
  %3454 = vmatprep.subr.mxu0 0.0
  %3455 = vmatpush1.msra.mxu0 0.0
  %3456 = vmatprep.subr.mxu0 0.0
  %3457 = vmatpush1.msra.mxu0 0.0
  %3458 = vmatprep.subr.mxu0 0.0
  %3459 = vmatpush1.msra.mxu0 0.0
  %3460 = vmatprep.subr.mxu0 0.0
  %3461 = vmatpush1.msra.mxu0 0.0
  %3462 = vmatprep.subr.mxu0 0.0
  %3463 = vmatpush1.msra.mxu0 0.0
  %3464 = vmatprep.subr.mxu0 0.0
  %3465 = vmatpush1.msra.mxu0 0.0
  %3466 = vmatprep.subr.mxu0 0.0
  %3467 = vmatpush1.msra.mxu0 0.0
  %3468 = vmatprep.subr.mxu0 0.0
  %3469 = vmatpush1.msra.mxu0 0.0
  %3470 = vmatprep.subr.mxu0 0.0
  %3471 = vmatpush1.msra.mxu0 0.0
  %3472 = vmatprep.subr.mxu0 0.0
  %3473 = vmatpush1.msra.mxu0 0.0
  %3474 = vmatprep.subr.mxu0 0.0
  %3475 = vmatpush1.msra.mxu0 0.0
  %3476 = vmatprep.subr.mxu0 0.0
  %3477 = vmatpush1.msra.mxu0 0.0
  %3478 = vmatprep.subr.mxu0 0.0
  %3479 = vmatpush1.msra.mxu0 0.0
  %3480 = vmatprep.subr.mxu0 0.0
  %3481 = vmatpush1.msra.mxu0 0.0
  %3482 = vmatprep.subr.mxu0 0.0
  %3483 = vmatpush1.msra.mxu0 0.0
  %3484 = vmatprep.subr.mxu0 0.0
  %3485 = vmatpush1.msra.mxu0 0.0
  %3486 = vmatprep.subr.mxu0 0.0
  %3487 = vmatpush1.msra.mxu0 0.0
  %3488 = vmatprep.subr.mxu0 0.0
  %3489 = vmatpush1.msra.mxu0 0.0
  %3490 = vmatprep.mubr.f32.mxu0 0.0
  %v3491 = vand.u32 %v3010, 4294901760
  %3492 = vmatmul.mubr.f32.gmra.mrb[0].mxu0 %v3491
  %v3493 = vpop.f32.mrb[0].mxu0
  %v3494 = vadd.f32 %v3419, %v3493
  %v3495 = vpop.f32.mrb[0].mxu0
  %3496 = vdwg.mxu0
  %v3497 = vadd.f32 %v3006, %v3494
  %v3498 = vxor.u32 %v3497, 2147483648
  %v3499 = vmul.f32 %v3498, 1.442695
  %v3500 = vpow.pop %v3499
  %v3501 = vadd.f32 %v3500, 1.0
  %v3502 = vrcp.pop %v3501
  %v3503 = vmul.f32 1.0, %v3502
  %v3504 = vtanh.pop %v3497
  %v3505 = vmul.f32 %v3503, %v2998
  %3507 = vrot.lane.b32.xlu0 %v3504, 64
  %v3508 = vpop.permute.xlu0 %3507
  %v3510 = vmul.f32 %v3503, %v3508
  %3512 = vrot.lane.b32.xlu0 %v3510, 32
  %v3513 = vpop.permute.xlu0 %3512
  %v3515 = vadd.f32 %v3505, %v3513
  %v3516 = vtanh.pop %v3515
  %3518 = vrot.lane.b32.xlu0 %v3516, 64
  %v3519 = vpop.permute.xlu0 %3518
  %v3521 = vmul.f32 %v3503, %v3519
  %s3522 = scalar_lea.vmem [#allocation4], 40
  %v3523 = vld [vmem:[%s3522] sm:$0xff]
  %3525 = vrot.lane.b32.xlu0 %v3521, 32
  %v3526 = vpop.permute.xlu0 %3525
  %v3527 = vsel %vm936, %v3526, 0
  %3529 = vmatprep.subr.mxu0 0.0
  %v3530 = vand.u32 %v929, 4294901760
  %3531 = vmatpush1.msra.mxu0 %v3530
  %3532 = vmatprep.subr.mxu0 0.0
  %v3533 = vand.u32 %v930, 4294901760
  %3534 = vmatpush1.msra.mxu0 %v3533
  %3535 = vmatprep.subr.mxu0 0.0
  %v3536 = vand.u32 %v931, 4294901760
  %3537 = vmatpush1.msra.mxu0 %v3536
  %3538 = vmatprep.subr.mxu0 0.0
  %v3539 = vand.u32 %v932, 4294901760
  %3540 = vmatpush1.msra.mxu0 %v3539
  %3541 = vmatprep.subr.mxu0 0.0
  %3542 = vmatpush1.msra.mxu0 0.0
  %3543 = vmatprep.subr.mxu0 0.0
  %3544 = vmatpush1.msra.mxu0 0.0
  %3545 = vmatprep.subr.mxu0 0.0
  %3546 = vmatpush1.msra.mxu0 0.0
  %3547 = vmatprep.subr.mxu0 0.0
  %3548 = vmatpush1.msra.mxu0 0.0
  %3549 = vmatprep.subr.mxu0 0.0
  %3550 = vmatpush1.msra.mxu0 0.0
  %3551 = vmatprep.subr.mxu0 0.0
  %3552 = vmatpush1.msra.mxu0 0.0
  %3553 = vmatprep.subr.mxu0 0.0
  %3554 = vmatpush1.msra.mxu0 0.0
  %3555 = vmatprep.subr.mxu0 0.0
  %3556 = vmatpush1.msra.mxu0 0.0
  %3557 = vmatprep.subr.mxu0 0.0
  %3558 = vmatpush1.msra.mxu0 0.0
  %3559 = vmatprep.subr.mxu0 0.0
  %3560 = vmatpush1.msra.mxu0 0.0
  %3561 = vmatprep.subr.mxu0 0.0
  %3562 = vmatpush1.msra.mxu0 0.0
  %3563 = vmatprep.subr.mxu0 0.0
  %3564 = vmatpush1.msra.mxu0 0.0
  %3565 = vmatprep.subr.mxu0 0.0
  %3566 = vmatpush1.msra.mxu0 0.0
  %3567 = vmatprep.subr.mxu0 0.0
  %3568 = vmatpush1.msra.mxu0 0.0
  %3569 = vmatprep.subr.mxu0 0.0
  %3570 = vmatpush1.msra.mxu0 0.0
  %3571 = vmatprep.subr.mxu0 0.0
  %3572 = vmatpush1.msra.mxu0 0.0
  %3573 = vmatprep.subr.mxu0 0.0
  %3574 = vmatpush1.msra.mxu0 0.0
  %3575 = vmatprep.subr.mxu0 0.0
  %3576 = vmatpush1.msra.mxu0 0.0
  %3577 = vmatprep.subr.mxu0 0.0
  %3578 = vmatpush1.msra.mxu0 0.0
  %3579 = vmatprep.subr.mxu0 0.0
  %3580 = vmatpush1.msra.mxu0 0.0
  %3581 = vmatprep.subr.mxu0 0.0
  %3582 = vmatpush1.msra.mxu0 0.0
  %3583 = vmatprep.subr.mxu0 0.0
  %3584 = vmatpush1.msra.mxu0 0.0
  %3585 = vmatprep.subr.mxu0 0.0
  %3586 = vmatpush1.msra.mxu0 0.0
  %3587 = vmatprep.subr.mxu0 0.0
  %3588 = vmatpush1.msra.mxu0 0.0
  %3589 = vmatprep.subr.mxu0 0.0
  %3590 = vmatpush1.msra.mxu0 0.0
  %3591 = vmatprep.subr.mxu0 0.0
  %3592 = vmatpush1.msra.mxu0 0.0
  %3593 = vmatprep.subr.mxu0 0.0
  %3594 = vmatpush1.msra.mxu0 0.0
  %3595 = vmatprep.subr.mxu0 0.0
  %3596 = vmatpush1.msra.mxu0 0.0
  %3597 = vmatprep.mubr.f32.mxu0 0.0
  %v3598 = vand.u32 %v3527, 4294901760
  %v3599 = vsub.f32 %v3527, %v3598
  %v3600 = vand.u32 %v3599, 4294901760
  %v3601 = vsub.f32 %v3599, %v3600
  %v3602 = vand.u32 %v3601, 4294901760
  %3603 = vmatmul.mubr.f32.gmra.mrb[0].mxu0 %v3602
  %v3604 = vpop.f32.mrb[0].mxu0
  %v3605 = vadd.f32 0.0, %v3604
  %v3606 = vpop.f32.mrb[0].mxu0
  %3607 = vdwg.mxu0
  %3608 = vmatprep.subr.mxu0 0.0
  %v3609 = vand.u32 %v929, 4294901760
  %v3610 = vsub.f32 %v929, %v3609
  %v3611 = vand.u32 %v3610, 4294901760
  %v3612 = vsub.f32 %v3610, %v3611
  %v3613 = vand.u32 %v3612, 4294901760
  %3614 = vmatpush1.msra.mxu0 %v3613
  %3615 = vmatprep.subr.mxu0 0.0
  %v3616 = vand.u32 %v930, 4294901760
  %v3617 = vsub.f32 %v930, %v3616
  %v3618 = vand.u32 %v3617, 4294901760
  %v3619 = vsub.f32 %v3617, %v3618
  %v3620 = vand.u32 %v3619, 4294901760
  %3621 = vmatpush1.msra.mxu0 %v3620
  %3622 = vmatprep.subr.mxu0 0.0
  %v3623 = vand.u32 %v931, 4294901760
  %v3624 = vsub.f32 %v931, %v3623
  %v3625 = vand.u32 %v3624, 4294901760
  %v3626 = vsub.f32 %v3624, %v3625
  %v3627 = vand.u32 %v3626, 4294901760
  %3628 = vmatpush1.msra.mxu0 %v3627
  %3629 = vmatprep.subr.mxu0 0.0
  %v3630 = vand.u32 %v932, 4294901760
  %v3631 = vsub.f32 %v932, %v3630
  %v3632 = vand.u32 %v3631, 4294901760
  %v3633 = vsub.f32 %v3631, %v3632
  %v3634 = vand.u32 %v3633, 4294901760
  %3635 = vmatpush1.msra.mxu0 %v3634
  %3636 = vmatprep.subr.mxu0 0.0
  %3637 = vmatpush1.msra.mxu0 0.0
  %3638 = vmatprep.subr.mxu0 0.0
  %3639 = vmatpush1.msra.mxu0 0.0
  %3640 = vmatprep.subr.mxu0 0.0
  %3641 = vmatpush1.msra.mxu0 0.0
  %3642 = vmatprep.subr.mxu0 0.0
  %3643 = vmatpush1.msra.mxu0 0.0
  %3644 = vmatprep.subr.mxu0 0.0
  %3645 = vmatpush1.msra.mxu0 0.0
  %3646 = vmatprep.subr.mxu0 0.0
  %3647 = vmatpush1.msra.mxu0 0.0
  %3648 = vmatprep.subr.mxu0 0.0
  %3649 = vmatpush1.msra.mxu0 0.0
  %3650 = vmatprep.subr.mxu0 0.0
  %3651 = vmatpush1.msra.mxu0 0.0
  %3652 = vmatprep.subr.mxu0 0.0
  %3653 = vmatpush1.msra.mxu0 0.0
  %3654 = vmatprep.subr.mxu0 0.0
  %3655 = vmatpush1.msra.mxu0 0.0
  %3656 = vmatprep.subr.mxu0 0.0
  %3657 = vmatpush1.msra.mxu0 0.0
  %3658 = vmatprep.subr.mxu0 0.0
  %3659 = vmatpush1.msra.mxu0 0.0
  %3660 = vmatprep.subr.mxu0 0.0
  %3661 = vmatpush1.msra.mxu0 0.0
  %3662 = vmatprep.subr.mxu0 0.0
  %3663 = vmatpush1.msra.mxu0 0.0
  %3664 = vmatprep.subr.mxu0 0.0
  %3665 = vmatpush1.msra.mxu0 0.0
  %3666 = vmatprep.subr.mxu0 0.0
  %3667 = vmatpush1.msra.mxu0 0.0
  %3668 = vmatprep.subr.mxu0 0.0
  %3669 = vmatpush1.msra.mxu0 0.0
  %3670 = vmatprep.subr.mxu0 0.0
  %3671 = vmatpush1.msra.mxu0 0.0
  %3672 = vmatprep.subr.mxu0 0.0
  %3673 = vmatpush1.msra.mxu0 0.0
  %3674 = vmatprep.subr.mxu0 0.0
  %3675 = vmatpush1.msra.mxu0 0.0
  %3676 = vmatprep.subr.mxu0 0.0
  %3677 = vmatpush1.msra.mxu0 0.0
  %3678 = vmatprep.subr.mxu0 0.0
  %3679 = vmatpush1.msra.mxu0 0.0
  %3680 = vmatprep.subr.mxu0 0.0
  %3681 = vmatpush1.msra.mxu0 0.0
  %3682 = vmatprep.subr.mxu0 0.0
  %3683 = vmatpush1.msra.mxu0 0.0
  %3684 = vmatprep.subr.mxu0 0.0
  %3685 = vmatpush1.msra.mxu0 0.0
  %3686 = vmatprep.subr.mxu0 0.0
  %3687 = vmatpush1.msra.mxu0 0.0
  %3688 = vmatprep.subr.mxu0 0.0
  %3689 = vmatpush1.msra.mxu0 0.0
  %3690 = vmatprep.subr.mxu0 0.0
  %3691 = vmatpush1.msra.mxu0 0.0
  %3692 = vmatprep.mubr.f32.mxu0 0.0
  %v3693 = vand.u32 %v3527, 4294901760
  %3694 = vmatmul.mubr.f32.gmra.mrb[0].mxu0 %v3693
  %v3695 = vpop.f32.mrb[0].mxu0
  %v3696 = vadd.f32 %v3605, %v3695
  %v3697 = vpop.f32.mrb[0].mxu0
  %3698 = vdwg.mxu0
  %3699 = vmatprep.subr.mxu0 0.0
  %v3700 = vand.u32 %v929, 4294901760
  %v3701 = vsub.f32 %v929, %v3700
  %3702 = vmatpush1.msra.mxu0 %v3701
  %3703 = vmatprep.subr.mxu0 0.0
  %v3704 = vand.u32 %v930, 4294901760
  %v3705 = vsub.f32 %v930, %v3704
  %3706 = vmatpush1.msra.mxu0 %v3705
  %3707 = vmatprep.subr.mxu0 0.0
  %v3708 = vand.u32 %v931, 4294901760
  %v3709 = vsub.f32 %v931, %v3708
  %3710 = vmatpush1.msra.mxu0 %v3709
  %3711 = vmatprep.subr.mxu0 0.0
  %v3712 = vand.u32 %v932, 4294901760
  %v3713 = vsub.f32 %v932, %v3712
  %3714 = vmatpush1.msra.mxu0 %v3713
  %3715 = vmatprep.subr.mxu0 0.0
  %3716 = vmatpush1.msra.mxu0 0.0
  %3717 = vmatprep.subr.mxu0 0.0
  %3718 = vmatpush1.msra.mxu0 0.0
  %3719 = vmatprep.subr.mxu0 0.0
  %3720 = vmatpush1.msra.mxu0 0.0
  %3721 = vmatprep.subr.mxu0 0.0
  %3722 = vmatpush1.msra.mxu0 0.0
  %3723 = vmatprep.subr.mxu0 0.0
  %3724 = vmatpush1.msra.mxu0 0.0
  %3725 = vmatprep.subr.mxu0 0.0
  %3726 = vmatpush1.msra.mxu0 0.0
  %3727 = vmatprep.subr.mxu0 0.0
  %3728 = vmatpush1.msra.mxu0 0.0
  %3729 = vmatprep.subr.mxu0 0.0
  %3730 = vmatpush1.msra.mxu0 0.0
  %3731 = vmatprep.subr.mxu0 0.0
  %3732 = vmatpush1.msra.mxu0 0.0
  %3733 = vmatprep.subr.mxu0 0.0
  %3734 = vmatpush1.msra.mxu0 0.0
  %3735 = vmatprep.subr.mxu0 0.0
  %3736 = vmatpush1.msra.mxu0 0.0
  %3737 = vmatprep.subr.mxu0 0.0
  %3738 = vmatpush1.msra.mxu0 0.0
  %3739 = vmatprep.subr.mxu0 0.0
  %3740 = vmatpush1.msra.mxu0 0.0
  %3741 = vmatprep.subr.mxu0 0.0
  %3742 = vmatpush1.msra.mxu0 0.0
  %3743 = vmatprep.subr.mxu0 0.0
  %3744 = vmatpush1.msra.mxu0 0.0
  %3745 = vmatprep.subr.mxu0 0.0
  %3746 = vmatpush1.msra.mxu0 0.0
  %3747 = vmatprep.subr.mxu0 0.0
  %3748 = vmatpush1.msra.mxu0 0.0
  %3749 = vmatprep.subr.mxu0 0.0
  %3750 = vmatpush1.msra.mxu0 0.0
  %3751 = vmatprep.subr.mxu0 0.0
  %3752 = vmatpush1.msra.mxu0 0.0
  %3753 = vmatprep.subr.mxu0 0.0
  %3754 = vmatpush1.msra.mxu0 0.0
  %3755 = vmatprep.subr.mxu0 0.0
  %3756 = vmatpush1.msra.mxu0 0.0
  %3757 = vmatprep.subr.mxu0 0.0
  %3758 = vmatpush1.msra.mxu0 0.0
  %3759 = vmatprep.subr.mxu0 0.0
  %3760 = vmatpush1.msra.mxu0 0.0
  %3761 = vmatprep.subr.mxu0 0.0
  %3762 = vmatpush1.msra.mxu0 0.0
  %3763 = vmatprep.subr.mxu0 0.0
  %3764 = vmatpush1.msra.mxu0 0.0
  %3765 = vmatprep.subr.mxu0 0.0
  %3766 = vmatpush1.msra.mxu0 0.0
  %3767 = vmatprep.subr.mxu0 0.0
  %3768 = vmatpush1.msra.mxu0 0.0
  %3769 = vmatprep.subr.mxu0 0.0
  %3770 = vmatpush1.msra.mxu0 0.0
  %3771 = vmatprep.mubr.f32.mxu0 0.0
  %v3772 = vand.u32 %v3527, 4294901760
  %v3773 = vsub.f32 %v3527, %v3772
  %3774 = vmatmul.mubr.f32.gmra.mrb[0].mxu0 %v3773
  %v3775 = vpop.f32.mrb[0].mxu0
  %v3776 = vadd.f32 %v3696, %v3775
  %v3777 = vpop.f32.mrb[0].mxu0
  %3778 = vdwg.mxu0
  %3779 = vmatprep.subr.mxu0 0.0
  %v3780 = vand.u32 %v929, 4294901760
  %3781 = vmatpush1.msra.mxu0 %v3780
  %3782 = vmatprep.subr.mxu0 0.0
  %v3783 = vand.u32 %v930, 4294901760
  %3784 = vmatpush1.msra.mxu0 %v3783
  %3785 = vmatprep.subr.mxu0 0.0
  %v3786 = vand.u32 %v931, 4294901760
  %3787 = vmatpush1.msra.mxu0 %v3786
  %3788 = vmatprep.subr.mxu0 0.0
  %v3789 = vand.u32 %v932, 4294901760
  %3790 = vmatpush1.msra.mxu0 %v3789
  %3791 = vmatprep.subr.mxu0 0.0
  %3792 = vmatpush1.msra.mxu0 0.0
  %3793 = vmatprep.subr.mxu0 0.0
  %3794 = vmatpush1.msra.mxu0 0.0
  %3795 = vmatprep.subr.mxu0 0.0
  %3796 = vmatpush1.msra.mxu0 0.0
  %3797 = vmatprep.subr.mxu0 0.0
  %3798 = vmatpush1.msra.mxu0 0.0
  %3799 = vmatprep.subr.mxu0 0.0
  %3800 = vmatpush1.msra.mxu0 0.0
  %3801 = vmatprep.subr.mxu0 0.0
  %3802 = vmatpush1.msra.mxu0 0.0
  %3803 = vmatprep.subr.mxu0 0.0
  %3804 = vmatpush1.msra.mxu0 0.0
  %3805 = vmatprep.subr.mxu0 0.0
  %3806 = vmatpush1.msra.mxu0 0.0
  %3807 = vmatprep.subr.mxu0 0.0
  %3808 = vmatpush1.msra.mxu0 0.0
  %3809 = vmatprep.subr.mxu0 0.0
  %3810 = vmatpush1.msra.mxu0 0.0
  %3811 = vmatprep.subr.mxu0 0.0
  %3812 = vmatpush1.msra.mxu0 0.0
  %3813 = vmatprep.subr.mxu0 0.0
  %3814 = vmatpush1.msra.mxu0 0.0
  %3815 = vmatprep.subr.mxu0 0.0
  %3816 = vmatpush1.msra.mxu0 0.0
  %3817 = vmatprep.subr.mxu0 0.0
  %3818 = vmatpush1.msra.mxu0 0.0
  %3819 = vmatprep.subr.mxu0 0.0
  %3820 = vmatpush1.msra.mxu0 0.0
  %3821 = vmatprep.subr.mxu0 0.0
  %3822 = vmatpush1.msra.mxu0 0.0
  %3823 = vmatprep.subr.mxu0 0.0
  %3824 = vmatpush1.msra.mxu0 0.0
  %3825 = vmatprep.subr.mxu0 0.0
  %3826 = vmatpush1.msra.mxu0 0.0
  %3827 = vmatprep.subr.mxu0 0.0
  %3828 = vmatpush1.msra.mxu0 0.0
  %3829 = vmatprep.subr.mxu0 0.0
  %3830 = vmatpush1.msra.mxu0 0.0
  %3831 = vmatprep.subr.mxu0 0.0
  %3832 = vmatpush1.msra.mxu0 0.0
  %3833 = vmatprep.subr.mxu0 0.0
  %3834 = vmatpush1.msra.mxu0 0.0
  %3835 = vmatprep.subr.mxu0 0.0
  %3836 = vmatpush1.msra.mxu0 0.0
  %3837 = vmatprep.subr.mxu0 0.0
  %3838 = vmatpush1.msra.mxu0 0.0
  %3839 = vmatprep.subr.mxu0 0.0
  %3840 = vmatpush1.msra.mxu0 0.0
  %3841 = vmatprep.subr.mxu0 0.0
  %3842 = vmatpush1.msra.mxu0 0.0
  %3843 = vmatprep.subr.mxu0 0.0
  %3844 = vmatpush1.msra.mxu0 0.0
  %3845 = vmatprep.subr.mxu0 0.0
  %3846 = vmatpush1.msra.mxu0 0.0
  %3847 = vmatprep.mubr.f32.mxu0 0.0
  %v3848 = vand.u32 %v3527, 4294901760
  %v3849 = vsub.f32 %v3527, %v3848
  %v3850 = vand.u32 %v3849, 4294901760
  %3851 = vmatmul.mubr.f32.gmra.mrb[0].mxu0 %v3850
  %v3852 = vpop.f32.mrb[0].mxu0
  %v3853 = vadd.f32 %v3776, %v3852
  %v3854 = vpop.f32.mrb[0].mxu0
  %3855 = vdwg.mxu0
  %3856 = vmatprep.subr.mxu0 0.0
  %v3857 = vand.u32 %v929, 4294901760
  %v3858 = vsub.f32 %v929, %v3857
  %v3859 = vand.u32 %v3858, 4294901760
  %3860 = vmatpush1.msra.mxu0 %v3859
  %3861 = vmatprep.subr.mxu0 0.0
  %v3862 = vand.u32 %v930, 4294901760
  %v3863 = vsub.f32 %v930, %v3862
  %v3864 = vand.u32 %v3863, 4294901760
  %3865 = vmatpush1.msra.mxu0 %v3864
  %3866 = vmatprep.subr.mxu0 0.0
  %v3867 = vand.u32 %v931, 4294901760
  %v3868 = vsub.f32 %v931, %v3867
  %v3869 = vand.u32 %v3868, 4294901760
  %3870 = vmatpush1.msra.mxu0 %v3869
  %3871 = vmatprep.subr.mxu0 0.0
  %v3872 = vand.u32 %v932, 4294901760
  %v3873 = vsub.f32 %v932, %v3872
  %v3874 = vand.u32 %v3873, 4294901760
  %3875 = vmatpush1.msra.mxu0 %v3874
  %3876 = vmatprep.subr.mxu0 0.0
  %3877 = vmatpush1.msra.mxu0 0.0
  %3878 = vmatprep.subr.mxu0 0.0
  %3879 = vmatpush1.msra.mxu0 0.0
  %3880 = vmatprep.subr.mxu0 0.0
  %3881 = vmatpush1.msra.mxu0 0.0
  %3882 = vmatprep.subr.mxu0 0.0
  %3883 = vmatpush1.msra.mxu0 0.0
  %3884 = vmatprep.subr.mxu0 0.0
  %3885 = vmatpush1.msra.mxu0 0.0
  %3886 = vmatprep.subr.mxu0 0.0
  %3887 = vmatpush1.msra.mxu0 0.0
  %3888 = vmatprep.subr.mxu0 0.0
  %3889 = vmatpush1.msra.mxu0 0.0
  %3890 = vmatprep.subr.mxu0 0.0
  %3891 = vmatpush1.msra.mxu0 0.0
  %3892 = vmatprep.subr.mxu0 0.0
  %3893 = vmatpush1.msra.mxu0 0.0
  %3894 = vmatprep.subr.mxu0 0.0
  %3895 = vmatpush1.msra.mxu0 0.0
  %3896 = vmatprep.subr.mxu0 0.0
  %3897 = vmatpush1.msra.mxu0 0.0
  %3898 = vmatprep.subr.mxu0 0.0
  %3899 = vmatpush1.msra.mxu0 0.0
  %3900 = vmatprep.subr.mxu0 0.0
  %3901 = vmatpush1.msra.mxu0 0.0
  %3902 = vmatprep.subr.mxu0 0.0
  %3903 = vmatpush1.msra.mxu0 0.0
  %3904 = vmatprep.subr.mxu0 0.0
  %3905 = vmatpush1.msra.mxu0 0.0
  %3906 = vmatprep.subr.mxu0 0.0
  %3907 = vmatpush1.msra.mxu0 0.0
  %3908 = vmatprep.subr.mxu0 0.0
  %3909 = vmatpush1.msra.mxu0 0.0
  %3910 = vmatprep.subr.mxu0 0.0
  %3911 = vmatpush1.msra.mxu0 0.0
  %3912 = vmatprep.subr.mxu0 0.0
  %3913 = vmatpush1.msra.mxu0 0.0
  %3914 = vmatprep.subr.mxu0 0.0
  %3915 = vmatpush1.msra.mxu0 0.0
  %3916 = vmatprep.subr.mxu0 0.0
  %3917 = vmatpush1.msra.mxu0 0.0
  %3918 = vmatprep.subr.mxu0 0.0
  %3919 = vmatpush1.msra.mxu0 0.0
  %3920 = vmatprep.subr.mxu0 0.0
  %3921 = vmatpush1.msra.mxu0 0.0
  %3922 = vmatprep.subr.mxu0 0.0
  %3923 = vmatpush1.msra.mxu0 0.0
  %3924 = vmatprep.subr.mxu0 0.0
  %3925 = vmatpush1.msra.mxu0 0.0
  %3926 = vmatprep.subr.mxu0 0.0
  %3927 = vmatpush1.msra.mxu0 0.0
  %3928 = vmatprep.subr.mxu0 0.0
  %3929 = vmatpush1.msra.mxu0 0.0
  %3930 = vmatprep.subr.mxu0 0.0
  %3931 = vmatpush1.msra.mxu0 0.0
  %3932 = vmatprep.mubr.f32.mxu0 0.0
  %v3933 = vand.u32 %v3527, 4294901760
  %3934 = vmatmul.mubr.f32.gmra.mrb[0].mxu0 %v3933
  %v3935 = vpop.f32.mrb[0].mxu0
  %v3936 = vadd.f32 %v3853, %v3935
  %v3937 = vpop.f32.mrb[0].mxu0
  %3938 = vdwg.mxu0
  %3939 = vmatprep.subr.mxu0 0.0
  %v3940 = vand.u32 %v929, 4294901760
  %3941 = vmatpush1.msra.mxu0 %v3940
  %3942 = vmatprep.subr.mxu0 0.0
  %v3943 = vand.u32 %v930, 4294901760
  %3944 = vmatpush1.msra.mxu0 %v3943
  %3945 = vmatprep.subr.mxu0 0.0
  %v3946 = vand.u32 %v931, 4294901760
  %3947 = vmatpush1.msra.mxu0 %v3946
  %3948 = vmatprep.subr.mxu0 0.0
  %v3949 = vand.u32 %v932, 4294901760
  %3950 = vmatpush1.msra.mxu0 %v3949
  %3951 = vmatprep.subr.mxu0 0.0
  %3952 = vmatpush1.msra.mxu0 0.0
  %3953 = vmatprep.subr.mxu0 0.0
  %3954 = vmatpush1.msra.mxu0 0.0
  %3955 = vmatprep.subr.mxu0 0.0
  %3956 = vmatpush1.msra.mxu0 0.0
  %3957 = vmatprep.subr.mxu0 0.0
  %3958 = vmatpush1.msra.mxu0 0.0
  %3959 = vmatprep.subr.mxu0 0.0
  %3960 = vmatpush1.msra.mxu0 0.0
  %3961 = vmatprep.subr.mxu0 0.0
  %3962 = vmatpush1.msra.mxu0 0.0
  %3963 = vmatprep.subr.mxu0 0.0
  %3964 = vmatpush1.msra.mxu0 0.0
  %3965 = vmatprep.subr.mxu0 0.0
  %3966 = vmatpush1.msra.mxu0 0.0
  %3967 = vmatprep.subr.mxu0 0.0
  %3968 = vmatpush1.msra.mxu0 0.0
  %3969 = vmatprep.subr.mxu0 0.0
  %3970 = vmatpush1.msra.mxu0 0.0
  %3971 = vmatprep.subr.mxu0 0.0
  %3972 = vmatpush1.msra.mxu0 0.0
  %3973 = vmatprep.subr.mxu0 0.0
  %3974 = vmatpush1.msra.mxu0 0.0
  %3975 = vmatprep.subr.mxu0 0.0
  %3976 = vmatpush1.msra.mxu0 0.0
  %3977 = vmatprep.subr.mxu0 0.0
  %3978 = vmatpush1.msra.mxu0 0.0
  %3979 = vmatprep.subr.mxu0 0.0
  %3980 = vmatpush1.msra.mxu0 0.0
  %3981 = vmatprep.subr.mxu0 0.0
  %3982 = vmatpush1.msra.mxu0 0.0
  %3983 = vmatprep.subr.mxu0 0.0
  %3984 = vmatpush1.msra.mxu0 0.0
  %3985 = vmatprep.subr.mxu0 0.0
  %3986 = vmatpush1.msra.mxu0 0.0
  %3987 = vmatprep.subr.mxu0 0.0
  %3988 = vmatpush1.msra.mxu0 0.0
  %3989 = vmatprep.subr.mxu0 0.0
  %3990 = vmatpush1.msra.mxu0 0.0
  %3991 = vmatprep.subr.mxu0 0.0
  %3992 = vmatpush1.msra.mxu0 0.0
  %3993 = vmatprep.subr.mxu0 0.0
  %3994 = vmatpush1.msra.mxu0 0.0
  %3995 = vmatprep.subr.mxu0 0.0
  %3996 = vmatpush1.msra.mxu0 0.0
  %3997 = vmatprep.subr.mxu0 0.0
  %3998 = vmatpush1.msra.mxu0 0.0
  %3999 = vmatprep.subr.mxu0 0.0
  %4000 = vmatpush1.msra.mxu0 0.0
  %4001 = vmatprep.subr.mxu0 0.0
  %4002 = vmatpush1.msra.mxu0 0.0
  %4003 = vmatprep.subr.mxu0 0.0
  %4004 = vmatpush1.msra.mxu0 0.0
  %4005 = vmatprep.subr.mxu0 0.0
  %4006 = vmatpush1.msra.mxu0 0.0
  %4007 = vmatprep.mubr.f32.mxu0 0.0
  %v4008 = vand.u32 %v3527, 4294901760
  %4009 = vmatmul.mubr.f32.gmra.mrb[0].mxu0 %v4008
  %v4010 = vpop.f32.mrb[0].mxu0
  %v4011 = vadd.f32 %v3936, %v4010
  %v4012 = vpop.f32.mrb[0].mxu0
  %4013 = vdwg.mxu0
  %v4014 = vadd.f32 %v3523, %v4011
  %v4015 = vxor.u32 %v4014, 2147483648
  %v4016 = vmul.f32 %v4015, 1.442695
  %v4017 = vpow.pop %v4016
  %v4018 = vadd.f32 %v4017, 1.0
  %v4019 = vrcp.pop %v4018
  %v4020 = vmul.f32 1.0, %v4019
  %v4021 = vtanh.pop %v4014
  %v4022 = vmul.f32 %v4020, %v3515
  %4024 = vrot.lane.b32.xlu0 %v4021, 64
  %v4025 = vpop.permute.xlu0 %4024
  %v4027 = vmul.f32 %v4020, %v4025
  %4029 = vrot.lane.b32.xlu0 %v4027, 32
  %v4030 = vpop.permute.xlu0 %4029
  %v4032 = vadd.f32 %v4022, %v4030
  %v4033 = vtanh.pop %v4032
  %4035 = vrot.lane.b32.xlu0 %v4033, 64
  %v4036 = vpop.permute.xlu0 %4035
  %v4038 = vmul.f32 %v4020, %v4036
  %s4039 = scalar_lea.vmem [#allocation4], 48
  %v4040 = vld [vmem:[%s4039] sm:$0xff]
  %4042 = vrot.lane.b32.xlu0 %v4038, 32
  %v4043 = vpop.permute.xlu0 %4042
  %v4044 = vsel %vm936, %v4043, 0
  %4046 = vmatprep.subr.mxu0 0.0
  %v4047 = vand.u32 %v929, 4294901760
  %4048 = vmatpush1.msra.mxu0 %v4047
  %4049 = vmatprep.subr.mxu0 0.0
  %v4050 = vand.u32 %v930, 4294901760
  %4051 = vmatpush1.msra.mxu0 %v4050
  %4052 = vmatprep.subr.mxu0 0.0
  %v4053 = vand.u32 %v931, 4294901760
  %4054 = vmatpush1.msra.mxu0 %v4053
  %4055 = vmatprep.subr.mxu0 0.0
  %v4056 = vand.u32 %v932, 4294901760
  %4057 = vmatpush1.msra.mxu0 %v4056
  %4058 = vmatprep.subr.mxu0 0.0
  %4059 = vmatpush1.msra.mxu0 0.0
  %4060 = vmatprep.subr.mxu0 0.0
  %4061 = vmatpush1.msra.mxu0 0.0
  %4062 = vmatprep.subr.mxu0 0.0
  %4063 = vmatpush1.msra.mxu0 0.0
  %4064 = vmatprep.subr.mxu0 0.0
  %4065 = vmatpush1.msra.mxu0 0.0
  %4066 = vmatprep.subr.mxu0 0.0
  %4067 = vmatpush1.msra.mxu0 0.0
  %4068 = vmatprep.subr.mxu0 0.0
  %4069 = vmatpush1.msra.mxu0 0.0
  %4070 = vmatprep.subr.mxu0 0.0
  %4071 = vmatpush1.msra.mxu0 0.0
  %4072 = vmatprep.subr.mxu0 0.0
  %4073 = vmatpush1.msra.mxu0 0.0
  %4074 = vmatprep.subr.mxu0 0.0
  %4075 = vmatpush1.msra.mxu0 0.0
  %4076 = vmatprep.subr.mxu0 0.0
  %4077 = vmatpush1.msra.mxu0 0.0
  %4078 = vmatprep.subr.mxu0 0.0
  %4079 = vmatpush1.msra.mxu0 0.0
  %4080 = vmatprep.subr.mxu0 0.0
  %4081 = vmatpush1.msra.mxu0 0.0
  %4082 = vmatprep.subr.mxu0 0.0
  %4083 = vmatpush1.msra.mxu0 0.0
  %4084 = vmatprep.subr.mxu0 0.0
  %4085 = vmatpush1.msra.mxu0 0.0
  %4086 = vmatprep.subr.mxu0 0.0
  %4087 = vmatpush1.msra.mxu0 0.0
  %4088 = vmatprep.subr.mxu0 0.0
  %4089 = vmatpush1.msra.mxu0 0.0
  %4090 = vmatprep.subr.mxu0 0.0
  %4091 = vmatpush1.msra.mxu0 0.0
  %4092 = vmatprep.subr.mxu0 0.0
  %4093 = vmatpush1.msra.mxu0 0.0
  %4094 = vmatprep.subr.mxu0 0.0
  %4095 = vmatpush1.msra.mxu0 0.0
  %4096 = vmatprep.subr.mxu0 0.0
  %4097 = vmatpush1.msra.mxu0 0.0
  %4098 = vmatprep.subr.mxu0 0.0
  %4099 = vmatpush1.msra.mxu0 0.0
  %4100 = vmatprep.subr.mxu0 0.0
  %4101 = vmatpush1.msra.mxu0 0.0
  %4102 = vmatprep.subr.mxu0 0.0
  %4103 = vmatpush1.msra.mxu0 0.0
  %4104 = vmatprep.subr.mxu0 0.0
  %4105 = vmatpush1.msra.mxu0 0.0
  %4106 = vmatprep.subr.mxu0 0.0
  %4107 = vmatpush1.msra.mxu0 0.0
  %4108 = vmatprep.subr.mxu0 0.0
  %4109 = vmatpush1.msra.mxu0 0.0
  %4110 = vmatprep.subr.mxu0 0.0
  %4111 = vmatpush1.msra.mxu0 0.0
  %4112 = vmatprep.subr.mxu0 0.0
  %4113 = vmatpush1.msra.mxu0 0.0
  %4114 = vmatprep.mubr.f32.mxu0 0.0
  %v4115 = vand.u32 %v4044, 4294901760
  %v4116 = vsub.f32 %v4044, %v4115
  %v4117 = vand.u32 %v4116, 4294901760
  %v4118 = vsub.f32 %v4116, %v4117
  %v4119 = vand.u32 %v4118, 4294901760
  %4120 = vmatmul.mubr.f32.gmra.mrb[0].mxu0 %v4119
  %v4121 = vpop.f32.mrb[0].mxu0
  %v4122 = vadd.f32 0.0, %v4121
  %v4123 = vpop.f32.mrb[0].mxu0
  %4124 = vdwg.mxu0
  %4125 = vmatprep.subr.mxu0 0.0
  %v4126 = vand.u32 %v929, 4294901760
  %v4127 = vsub.f32 %v929, %v4126
  %v4128 = vand.u32 %v4127, 4294901760
  %v4129 = vsub.f32 %v4127, %v4128
  %v4130 = vand.u32 %v4129, 4294901760
  %4131 = vmatpush1.msra.mxu0 %v4130
  %4132 = vmatprep.subr.mxu0 0.0
  %v4133 = vand.u32 %v930, 4294901760
  %v4134 = vsub.f32 %v930, %v4133
  %v4135 = vand.u32 %v4134, 4294901760
  %v4136 = vsub.f32 %v4134, %v4135
  %v4137 = vand.u32 %v4136, 4294901760
  %4138 = vmatpush1.msra.mxu0 %v4137
  %4139 = vmatprep.subr.mxu0 0.0
  %v4140 = vand.u32 %v931, 4294901760
  %v4141 = vsub.f32 %v931, %v4140
  %v4142 = vand.u32 %v4141, 4294901760
  %v4143 = vsub.f32 %v4141, %v4142
  %v4144 = vand.u32 %v4143, 4294901760
  %4145 = vmatpush1.msra.mxu0 %v4144
  %4146 = vmatprep.subr.mxu0 0.0
  %v4147 = vand.u32 %v932, 4294901760
  %v4148 = vsub.f32 %v932, %v4147
  %v4149 = vand.u32 %v4148, 4294901760
  %v4150 = vsub.f32 %v4148, %v4149
  %v4151 = vand.u32 %v4150, 4294901760
  %4152 = vmatpush1.msra.mxu0 %v4151
  %4153 = vmatprep.subr.mxu0 0.0
  %4154 = vmatpush1.msra.mxu0 0.0
  %4155 = vmatprep.subr.mxu0 0.0
  %4156 = vmatpush1.msra.mxu0 0.0
  %4157 = vmatprep.subr.mxu0 0.0
  %4158 = vmatpush1.msra.mxu0 0.0
  %4159 = vmatprep.subr.mxu0 0.0
  %4160 = vmatpush1.msra.mxu0 0.0
  %4161 = vmatprep.subr.mxu0 0.0
  %4162 = vmatpush1.msra.mxu0 0.0
  %4163 = vmatprep.subr.mxu0 0.0
  %4164 = vmatpush1.msra.mxu0 0.0
  %4165 = vmatprep.subr.mxu0 0.0
  %4166 = vmatpush1.msra.mxu0 0.0
  %4167 = vmatprep.subr.mxu0 0.0
  %4168 = vmatpush1.msra.mxu0 0.0
  %4169 = vmatprep.subr.mxu0 0.0
  %4170 = vmatpush1.msra.mxu0 0.0
  %4171 = vmatprep.subr.mxu0 0.0
  %4172 = vmatpush1.msra.mxu0 0.0
  %4173 = vmatprep.subr.mxu0 0.0
  %4174 = vmatpush1.msra.mxu0 0.0
  %4175 = vmatprep.subr.mxu0 0.0
  %4176 = vmatpush1.msra.mxu0 0.0
  %4177 = vmatprep.subr.mxu0 0.0
  %4178 = vmatpush1.msra.mxu0 0.0
  %4179 = vmatprep.subr.mxu0 0.0
  %4180 = vmatpush1.msra.mxu0 0.0
  %4181 = vmatprep.subr.mxu0 0.0
  %4182 = vmatpush1.msra.mxu0 0.0
  %4183 = vmatprep.subr.mxu0 0.0
  %4184 = vmatpush1.msra.mxu0 0.0
  %4185 = vmatprep.subr.mxu0 0.0
  %4186 = vmatpush1.msra.mxu0 0.0
  %4187 = vmatprep.subr.mxu0 0.0
  %4188 = vmatpush1.msra.mxu0 0.0
  %4189 = vmatprep.subr.mxu0 0.0
  %4190 = vmatpush1.msra.mxu0 0.0
  %4191 = vmatprep.subr.mxu0 0.0
  %4192 = vmatpush1.msra.mxu0 0.0
  %4193 = vmatprep.subr.mxu0 0.0
  %4194 = vmatpush1.msra.mxu0 0.0
  %4195 = vmatprep.subr.mxu0 0.0
  %4196 = vmatpush1.msra.mxu0 0.0
  %4197 = vmatprep.subr.mxu0 0.0
  %4198 = vmatpush1.msra.mxu0 0.0
  %4199 = vmatprep.subr.mxu0 0.0
  %4200 = vmatpush1.msra.mxu0 0.0
  %4201 = vmatprep.subr.mxu0 0.0
  %4202 = vmatpush1.msra.mxu0 0.0
  %4203 = vmatprep.subr.mxu0 0.0
  %4204 = vmatpush1.msra.mxu0 0.0
  %4205 = vmatprep.subr.mxu0 0.0
  %4206 = vmatpush1.msra.mxu0 0.0
  %4207 = vmatprep.subr.mxu0 0.0
  %4208 = vmatpush1.msra.mxu0 0.0
  %4209 = vmatprep.mubr.f32.mxu0 0.0
  %v4210 = vand.u32 %v4044, 4294901760
  %4211 = vmatmul.mubr.f32.gmra.mrb[0].mxu0 %v4210
  %v4212 = vpop.f32.mrb[0].mxu0
  %v4213 = vadd.f32 %v4122, %v4212
  %v4214 = vpop.f32.mrb[0].mxu0
  %4215 = vdwg.mxu0
  %4216 = vmatprep.subr.mxu0 0.0
  %v4217 = vand.u32 %v929, 4294901760
  %v4218 = vsub.f32 %v929, %v4217
  %4219 = vmatpush1.msra.mxu0 %v4218
  %4220 = vmatprep.subr.mxu0 0.0
  %v4221 = vand.u32 %v930, 4294901760
  %v4222 = vsub.f32 %v930, %v4221
  %4223 = vmatpush1.msra.mxu0 %v4222
  %4224 = vmatprep.subr.mxu0 0.0
  %v4225 = vand.u32 %v931, 4294901760
  %v4226 = vsub.f32 %v931, %v4225
  %4227 = vmatpush1.msra.mxu0 %v4226
  %4228 = vmatprep.subr.mxu0 0.0
  %v4229 = vand.u32 %v932, 4294901760
  %v4230 = vsub.f32 %v932, %v4229
  %4231 = vmatpush1.msra.mxu0 %v4230
  %4232 = vmatprep.subr.mxu0 0.0
  %4233 = vmatpush1.msra.mxu0 0.0
  %4234 = vmatprep.subr.mxu0 0.0
  %4235 = vmatpush1.msra.mxu0 0.0
  %4236 = vmatprep.subr.mxu0 0.0
  %4237 = vmatpush1.msra.mxu0 0.0
  %4238 = vmatprep.subr.mxu0 0.0
  %4239 = vmatpush1.msra.mxu0 0.0
  %4240 = vmatprep.subr.mxu0 0.0
  %4241 = vmatpush1.msra.mxu0 0.0
  %4242 = vmatprep.subr.mxu0 0.0
  %4243 = vmatpush1.msra.mxu0 0.0
  %4244 = vmatprep.subr.mxu0 0.0
  %4245 = vmatpush1.msra.mxu0 0.0
  %4246 = vmatprep.subr.mxu0 0.0
  %4247 = vmatpush1.msra.mxu0 0.0
  %4248 = vmatprep.subr.mxu0 0.0
  %4249 = vmatpush1.msra.mxu0 0.0
  %4250 = vmatprep.subr.mxu0 0.0
  %4251 = vmatpush1.msra.mxu0 0.0
  %4252 = vmatprep.subr.mxu0 0.0
  %4253 = vmatpush1.msra.mxu0 0.0
  %4254 = vmatprep.subr.mxu0 0.0
  %4255 = vmatpush1.msra.mxu0 0.0
  %4256 = vmatprep.subr.mxu0 0.0
  %4257 = vmatpush1.msra.mxu0 0.0
  %4258 = vmatprep.subr.mxu0 0.0
  %4259 = vmatpush1.msra.mxu0 0.0
  %4260 = vmatprep.subr.mxu0 0.0
  %4261 = vmatpush1.msra.mxu0 0.0
  %4262 = vmatprep.subr.mxu0 0.0
  %4263 = vmatpush1.msra.mxu0 0.0
  %4264 = vmatprep.subr.mxu0 0.0
  %4265 = vmatpush1.msra.mxu0 0.0
  %4266 = vmatprep.subr.mxu0 0.0
  %4267 = vmatpush1.msra.mxu0 0.0
  %4268 = vmatprep.subr.mxu0 0.0
  %4269 = vmatpush1.msra.mxu0 0.0
  %4270 = vmatprep.subr.mxu0 0.0
  %4271 = vmatpush1.msra.mxu0 0.0
  %4272 = vmatprep.subr.mxu0 0.0
  %4273 = vmatpush1.msra.mxu0 0.0
  %4274 = vmatprep.subr.mxu0 0.0
  %4275 = vmatpush1.msra.mxu0 0.0
  %4276 = vmatprep.subr.mxu0 0.0
  %4277 = vmatpush1.msra.mxu0 0.0
  %4278 = vmatprep.subr.mxu0 0.0
  %4279 = vmatpush1.msra.mxu0 0.0
  %4280 = vmatprep.subr.mxu0 0.0
  %4281 = vmatpush1.msra.mxu0 0.0
  %4282 = vmatprep.subr.mxu0 0.0
  %4283 = vmatpush1.msra.mxu0 0.0
  %4284 = vmatprep.subr.mxu0 0.0
  %4285 = vmatpush1.msra.mxu0 0.0
  %4286 = vmatprep.subr.mxu0 0.0
  %4287 = vmatpush1.msra.mxu0 0.0
  %4288 = vmatprep.mubr.f32.mxu0 0.0
  %v4289 = vand.u32 %v4044, 4294901760
  %v4290 = vsub.f32 %v4044, %v4289
  %4291 = vmatmul.mubr.f32.gmra.mrb[0].mxu0 %v4290
  %v4292 = vpop.f32.mrb[0].mxu0
  %v4293 = vadd.f32 %v4213, %v4292
  %v4294 = vpop.f32.mrb[0].mxu0
  %4295 = vdwg.mxu0
  %4296 = vmatprep.subr.mxu0 0.0
  %v4297 = vand.u32 %v929, 4294901760
  %4298 = vmatpush1.msra.mxu0 %v4297
  %4299 = vmatprep.subr.mxu0 0.0
  %v4300 = vand.u32 %v930, 4294901760
  %4301 = vmatpush1.msra.mxu0 %v4300
  %4302 = vmatprep.subr.mxu0 0.0
  %v4303 = vand.u32 %v931, 4294901760
  %4304 = vmatpush1.msra.mxu0 %v4303
  %4305 = vmatprep.subr.mxu0 0.0
  %v4306 = vand.u32 %v932, 4294901760
  %4307 = vmatpush1.msra.mxu0 %v4306
  %4308 = vmatprep.subr.mxu0 0.0
  %4309 = vmatpush1.msra.mxu0 0.0
  %4310 = vmatprep.subr.mxu0 0.0
  %4311 = vmatpush1.msra.mxu0 0.0
  %4312 = vmatprep.subr.mxu0 0.0
  %4313 = vmatpush1.msra.mxu0 0.0
  %4314 = vmatprep.subr.mxu0 0.0
  %4315 = vmatpush1.msra.mxu0 0.0
  %4316 = vmatprep.subr.mxu0 0.0
  %4317 = vmatpush1.msra.mxu0 0.0
  %4318 = vmatprep.subr.mxu0 0.0
  %4319 = vmatpush1.msra.mxu0 0.0
  %4320 = vmatprep.subr.mxu0 0.0
  %4321 = vmatpush1.msra.mxu0 0.0
  %4322 = vmatprep.subr.mxu0 0.0
  %4323 = vmatpush1.msra.mxu0 0.0
  %4324 = vmatprep.subr.mxu0 0.0
  %4325 = vmatpush1.msra.mxu0 0.0
  %4326 = vmatprep.subr.mxu0 0.0
  %4327 = vmatpush1.msra.mxu0 0.0
  %4328 = vmatprep.subr.mxu0 0.0
  %4329 = vmatpush1.msra.mxu0 0.0
  %4330 = vmatprep.subr.mxu0 0.0
  %4331 = vmatpush1.msra.mxu0 0.0
  %4332 = vmatprep.subr.mxu0 0.0
  %4333 = vmatpush1.msra.mxu0 0.0
  %4334 = vmatprep.subr.mxu0 0.0
  %4335 = vmatpush1.msra.mxu0 0.0
  %4336 = vmatprep.subr.mxu0 0.0
  %4337 = vmatpush1.msra.mxu0 0.0
  %4338 = vmatprep.subr.mxu0 0.0
  %4339 = vmatpush1.msra.mxu0 0.0
  %4340 = vmatprep.subr.mxu0 0.0
  %4341 = vmatpush1.msra.mxu0 0.0
  %4342 = vmatprep.subr.mxu0 0.0
  %4343 = vmatpush1.msra.mxu0 0.0
  %4344 = vmatprep.subr.mxu0 0.0
  %4345 = vmatpush1.msra.mxu0 0.0
  %4346 = vmatprep.subr.mxu0 0.0
  %4347 = vmatpush1.msra.mxu0 0.0
  %4348 = vmatprep.subr.mxu0 0.0
  %4349 = vmatpush1.msra.mxu0 0.0
  %4350 = vmatprep.subr.mxu0 0.0
  %4351 = vmatpush1.msra.mxu0 0.0
  %4352 = vmatprep.subr.mxu0 0.0
  %4353 = vmatpush1.msra.mxu0 0.0
  %4354 = vmatprep.subr.mxu0 0.0
  %4355 = vmatpush1.msra.mxu0 0.0
  %4356 = vmatprep.subr.mxu0 0.0
  %4357 = vmatpush1.msra.mxu0 0.0
  %4358 = vmatprep.subr.mxu0 0.0
  %4359 = vmatpush1.msra.mxu0 0.0
  %4360 = vmatprep.subr.mxu0 0.0
  %4361 = vmatpush1.msra.mxu0 0.0
  %4362 = vmatprep.subr.mxu0 0.0
  %4363 = vmatpush1.msra.mxu0 0.0
  %4364 = vmatprep.mubr.f32.mxu0 0.0
  %v4365 = vand.u32 %v4044, 4294901760
  %v4366 = vsub.f32 %v4044, %v4365
  %v4367 = vand.u32 %v4366, 4294901760
  %4368 = vmatmul.mubr.f32.gmra.mrb[0].mxu0 %v4367
  %v4369 = vpop.f32.mrb[0].mxu0
  %v4370 = vadd.f32 %v4293, %v4369
  %v4371 = vpop.f32.mrb[0].mxu0
  %4372 = vdwg.mxu0
  %4373 = vmatprep.subr.mxu0 0.0
  %v4374 = vand.u32 %v929, 4294901760
  %v4375 = vsub.f32 %v929, %v4374
  %v4376 = vand.u32 %v4375, 4294901760
  %4377 = vmatpush1.msra.mxu0 %v4376
  %4378 = vmatprep.subr.mxu0 0.0
  %v4379 = vand.u32 %v930, 4294901760
  %v4380 = vsub.f32 %v930, %v4379
  %v4381 = vand.u32 %v4380, 4294901760
  %4382 = vmatpush1.msra.mxu0 %v4381
  %4383 = vmatprep.subr.mxu0 0.0
  %v4384 = vand.u32 %v931, 4294901760
  %v4385 = vsub.f32 %v931, %v4384
  %v4386 = vand.u32 %v4385, 4294901760
  %4387 = vmatpush1.msra.mxu0 %v4386
  %4388 = vmatprep.subr.mxu0 0.0
  %v4389 = vand.u32 %v932, 4294901760
  %v4390 = vsub.f32 %v932, %v4389
  %v4391 = vand.u32 %v4390, 4294901760
  %4392 = vmatpush1.msra.mxu0 %v4391
  %4393 = vmatprep.subr.mxu0 0.0
  %4394 = vmatpush1.msra.mxu0 0.0
  %4395 = vmatprep.subr.mxu0 0.0
  %4396 = vmatpush1.msra.mxu0 0.0
  %4397 = vmatprep.subr.mxu0 0.0
  %4398 = vmatpush1.msra.mxu0 0.0
  %4399 = vmatprep.subr.mxu0 0.0
  %4400 = vmatpush1.msra.mxu0 0.0
  %4401 = vmatprep.subr.mxu0 0.0
  %4402 = vmatpush1.msra.mxu0 0.0
  %4403 = vmatprep.subr.mxu0 0.0
  %4404 = vmatpush1.msra.mxu0 0.0
  %4405 = vmatprep.subr.mxu0 0.0
  %4406 = vmatpush1.msra.mxu0 0.0
  %4407 = vmatprep.subr.mxu0 0.0
  %4408 = vmatpush1.msra.mxu0 0.0
  %4409 = vmatprep.subr.mxu0 0.0
  %4410 = vmatpush1.msra.mxu0 0.0
  %4411 = vmatprep.subr.mxu0 0.0
  %4412 = vmatpush1.msra.mxu0 0.0
  %4413 = vmatprep.subr.mxu0 0.0
  %4414 = vmatpush1.msra.mxu0 0.0
  %4415 = vmatprep.subr.mxu0 0.0
  %4416 = vmatpush1.msra.mxu0 0.0
  %4417 = vmatprep.subr.mxu0 0.0
  %4418 = vmatpush1.msra.mxu0 0.0
  %4419 = vmatprep.subr.mxu0 0.0
  %4420 = vmatpush1.msra.mxu0 0.0
  %4421 = vmatprep.subr.mxu0 0.0
  %4422 = vmatpush1.msra.mxu0 0.0
  %4423 = vmatprep.subr.mxu0 0.0
  %4424 = vmatpush1.msra.mxu0 0.0
  %4425 = vmatprep.subr.mxu0 0.0
  %4426 = vmatpush1.msra.mxu0 0.0
  %4427 = vmatprep.subr.mxu0 0.0
  %4428 = vmatpush1.msra.mxu0 0.0
  %4429 = vmatprep.subr.mxu0 0.0
  %4430 = vmatpush1.msra.mxu0 0.0
  %4431 = vmatprep.subr.mxu0 0.0
  %4432 = vmatpush1.msra.mxu0 0.0
  %4433 = vmatprep.subr.mxu0 0.0
  %4434 = vmatpush1.msra.mxu0 0.0
  %4435 = vmatprep.subr.mxu0 0.0
  %4436 = vmatpush1.msra.mxu0 0.0
  %4437 = vmatprep.subr.mxu0 0.0
  %4438 = vmatpush1.msra.mxu0 0.0
  %4439 = vmatprep.subr.mxu0 0.0
  %4440 = vmatpush1.msra.mxu0 0.0
  %4441 = vmatprep.subr.mxu0 0.0
  %4442 = vmatpush1.msra.mxu0 0.0
  %4443 = vmatprep.subr.mxu0 0.0
  %4444 = vmatpush1.msra.mxu0 0.0
  %4445 = vmatprep.subr.mxu0 0.0
  %4446 = vmatpush1.msra.mxu0 0.0
  %4447 = vmatprep.subr.mxu0 0.0
  %4448 = vmatpush1.msra.mxu0 0.0
  %4449 = vmatprep.mubr.f32.mxu0 0.0
  %v4450 = vand.u32 %v4044, 4294901760
  %4451 = vmatmul.mubr.f32.gmra.mrb[0].mxu0 %v4450
  %v4452 = vpop.f32.mrb[0].mxu0
  %v4453 = vadd.f32 %v4370, %v4452
  %v4454 = vpop.f32.mrb[0].mxu0
  %4455 = vdwg.mxu0
  %4456 = vmatprep.subr.mxu0 0.0
  %v4457 = vand.u32 %v929, 4294901760
  %4458 = vmatpush1.msra.mxu0 %v4457
  %4459 = vmatprep.subr.mxu0 0.0
  %v4460 = vand.u32 %v930, 4294901760
  %4461 = vmatpush1.msra.mxu0 %v4460
  %4462 = vmatprep.subr.mxu0 0.0
  %v4463 = vand.u32 %v931, 4294901760
  %4464 = vmatpush1.msra.mxu0 %v4463
  %4465 = vmatprep.subr.mxu0 0.0
  %v4466 = vand.u32 %v932, 4294901760
  %4467 = vmatpush1.msra.mxu0 %v4466
  %4468 = vmatprep.subr.mxu0 0.0
  %4469 = vmatpush1.msra.mxu0 0.0
  %4470 = vmatprep.subr.mxu0 0.0
  %4471 = vmatpush1.msra.mxu0 0.0
  %4472 = vmatprep.subr.mxu0 0.0
  %4473 = vmatpush1.msra.mxu0 0.0
  %4474 = vmatprep.subr.mxu0 0.0
  %4475 = vmatpush1.msra.mxu0 0.0
  %4476 = vmatprep.subr.mxu0 0.0
  %4477 = vmatpush1.msra.mxu0 0.0
  %4478 = vmatprep.subr.mxu0 0.0
  %4479 = vmatpush1.msra.mxu0 0.0
  %4480 = vmatprep.subr.mxu0 0.0
  %4481 = vmatpush1.msra.mxu0 0.0
  %4482 = vmatprep.subr.mxu0 0.0
  %4483 = vmatpush1.msra.mxu0 0.0
  %4484 = vmatprep.subr.mxu0 0.0
  %4485 = vmatpush1.msra.mxu0 0.0
  %4486 = vmatprep.subr.mxu0 0.0
  %4487 = vmatpush1.msra.mxu0 0.0
  %4488 = vmatprep.subr.mxu0 0.0
  %4489 = vmatpush1.msra.mxu0 0.0
  %4490 = vmatprep.subr.mxu0 0.0
  %4491 = vmatpush1.msra.mxu0 0.0
  %4492 = vmatprep.subr.mxu0 0.0
  %4493 = vmatpush1.msra.mxu0 0.0
  %4494 = vmatprep.subr.mxu0 0.0
  %4495 = vmatpush1.msra.mxu0 0.0
  %4496 = vmatprep.subr.mxu0 0.0
  %4497 = vmatpush1.msra.mxu0 0.0
  %4498 = vmatprep.subr.mxu0 0.0
  %4499 = vmatpush1.msra.mxu0 0.0
  %4500 = vmatprep.subr.mxu0 0.0
  %4501 = vmatpush1.msra.mxu0 0.0
  %4502 = vmatprep.subr.mxu0 0.0
  %4503 = vmatpush1.msra.mxu0 0.0
  %4504 = vmatprep.subr.mxu0 0.0
  %4505 = vmatpush1.msra.mxu0 0.0
  %4506 = vmatprep.subr.mxu0 0.0
  %4507 = vmatpush1.msra.mxu0 0.0
  %4508 = vmatprep.subr.mxu0 0.0
  %4509 = vmatpush1.msra.mxu0 0.0
  %4510 = vmatprep.subr.mxu0 0.0
  %4511 = vmatpush1.msra.mxu0 0.0
  %4512 = vmatprep.subr.mxu0 0.0
  %4513 = vmatpush1.msra.mxu0 0.0
  %4514 = vmatprep.subr.mxu0 0.0
  %4515 = vmatpush1.msra.mxu0 0.0
  %4516 = vmatprep.subr.mxu0 0.0
  %4517 = vmatpush1.msra.mxu0 0.0
  %4518 = vmatprep.subr.mxu0 0.0
  %4519 = vmatpush1.msra.mxu0 0.0
  %4520 = vmatprep.subr.mxu0 0.0
  %4521 = vmatpush1.msra.mxu0 0.0
  %4522 = vmatprep.subr.mxu0 0.0
  %4523 = vmatpush1.msra.mxu0 0.0
  %4524 = vmatprep.mubr.f32.mxu0 0.0
  %v4525 = vand.u32 %v4044, 4294901760
  %4526 = vmatmul.mubr.f32.gmra.mrb[0].mxu0 %v4525
  %v4527 = vpop.f32.mrb[0].mxu0
  %v4528 = vadd.f32 %v4453, %v4527
  %v4529 = vpop.f32.mrb[0].mxu0
  %4530 = vdwg.mxu0
  %v4531 = vadd.f32 %v4040, %v4528
  %v4532 = vxor.u32 %v4531, 2147483648
  %v4533 = vmul.f32 %v4532, 1.442695
  %v4534 = vpow.pop %v4533
  %v4535 = vadd.f32 %v4534, 1.0
  %v4536 = vrcp.pop %v4535
  %v4537 = vmul.f32 1.0, %v4536
  %v4538 = vtanh.pop %v4531
  %v4539 = vmul.f32 %v4537, %v4032
  %4541 = vrot.lane.b32.xlu0 %v4538, 64
  %v4542 = vpop.permute.xlu0 %4541
  %v4544 = vmul.f32 %v4537, %v4542
  %4546 = vrot.lane.b32.xlu0 %v4544, 32
  %v4547 = vpop.permute.xlu0 %4546
  %v4549 = vadd.f32 %v4539, %v4547
  %v4550 = vtanh.pop %v4549
  %4552 = vrot.lane.b32.xlu0 %v4550, 64
  %v4553 = vpop.permute.xlu0 %4552
  %v4555 = vmul.f32 %v4537, %v4553
  %s4556 = scalar_lea.vmem [#allocation4], 56
  %v4557 = vld [vmem:[%s4556] sm:$0xff]
  %4559 = vrot.lane.b32.xlu0 %v4555, 32
  %v4560 = vpop.permute.xlu0 %4559
  %v4561 = vsel %vm936, %v4560, 0
  %4563 = vmatprep.subr.mxu0 0.0
  %v4564 = vand.u32 %v929, 4294901760
  %4565 = vmatpush1.msra.mxu0 %v4564
  %4566 = vmatprep.subr.mxu0 0.0
  %v4567 = vand.u32 %v930, 4294901760
  %4568 = vmatpush1.msra.mxu0 %v4567
  %4569 = vmatprep.subr.mxu0 0.0
  %v4570 = vand.u32 %v931, 4294901760
  %4571 = vmatpush1.msra.mxu0 %v4570
  %4572 = vmatprep.subr.mxu0 0.0
  %v4573 = vand.u32 %v932, 4294901760
  %4574 = vmatpush1.msra.mxu0 %v4573
  %4575 = vmatprep.subr.mxu0 0.0
  %4576 = vmatpush1.msra.mxu0 0.0
  %4577 = vmatprep.subr.mxu0 0.0
  %4578 = vmatpush1.msra.mxu0 0.0
  %4579 = vmatprep.subr.mxu0 0.0
  %4580 = vmatpush1.msra.mxu0 0.0
  %4581 = vmatprep.subr.mxu0 0.0
  %4582 = vmatpush1.msra.mxu0 0.0
  %4583 = vmatprep.subr.mxu0 0.0
  %4584 = vmatpush1.msra.mxu0 0.0
  %4585 = vmatprep.subr.mxu0 0.0
  %4586 = vmatpush1.msra.mxu0 0.0
  %4587 = vmatprep.subr.mxu0 0.0
  %4588 = vmatpush1.msra.mxu0 0.0
  %4589 = vmatprep.subr.mxu0 0.0
  %4590 = vmatpush1.msra.mxu0 0.0
  %4591 = vmatprep.subr.mxu0 0.0
  %4592 = vmatpush1.msra.mxu0 0.0
  %4593 = vmatprep.subr.mxu0 0.0
  %4594 = vmatpush1.msra.mxu0 0.0
  %4595 = vmatprep.subr.mxu0 0.0
  %4596 = vmatpush1.msra.mxu0 0.0
  %4597 = vmatprep.subr.mxu0 0.0
  %4598 = vmatpush1.msra.mxu0 0.0
  %4599 = vmatprep.subr.mxu0 0.0
  %4600 = vmatpush1.msra.mxu0 0.0
  %4601 = vmatprep.subr.mxu0 0.0
  %4602 = vmatpush1.msra.mxu0 0.0
  %4603 = vmatprep.subr.mxu0 0.0
  %4604 = vmatpush1.msra.mxu0 0.0
  %4605 = vmatprep.subr.mxu0 0.0
  %4606 = vmatpush1.msra.mxu0 0.0
  %4607 = vmatprep.subr.mxu0 0.0
  %4608 = vmatpush1.msra.mxu0 0.0
  %4609 = vmatprep.subr.mxu0 0.0
  %4610 = vmatpush1.msra.mxu0 0.0
  %4611 = vmatprep.subr.mxu0 0.0
  %4612 = vmatpush1.msra.mxu0 0.0
  %4613 = vmatprep.subr.mxu0 0.0
  %4614 = vmatpush1.msra.mxu0 0.0
  %4615 = vmatprep.subr.mxu0 0.0
  %4616 = vmatpush1.msra.mxu0 0.0
  %4617 = vmatprep.subr.mxu0 0.0
  %4618 = vmatpush1.msra.mxu0 0.0
  %4619 = vmatprep.subr.mxu0 0.0
  %4620 = vmatpush1.msra.mxu0 0.0
  %4621 = vmatprep.subr.mxu0 0.0
  %4622 = vmatpush1.msra.mxu0 0.0
  %4623 = vmatprep.subr.mxu0 0.0
  %4624 = vmatpush1.msra.mxu0 0.0
  %4625 = vmatprep.subr.mxu0 0.0
  %4626 = vmatpush1.msra.mxu0 0.0
  %4627 = vmatprep.subr.mxu0 0.0
  %4628 = vmatpush1.msra.mxu0 0.0
  %4629 = vmatprep.subr.mxu0 0.0
  %4630 = vmatpush1.msra.mxu0 0.0
  %4631 = vmatprep.mubr.f32.mxu0 0.0
  %v4632 = vand.u32 %v4561, 4294901760
  %v4633 = vsub.f32 %v4561, %v4632
  %v4634 = vand.u32 %v4633, 4294901760
  %v4635 = vsub.f32 %v4633, %v4634
  %v4636 = vand.u32 %v4635, 4294901760
  %4637 = vmatmul.mubr.f32.gmra.mrb[0].mxu0 %v4636
  %v4638 = vpop.f32.mrb[0].mxu0
  %v4639 = vadd.f32 0.0, %v4638
  %v4640 = vpop.f32.mrb[0].mxu0
  %4641 = vdwg.mxu0
  %4642 = vmatprep.subr.mxu0 0.0
  %v4643 = vand.u32 %v929, 4294901760
  %v4644 = vsub.f32 %v929, %v4643
  %v4645 = vand.u32 %v4644, 4294901760
  %v4646 = vsub.f32 %v4644, %v4645
  %v4647 = vand.u32 %v4646, 4294901760
  %4648 = vmatpush1.msra.mxu0 %v4647
  %4649 = vmatprep.subr.mxu0 0.0
  %v4650 = vand.u32 %v930, 4294901760
  %v4651 = vsub.f32 %v930, %v4650
  %v4652 = vand.u32 %v4651, 4294901760
  %v4653 = vsub.f32 %v4651, %v4652
  %v4654 = vand.u32 %v4653, 4294901760
  %4655 = vmatpush1.msra.mxu0 %v4654
  %4656 = vmatprep.subr.mxu0 0.0
  %v4657 = vand.u32 %v931, 4294901760
  %v4658 = vsub.f32 %v931, %v4657
  %v4659 = vand.u32 %v4658, 4294901760
  %v4660 = vsub.f32 %v4658, %v4659
  %v4661 = vand.u32 %v4660, 4294901760
  %4662 = vmatpush1.msra.mxu0 %v4661
  %4663 = vmatprep.subr.mxu0 0.0
  %v4664 = vand.u32 %v932, 4294901760
  %v4665 = vsub.f32 %v932, %v4664
  %v4666 = vand.u32 %v4665, 4294901760
  %v4667 = vsub.f32 %v4665, %v4666
  %v4668 = vand.u32 %v4667, 4294901760
  %4669 = vmatpush1.msra.mxu0 %v4668
  %4670 = vmatprep.subr.mxu0 0.0
  %4671 = vmatpush1.msra.mxu0 0.0
  %4672 = vmatprep.subr.mxu0 0.0
  %4673 = vmatpush1.msra.mxu0 0.0
  %4674 = vmatprep.subr.mxu0 0.0
  %4675 = vmatpush1.msra.mxu0 0.0
  %4676 = vmatprep.subr.mxu0 0.0
  %4677 = vmatpush1.msra.mxu0 0.0
  %4678 = vmatprep.subr.mxu0 0.0
  %4679 = vmatpush1.msra.mxu0 0.0
  %4680 = vmatprep.subr.mxu0 0.0
  %4681 = vmatpush1.msra.mxu0 0.0
  %4682 = vmatprep.subr.mxu0 0.0
  %4683 = vmatpush1.msra.mxu0 0.0
  %4684 = vmatprep.subr.mxu0 0.0
  %4685 = vmatpush1.msra.mxu0 0.0
  %4686 = vmatprep.subr.mxu0 0.0
  %4687 = vmatpush1.msra.mxu0 0.0
  %4688 = vmatprep.subr.mxu0 0.0
  %4689 = vmatpush1.msra.mxu0 0.0
  %4690 = vmatprep.subr.mxu0 0.0
  %4691 = vmatpush1.msra.mxu0 0.0
  %4692 = vmatprep.subr.mxu0 0.0
  %4693 = vmatpush1.msra.mxu0 0.0
  %4694 = vmatprep.subr.mxu0 0.0
  %4695 = vmatpush1.msra.mxu0 0.0
  %4696 = vmatprep.subr.mxu0 0.0
  %4697 = vmatpush1.msra.mxu0 0.0
  %4698 = vmatprep.subr.mxu0 0.0
  %4699 = vmatpush1.msra.mxu0 0.0
  %4700 = vmatprep.subr.mxu0 0.0
  %4701 = vmatpush1.msra.mxu0 0.0
  %4702 = vmatprep.subr.mxu0 0.0
  %4703 = vmatpush1.msra.mxu0 0.0
  %4704 = vmatprep.subr.mxu0 0.0
  %4705 = vmatpush1.msra.mxu0 0.0
  %4706 = vmatprep.subr.mxu0 0.0
  %4707 = vmatpush1.msra.mxu0 0.0
  %4708 = vmatprep.subr.mxu0 0.0
  %4709 = vmatpush1.msra.mxu0 0.0
  %4710 = vmatprep.subr.mxu0 0.0
  %4711 = vmatpush1.msra.mxu0 0.0
  %4712 = vmatprep.subr.mxu0 0.0
  %4713 = vmatpush1.msra.mxu0 0.0
  %4714 = vmatprep.subr.mxu0 0.0
  %4715 = vmatpush1.msra.mxu0 0.0
  %4716 = vmatprep.subr.mxu0 0.0
  %4717 = vmatpush1.msra.mxu0 0.0
  %4718 = vmatprep.subr.mxu0 0.0
  %4719 = vmatpush1.msra.mxu0 0.0
  %4720 = vmatprep.subr.mxu0 0.0
  %4721 = vmatpush1.msra.mxu0 0.0
  %4722 = vmatprep.subr.mxu0 0.0
  %4723 = vmatpush1.msra.mxu0 0.0
  %4724 = vmatprep.subr.mxu0 0.0
  %4725 = vmatpush1.msra.mxu0 0.0
  %4726 = vmatprep.mubr.f32.mxu0 0.0
  %v4727 = vand.u32 %v4561, 4294901760
  %4728 = vmatmul.mubr.f32.gmra.mrb[0].mxu0 %v4727
  %v4729 = vpop.f32.mrb[0].mxu0
  %v4730 = vadd.f32 %v4639, %v4729
  %v4731 = vpop.f32.mrb[0].mxu0
  %4732 = vdwg.mxu0
  %4733 = vmatprep.subr.mxu0 0.0
  %v4734 = vand.u32 %v929, 4294901760
  %v4735 = vsub.f32 %v929, %v4734
  %4736 = vmatpush1.msra.mxu0 %v4735
  %4737 = vmatprep.subr.mxu0 0.0
  %v4738 = vand.u32 %v930, 4294901760
  %v4739 = vsub.f32 %v930, %v4738
  %4740 = vmatpush1.msra.mxu0 %v4739
  %4741 = vmatprep.subr.mxu0 0.0
  %v4742 = vand.u32 %v931, 4294901760
  %v4743 = vsub.f32 %v931, %v4742
  %4744 = vmatpush1.msra.mxu0 %v4743
  %4745 = vmatprep.subr.mxu0 0.0
  %v4746 = vand.u32 %v932, 4294901760
  %v4747 = vsub.f32 %v932, %v4746
  %4748 = vmatpush1.msra.mxu0 %v4747
  %4749 = vmatprep.subr.mxu0 0.0
  %4750 = vmatpush1.msra.mxu0 0.0
  %4751 = vmatprep.subr.mxu0 0.0
  %4752 = vmatpush1.msra.mxu0 0.0
  %4753 = vmatprep.subr.mxu0 0.0
  %4754 = vmatpush1.msra.mxu0 0.0
  %4755 = vmatprep.subr.mxu0 0.0
  %4756 = vmatpush1.msra.mxu0 0.0
  %4757 = vmatprep.subr.mxu0 0.0
  %4758 = vmatpush1.msra.mxu0 0.0
  %4759 = vmatprep.subr.mxu0 0.0
  %4760 = vmatpush1.msra.mxu0 0.0
  %4761 = vmatprep.subr.mxu0 0.0
  %4762 = vmatpush1.msra.mxu0 0.0
  %4763 = vmatprep.subr.mxu0 0.0
  %4764 = vmatpush1.msra.mxu0 0.0
  %4765 = vmatprep.subr.mxu0 0.0
  %4766 = vmatpush1.msra.mxu0 0.0
  %4767 = vmatprep.subr.mxu0 0.0
  %4768 = vmatpush1.msra.mxu0 0.0
  %4769 = vmatprep.subr.mxu0 0.0
  %4770 = vmatpush1.msra.mxu0 0.0
  %4771 = vmatprep.subr.mxu0 0.0
  %4772 = vmatpush1.msra.mxu0 0.0
  %4773 = vmatprep.subr.mxu0 0.0
  %4774 = vmatpush1.msra.mxu0 0.0
  %4775 = vmatprep.subr.mxu0 0.0
  %4776 = vmatpush1.msra.mxu0 0.0
  %4777 = vmatprep.subr.mxu0 0.0
  %4778 = vmatpush1.msra.mxu0 0.0
  %4779 = vmatprep.subr.mxu0 0.0
  %4780 = vmatpush1.msra.mxu0 0.0
  %4781 = vmatprep.subr.mxu0 0.0
  %4782 = vmatpush1.msra.mxu0 0.0
  %4783 = vmatprep.subr.mxu0 0.0
  %4784 = vmatpush1.msra.mxu0 0.0
  %4785 = vmatprep.subr.mxu0 0.0
  %4786 = vmatpush1.msra.mxu0 0.0
  %4787 = vmatprep.subr.mxu0 0.0
  %4788 = vmatpush1.msra.mxu0 0.0
  %4789 = vmatprep.subr.mxu0 0.0
  %4790 = vmatpush1.msra.mxu0 0.0
  %4791 = vmatprep.subr.mxu0 0.0
  %4792 = vmatpush1.msra.mxu0 0.0
  %4793 = vmatprep.subr.mxu0 0.0
  %4794 = vmatpush1.msra.mxu0 0.0
  %4795 = vmatprep.subr.mxu0 0.0
  %4796 = vmatpush1.msra.mxu0 0.0
  %4797 = vmatprep.subr.mxu0 0.0
  %4798 = vmatpush1.msra.mxu0 0.0
  %4799 = vmatprep.subr.mxu0 0.0
  %4800 = vmatpush1.msra.mxu0 0.0
  %4801 = vmatprep.subr.mxu0 0.0
  %4802 = vmatpush1.msra.mxu0 0.0
  %4803 = vmatprep.subr.mxu0 0.0
  %4804 = vmatpush1.msra.mxu0 0.0
  %4805 = vmatprep.mubr.f32.mxu0 0.0
  %v4806 = vand.u32 %v4561, 4294901760
  %v4807 = vsub.f32 %v4561, %v4806
  %4808 = vmatmul.mubr.f32.gmra.mrb[0].mxu0 %v4807
  %v4809 = vpop.f32.mrb[0].mxu0
  %v4810 = vadd.f32 %v4730, %v4809
  %v4811 = vpop.f32.mrb[0].mxu0
  %4812 = vdwg.mxu0
  %4813 = vmatprep.subr.mxu0 0.0
  %v4814 = vand.u32 %v929, 4294901760
  %4815 = vmatpush1.msra.mxu0 %v4814
  %4816 = vmatprep.subr.mxu0 0.0
  %v4817 = vand.u32 %v930, 4294901760
  %4818 = vmatpush1.msra.mxu0 %v4817
  %4819 = vmatprep.subr.mxu0 0.0
  %v4820 = vand.u32 %v931, 4294901760
  %4821 = vmatpush1.msra.mxu0 %v4820
  %4822 = vmatprep.subr.mxu0 0.0
  %v4823 = vand.u32 %v932, 4294901760
  %4824 = vmatpush1.msra.mxu0 %v4823
  %4825 = vmatprep.subr.mxu0 0.0
  %4826 = vmatpush1.msra.mxu0 0.0
  %4827 = vmatprep.subr.mxu0 0.0
  %4828 = vmatpush1.msra.mxu0 0.0
  %4829 = vmatprep.subr.mxu0 0.0
  %4830 = vmatpush1.msra.mxu0 0.0
  %4831 = vmatprep.subr.mxu0 0.0
  %4832 = vmatpush1.msra.mxu0 0.0
  %4833 = vmatprep.subr.mxu0 0.0
  %4834 = vmatpush1.msra.mxu0 0.0
  %4835 = vmatprep.subr.mxu0 0.0
  %4836 = vmatpush1.msra.mxu0 0.0
  %4837 = vmatprep.subr.mxu0 0.0
  %4838 = vmatpush1.msra.mxu0 0.0
  %4839 = vmatprep.subr.mxu0 0.0
  %4840 = vmatpush1.msra.mxu0 0.0
  %4841 = vmatprep.subr.mxu0 0.0
  %4842 = vmatpush1.msra.mxu0 0.0
  %4843 = vmatprep.subr.mxu0 0.0
  %4844 = vmatpush1.msra.mxu0 0.0
  %4845 = vmatprep.subr.mxu0 0.0
  %4846 = vmatpush1.msra.mxu0 0.0
  %4847 = vmatprep.subr.mxu0 0.0
  %4848 = vmatpush1.msra.mxu0 0.0
  %4849 = vmatprep.subr.mxu0 0.0
  %4850 = vmatpush1.msra.mxu0 0.0
  %4851 = vmatprep.subr.mxu0 0.0
  %4852 = vmatpush1.msra.mxu0 0.0
  %4853 = vmatprep.subr.mxu0 0.0
  %4854 = vmatpush1.msra.mxu0 0.0
  %4855 = vmatprep.subr.mxu0 0.0
  %4856 = vmatpush1.msra.mxu0 0.0
  %4857 = vmatprep.subr.mxu0 0.0
  %4858 = vmatpush1.msra.mxu0 0.0
  %4859 = vmatprep.subr.mxu0 0.0
  %4860 = vmatpush1.msra.mxu0 0.0
  %4861 = vmatprep.subr.mxu0 0.0
  %4862 = vmatpush1.msra.mxu0 0.0
  %4863 = vmatprep.subr.mxu0 0.0
  %4864 = vmatpush1.msra.mxu0 0.0
  %4865 = vmatprep.subr.mxu0 0.0
  %4866 = vmatpush1.msra.mxu0 0.0
  %4867 = vmatprep.subr.mxu0 0.0
  %4868 = vmatpush1.msra.mxu0 0.0
  %4869 = vmatprep.subr.mxu0 0.0
  %4870 = vmatpush1.msra.mxu0 0.0
  %4871 = vmatprep.subr.mxu0 0.0
  %4872 = vmatpush1.msra.mxu0 0.0
  %4873 = vmatprep.subr.mxu0 0.0
  %4874 = vmatpush1.msra.mxu0 0.0
  %4875 = vmatprep.subr.mxu0 0.0
  %4876 = vmatpush1.msra.mxu0 0.0
  %4877 = vmatprep.subr.mxu0 0.0
  %4878 = vmatpush1.msra.mxu0 0.0
  %4879 = vmatprep.subr.mxu0 0.0
  %4880 = vmatpush1.msra.mxu0 0.0
  %4881 = vmatprep.mubr.f32.mxu0 0.0
  %v4882 = vand.u32 %v4561, 4294901760
  %v4883 = vsub.f32 %v4561, %v4882
  %v4884 = vand.u32 %v4883, 4294901760
  %4885 = vmatmul.mubr.f32.gmra.mrb[0].mxu0 %v4884
  %v4886 = vpop.f32.mrb[0].mxu0
  %v4887 = vadd.f32 %v4810, %v4886
  %v4888 = vpop.f32.mrb[0].mxu0
  %4889 = vdwg.mxu0
  %4890 = vmatprep.subr.mxu0 0.0
  %v4891 = vand.u32 %v929, 4294901760
  %v4892 = vsub.f32 %v929, %v4891
  %v4893 = vand.u32 %v4892, 4294901760
  %4894 = vmatpush1.msra.mxu0 %v4893
  %4895 = vmatprep.subr.mxu0 0.0
  %v4896 = vand.u32 %v930, 4294901760
  %v4897 = vsub.f32 %v930, %v4896
  %v4898 = vand.u32 %v4897, 4294901760
  %4899 = vmatpush1.msra.mxu0 %v4898
  %4900 = vmatprep.subr.mxu0 0.0
  %v4901 = vand.u32 %v931, 4294901760
  %v4902 = vsub.f32 %v931, %v4901
  %v4903 = vand.u32 %v4902, 4294901760
  %4904 = vmatpush1.msra.mxu0 %v4903
  %4905 = vmatprep.subr.mxu0 0.0
  %v4906 = vand.u32 %v932, 4294901760
  %v4907 = vsub.f32 %v932, %v4906
  %v4908 = vand.u32 %v4907, 4294901760
  %4909 = vmatpush1.msra.mxu0 %v4908
  %4910 = vmatprep.subr.mxu0 0.0
  %4911 = vmatpush1.msra.mxu0 0.0
  %4912 = vmatprep.subr.mxu0 0.0
  %4913 = vmatpush1.msra.mxu0 0.0
  %4914 = vmatprep.subr.mxu0 0.0
  %4915 = vmatpush1.msra.mxu0 0.0
  %4916 = vmatprep.subr.mxu0 0.0
  %4917 = vmatpush1.msra.mxu0 0.0
  %4918 = vmatprep.subr.mxu0 0.0
  %4919 = vmatpush1.msra.mxu0 0.0
  %4920 = vmatprep.subr.mxu0 0.0
  %4921 = vmatpush1.msra.mxu0 0.0
  %4922 = vmatprep.subr.mxu0 0.0
  %4923 = vmatpush1.msra.mxu0 0.0
  %4924 = vmatprep.subr.mxu0 0.0
  %4925 = vmatpush1.msra.mxu0 0.0
  %4926 = vmatprep.subr.mxu0 0.0
  %4927 = vmatpush1.msra.mxu0 0.0
  %4928 = vmatprep.subr.mxu0 0.0
  %4929 = vmatpush1.msra.mxu0 0.0
  %4930 = vmatprep.subr.mxu0 0.0
  %4931 = vmatpush1.msra.mxu0 0.0
  %4932 = vmatprep.subr.mxu0 0.0
  %4933 = vmatpush1.msra.mxu0 0.0
  %4934 = vmatprep.subr.mxu0 0.0
  %4935 = vmatpush1.msra.mxu0 0.0
  %4936 = vmatprep.subr.mxu0 0.0
  %4937 = vmatpush1.msra.mxu0 0.0
  %4938 = vmatprep.subr.mxu0 0.0
  %4939 = vmatpush1.msra.mxu0 0.0
  %4940 = vmatprep.subr.mxu0 0.0
  %4941 = vmatpush1.msra.mxu0 0.0
  %4942 = vmatprep.subr.mxu0 0.0
  %4943 = vmatpush1.msra.mxu0 0.0
  %4944 = vmatprep.subr.mxu0 0.0
  %4945 = vmatpush1.msra.mxu0 0.0
  %4946 = vmatprep.subr.mxu0 0.0
  %4947 = vmatpush1.msra.mxu0 0.0
  %4948 = vmatprep.subr.mxu0 0.0
  %4949 = vmatpush1.msra.mxu0 0.0
  %4950 = vmatprep.subr.mxu0 0.0
  %4951 = vmatpush1.msra.mxu0 0.0
  %4952 = vmatprep.subr.mxu0 0.0
  %4953 = vmatpush1.msra.mxu0 0.0
  %4954 = vmatprep.subr.mxu0 0.0
  %4955 = vmatpush1.msra.mxu0 0.0
  %4956 = vmatprep.subr.mxu0 0.0
  %4957 = vmatpush1.msra.mxu0 0.0
  %4958 = vmatprep.subr.mxu0 0.0
  %4959 = vmatpush1.msra.mxu0 0.0
  %4960 = vmatprep.subr.mxu0 0.0
  %4961 = vmatpush1.msra.mxu0 0.0
  %4962 = vmatprep.subr.mxu0 0.0
  %4963 = vmatpush1.msra.mxu0 0.0
  %4964 = vmatprep.subr.mxu0 0.0
  %4965 = vmatpush1.msra.mxu0 0.0
  %4966 = vmatprep.mubr.f32.mxu0 0.0
  %v4967 = vand.u32 %v4561, 4294901760
  %4968 = vmatmul.mubr.f32.gmra.mrb[0].mxu0 %v4967
  %v4969 = vpop.f32.mrb[0].mxu0
  %v4970 = vadd.f32 %v4887, %v4969
  %v4971 = vpop.f32.mrb[0].mxu0
  %4972 = vdwg.mxu0
  %4973 = vmatprep.subr.mxu0 0.0
  %v4974 = vand.u32 %v929, 4294901760
  %4975 = vmatpush1.msra.mxu0 %v4974
  %4976 = vmatprep.subr.mxu0 0.0
  %v4977 = vand.u32 %v930, 4294901760
  %4978 = vmatpush1.msra.mxu0 %v4977
  %4979 = vmatprep.subr.mxu0 0.0
  %v4980 = vand.u32 %v931, 4294901760
  %4981 = vmatpush1.msra.mxu0 %v4980
  %4982 = vmatprep.subr.mxu0 0.0
  %v4983 = vand.u32 %v932, 4294901760
  %4984 = vmatpush1.msra.mxu0 %v4983
  %4985 = vmatprep.subr.mxu0 0.0
  %4986 = vmatpush1.msra.mxu0 0.0
  %4987 = vmatprep.subr.mxu0 0.0
  %4988 = vmatpush1.msra.mxu0 0.0
  %4989 = vmatprep.subr.mxu0 0.0
  %4990 = vmatpush1.msra.mxu0 0.0
  %4991 = vmatprep.subr.mxu0 0.0
  %4992 = vmatpush1.msra.mxu0 0.0
  %4993 = vmatprep.subr.mxu0 0.0
  %4994 = vmatpush1.msra.mxu0 0.0
  %4995 = vmatprep.subr.mxu0 0.0
  %4996 = vmatpush1.msra.mxu0 0.0
  %4997 = vmatprep.subr.mxu0 0.0
  %4998 = vmatpush1.msra.mxu0 0.0
  %4999 = vmatprep.subr.mxu0 0.0
  %5000 = vmatpush1.msra.mxu0 0.0
  %5001 = vmatprep.subr.mxu0 0.0
  %5002 = vmatpush1.msra.mxu0 0.0
  %5003 = vmatprep.subr.mxu0 0.0
  %5004 = vmatpush1.msra.mxu0 0.0
  %5005 = vmatprep.subr.mxu0 0.0
  %5006 = vmatpush1.msra.mxu0 0.0
  %5007 = vmatprep.subr.mxu0 0.0
  %5008 = vmatpush1.msra.mxu0 0.0
  %5009 = vmatprep.subr.mxu0 0.0
  %5010 = vmatpush1.msra.mxu0 0.0
  %5011 = vmatprep.subr.mxu0 0.0
  %5012 = vmatpush1.msra.mxu0 0.0
  %5013 = vmatprep.subr.mxu0 0.0
  %5014 = vmatpush1.msra.mxu0 0.0
  %5015 = vmatprep.subr.mxu0 0.0
  %5016 = vmatpush1.msra.mxu0 0.0
  %5017 = vmatprep.subr.mxu0 0.0
  %5018 = vmatpush1.msra.mxu0 0.0
  %5019 = vmatprep.subr.mxu0 0.0
  %5020 = vmatpush1.msra.mxu0 0.0
  %5021 = vmatprep.subr.mxu0 0.0
  %5022 = vmatpush1.msra.mxu0 0.0
  %5023 = vmatprep.subr.mxu0 0.0
  %5024 = vmatpush1.msra.mxu0 0.0
  %5025 = vmatprep.subr.mxu0 0.0
  %5026 = vmatpush1.msra.mxu0 0.0
  %5027 = vmatprep.subr.mxu0 0.0
  %5028 = vmatpush1.msra.mxu0 0.0
  %5029 = vmatprep.subr.mxu0 0.0
  %5030 = vmatpush1.msra.mxu0 0.0
  %5031 = vmatprep.subr.mxu0 0.0
  %5032 = vmatpush1.msra.mxu0 0.0
  %5033 = vmatprep.subr.mxu0 0.0
  %5034 = vmatpush1.msra.mxu0 0.0
  %5035 = vmatprep.subr.mxu0 0.0
  %5036 = vmatpush1.msra.mxu0 0.0
  %5037 = vmatprep.subr.mxu0 0.0
  %5038 = vmatpush1.msra.mxu0 0.0
  %5039 = vmatprep.subr.mxu0 0.0
  %5040 = vmatpush1.msra.mxu0 0.0
  %5041 = vmatprep.mubr.f32.mxu0 0.0
  %v5042 = vand.u32 %v4561, 4294901760
  %5043 = vmatmul.mubr.f32.gmra.mrb[0].mxu0 %v5042
  %v5044 = vpop.f32.mrb[0].mxu0
  %v5045 = vadd.f32 %v4970, %v5044
  %v5046 = vpop.f32.mrb[0].mxu0
  %5047 = vdwg.mxu0
  %v5048 = vadd.f32 %v4557, %v5045
  %v5049 = vxor.u32 %v5048, 2147483648
  %v5050 = vmul.f32 %v5049, 1.442695
  %v5051 = vpow.pop %v5050
  %v5052 = vadd.f32 %v5051, 1.0
  %v5053 = vrcp.pop %v5052
  %v5054 = vmul.f32 1.0, %v5053
  %v5055 = vtanh.pop %v5048
  %v5056 = vmul.f32 %v5054, %v4549
  %5058 = vrot.lane.b32.xlu0 %v5055, 64
  %v5059 = vpop.permute.xlu0 %5058
  %v5061 = vmul.f32 %v5054, %v5059
  %5063 = vrot.lane.b32.xlu0 %v5061, 32
  %v5064 = vpop.permute.xlu0 %5063
  %v5066 = vadd.f32 %v5056, %v5064
  %v5067 = vtanh.pop %v5066
  %5069 = vrot.lane.b32.xlu0 %v5067, 64
  %v5070 = vpop.permute.xlu0 %5069
  %v5072 = vmul.f32 %v5054, %v5070
  %5074 = vrot.lane.b32.xlu0 %v5072, 32
  %v5075 = vpop.permute.xlu0 %5074
  %5077 = vst.msk [vmem:[#allocation5] sm:$0xff] %vm936, %v5075
  %5079 = vrot.lane.b32.xlu0 %v5066, 96
  %v5080 = vpop.permute.xlu0 %5079
  %5082 = vst.msk [vmem:[#allocation6] sm:$0xff] %vm936, %v5080
  // Predicated region
  $region82: #{lstm_model_forward.1} parent=0 // pred_check
    %p5083 = pneg %p13
  $region83: #{lstm_model_forward.1} parent=0 // pred_check_branch
    %5085 = sbr.rel (%p5083) target = $region85
  $region84: #{lstm_model_forward.1} parent=0 // pred_region
    %5086 = vst.msk [vmem:[%s4] sm:$0xff] %vm936, %v5075
  $region85: #{lstm_model_forward.1} parent=0 // pred_fallthru
    _
  // Predicated region
  $region86: #{lstm_model_forward.1} parent=0 // pred_check
    _
  $region87: #{lstm_model_forward.1} parent=0 // pred_check_branch
    %5088 = sbr.rel (0) target = $region89
  $region88: #{lstm_model_forward.1} parent=0 // pred_region
    _
  $region89: #{lstm_model_forward.1} parent=0 // pred_fallthru
    _
  // Predicated region
  $region90: #{lstm_model_forward.1} parent=0 // pred_check
    _
  $region91: #{lstm_model_forward.1} parent=0 // pred_check_branch
    %5090 = sbr.rel (0) target = $region93
  $region92: #{lstm_model_forward.1} parent=0 // pred_region
    _
  $region93: #{lstm_model_forward.1} parent=0 // pred_fallthru
    _
  %5091 = vsyncmov [#allocation7]
  %s5092 = vpop.sfrf %5091
  %p5093 = scmp.eq.s32.totalorder %s5092, 0
  %p5094 = pneg %p5093
  %5096 = shalt.err (%p5094)
  %s5097 = scalar_lea.sflag [#allocation7], 1
  %5098 = vsyncmov %s5097
  %s5099 = vpop.sfrf %5098
  %p5100 = scmp.eq.s32.totalorder %s5099, 0
  %p5101 = pneg %p5100
  %5103 = shalt.err (%p5101)

</llo_original>
